<compile_context>
chip_gen: v7x
topology: tpu7x:2x2x1
jax: 0.10.0
libtpu: 0.0.40
codegen_flags: <defaults>
</compile_context>

<pallas_src>
import functools

import jax
import jax.numpy as jnp
from jax import lax
from jax.experimental import pallas as pl
from jax.experimental.pallas import tpu as pltpu

BN_EPS = 1e-5
PADL = 16  # interior column offset inside the slab (aligned for f32 and bf16 tiles)


# --------------------------------------------------------------------------- #
# Pass 1: 3x3 conv (+bias) for one row tile, plus per-tile BN partial sums.
# One grid step == one (image, row-tile) pair; the grid is a flat parallel axis.
# --------------------------------------------------------------------------- #
def _conv3x3_stats_kernel(cur_ref, halo_ref, w_ref, b_ref,        # inputs
                          conv_ref, psum_ref, psumsq_ref,         # outputs
                          slab_ref,                               # scratch
                          *, TH, W, C):
    dt = slab_ref.dtype

    # Assemble the zero-padded slab for this tile:
    #   rows: [halo_top, tile rows..., halo_bottom]  (halo rows are already zero
    #   at the image borders, built in the wrapper), columns: interior at PADL,
    #   single zero column on each side (only the two columns the taps read).
    slab_ref[:, pl.ds(PADL - 1, 1), :] = jnp.zeros((TH + 2, 1, C), dt)
    slab_ref[:, pl.ds(PADL + W, 1), :] = jnp.zeros((TH + 2, 1, C), dt)
    slab_ref[pl.ds(0, 1), pl.ds(PADL, W), :] = halo_ref[pl.ds(0, 1), :, :]
    slab_ref[pl.ds(1, TH), pl.ds(PADL, W), :] = cur_ref[...]
    slab_ref[pl.ds(TH + 1, 1), pl.ds(PADL, W), :] = halo_ref[pl.ds(1, 1), :, :]

    # 9 accumulating MXU matmuls on shifted slab slices (no materialized im2col).
    acc = jnp.zeros((TH * W, C), jnp.float32)
    for dy in range(3):
        for dx in range(3):
            tap = slab_ref[pl.ds(dy, TH), pl.ds(PADL - 1 + dx, W), :]
            acc = acc + jnp.dot(tap.reshape(TH * W, C), w_ref[dy, dx],
                                preferred_element_type=jnp.float32)
    acc = acc + b_ref[...]                        # conv bias (f32)

    conv_ref[...] = acc.astype(conv_ref.dtype)
    # Per-tile BN partials (f32); the tiny (n_tiles, C) reduction finishes in JAX.
    psum_ref[...] = jnp.sum(acc, axis=0).reshape(1, 1, C)
    psumsq_ref[...] = jnp.sum(acc * acc, axis=0).reshape(1, 1, C)


# --------------------------------------------------------------------------- #
# Pass 2: y = relu(conv * scale + shift)   (optionally fused with "+ x" to form
# the next recurrent step's conv input).
# --------------------------------------------------------------------------- #
def _bn_relu_kernel(conv_ref, scale_ref, shift_ref, o_ref):
    y = conv_ref[...].astype(jnp.float32) * scale_ref[...] + shift_ref[...]
    o_ref[...] = jnp.maximum(y, 0.0).astype(o_ref.dtype)


def _bn_relu_add_kernel(conv_ref, x_ref, scale_ref, shift_ref, o_ref):
    y = conv_ref[...].astype(jnp.float32) * scale_ref[...] + shift_ref[...]
    y = jnp.maximum(y, 0.0)
    o_ref[...] = (x_ref[...].astype(jnp.float32) + y).astype(o_ref.dtype)


# --------------------------------------------------------------------------- #
# Tile selection (generation-aware VMEM budgeting)
# --------------------------------------------------------------------------- #
def _vmem_capacity_bytes():
    try:
        return int(pltpu.get_tpu_info().vmem_capacity_bytes)
    except Exception:
        return 64 * 1024 * 1024   # v7x-safe fallback


def _divisors(n):
    return [d for d in range(1, n + 1) if n % d == 0]


def _pick_tile_h(H, W, C, itemsize, vmem_cap):
    """Largest row-tile TH whose per-step VMEM footprint fits the budget."""
    budget = vmem_cap // 4            # headroom for double buffers + compiler scratch
    acc_cap = 1 << 20                 # cap the f32 accumulator (vreg/spill pressure)
    cands = [d for d in _divisors(H) if (d * W) % 8 == 0] or [H]
    feasible = []
    for th in cands:
        slab = (th + 2) * (W + 2 * PADL) * C * itemsize
        cur = 2 * th * W * C * itemsize          # double-buffered input tile
        halo = 2 * 2 * W * C * itemsize
        conv = 2 * th * W * C * itemsize         # double-buffered conv_out tile
        acc = th * W * C * 4
        wts = 2 * 9 * C * C * itemsize
        misc = 2 * (C * 4) + 4 * (C * 4)
        if acc <= acc_cap and (slab + cur + halo + conv + acc + wts + misc) <= budget:
            feasible.append(th)
    if not feasible:
        feasible = [cands[0]]
    # Prefer matmul M = TH*W aligned to 256 (v6e/v7x MXU) when it fits.
    pref = [th for th in feasible if (th * W) % 256 == 0]
    return max(pref) if pref else max(feasible)


def _pick_norm_rows(R, C, vmem_cap):
    """Large lane-dense blocks for the streaming normalize pass (~2-4 MiB)."""
    target_rows = max(8, min(4 << 20, vmem_cap // 16) // (C * 4))
    cands = [d for d in _divisors(R) if d % 8 == 0 and d <= target_rows]
    return max(cands) if cands else R


# --------------------------------------------------------------------------- #
# Wrappers
# --------------------------------------------------------------------------- #
def _build_halo(z_flat, N, H, W, C, TH):
    """(N*HT*2, W, C): for each row tile, the row above and below (zeros at borders)."""
    HT = H // TH
    img = z_flat.reshape(N, H, W, C)
    zrow = jnp.zeros((N, 1, W, C), z_flat.dtype)
    if HT > 1:
        above = jnp.concatenate([zrow, img[:, TH - 1:H - 1:TH]], axis=1)   # (N, HT, W, C)
        below = jnp.concatenate([img[:, TH:H:TH], zrow], axis=1)           # (N, HT, W, C)
    else:
        above = zrow
        below = zrow
    return jnp.stack([above, below], axis=2).reshape(N * HT * 2, W, C)


def _conv_phase(z_flat, halo, w4, b2, N, H, W, C, TH, vmem_limit):
    HT = H // TH
    R = N * H * W
    RT = TH * W
    nblk = N * HT
    z_img = z_flat.reshape(N * H, W, C)
    kernel = functools.partial(_conv3x3_stats_kernel, TH=TH, W=W, C=C)
    conv_out, psum, psumsq = pl.pallas_call(
        kernel,
        out_shape=(jax.ShapeDtypeStruct((R, C), z_flat.dtype),
                   jax.ShapeDtypeStruct((nblk, 1, C), jnp.float32),
                   jax.ShapeDtypeStruct((nblk, 1, C), jnp.float32)),
        grid=(nblk,),
        in_specs=[
            pl.BlockSpec((TH, W, C), lambda i: (i, 0, 0)),        # row tile (streamed)
            pl.BlockSpec((2, W, C), lambda i: (i, 0, 0)),         # 2-row halo
            pl.BlockSpec((3, 3, C, C), lambda i: (0, 0, 0, 0)),   # weights (resident)
            pl.BlockSpec((1, C), lambda i: (0, 0)),               # bias (resident)
        ],
        out_specs=(
            pl.BlockSpec((RT, C), lambda i: (i, 0)),              # conv(+bias) tile
            pl.BlockSpec((1, 1, C), lambda i: (i, 0, 0)),         # per-tile sum
            pl.BlockSpec((1, 1, C), lambda i: (i, 0, 0)),         # per-tile sum of squares
        ),
        scratch_shapes=[pltpu.VMEM((TH + 2, W + 2 * PADL, C), z_flat.dtype)],
        compiler_params=pltpu.CompilerParams(
            dimension_semantics=("parallel",),
            vmem_limit_bytes=vmem_limit),
    )(z_img, halo, w4, b2)
    return conv_out, psum, psumsq


def _normalize_phase(conv_out, x_flat, scale, shift, R, C, RT, out_dtype, vmem_limit):
    nblk = R // RT
    row_spec = pl.BlockSpec((RT, C), lambda i: (i, 0))
    par_spec = pl.BlockSpec((1, C), lambda i: (0, 0))
    params = pltpu.CompilerParams(dimension_semantics=("parallel",),
                                  vmem_limit_bytes=vmem_limit)
    if x_flat is not None:
        return pl.pallas_call(
            _bn_relu_add_kernel,
            out_shape=jax.ShapeDtypeStruct((R, C), out_dtype),
            grid=(nblk,),
            in_specs=[row_spec, row_spec, par_spec, par_spec],
            out_specs=row_spec,
            compiler_params=params,
        )(conv_out, x_flat, scale, shift)
    return pl.pallas_call(
        _bn_relu_kernel,
        out_shape=jax.ShapeDtypeStruct((R, C), out_dtype),
        grid=(nblk,),
        in_specs=[row_spec, par_spec, par_spec],
        out_specs=row_spec,
        compiler_params=params,
    )(conv_out, scale, shift)


def recurrent_block_forward(x_nchw, w_oihw, bias, gamma, beta, *, t=2,
                            tile_h=None, compute_dtype=jnp.bfloat16):
    """Pallas implementation of Recurrent_block.forward (training-mode BN)."""
    assert t >= 1
    N, C, H, W = x_nchw.shape
    assert w_oihw.shape == (C, C, 3, 3)
    itemsize = jnp.dtype(compute_dtype).itemsize
    vmem_cap = _vmem_capacity_bytes()
    vmem_limit = min(int(vmem_cap * 0.75), 96 * 1024 * 1024)
    TH = _pick_tile_h(H, W, C, itemsize, vmem_cap) if tile_h is None else tile_h
    assert H % TH == 0 and (TH * W) % 8 == 0
    R = N * H * W
    RT_norm = _pick_norm_rows(R, C, vmem_cap)

    # NCHW -> flat NHWC rows; channels on the lane axis. (If the surrounding
    # network is already NHWC these two transposes should be dropped.)
    x_flat = jnp.transpose(x_nchw, (0, 2, 3, 1)).reshape(R, C).astype(compute_dtype)
    # OIHW -> (kh, kw, cin, cout): one (Cin, Cout) MXU operand per tap.
    w4 = jnp.transpose(w_oihw, (2, 3, 1, 0)).astype(compute_dtype)
    b2 = bias.reshape(1, C).astype(jnp.float32)
    gamma_f = gamma.astype(jnp.float32)
    beta_f = beta.astype(jnp.float32)

    # Torch loop: x1 = f(x); then x1 = f(x + x1) a total of t times => t+1 convs.
    num_convs = t + 1
    z = x_flat
    y = None
    for k in range(num_convs):
        halo = _build_halo(z, N, H, W, C, TH)
        conv_out, psum, psumsq = _conv_phase(z, halo, w4, b2, N, H, W, C, TH,
                                             vmem_limit)
        # Finish the BN reduction on tiny (n_tiles, C) f32 partials in JAX.
        mean = jnp.sum(psum, axis=0).reshape(C) / R
        ex2 = jnp.sum(psumsq, axis=0).reshape(C) / R
        # E[x^2]-mean^2 can cancel for large |mean|; clamp keeps it >= 0.
        var = jnp.maximum(ex2 - mean * mean, 0.0)     # biased (training-mode) var
        inv = lax.rsqrt(var + BN_EPS)
        scale = (gamma_f * inv).reshape(1, C)
        shift = (beta_f - mean * gamma_f * inv).reshape(1, C)
        if k < num_convs - 1:
            # z = x + relu(bn(conv)) -> input of the next conv (kept in compute_dtype).
            z = _normalize_phase(conv_out, x_flat, scale, shift, R, C, RT_norm,
                                 compute_dtype, vmem_limit)
        else:
            y = _normalize_phase(conv_out, None, scale, shift, R, C, RT_norm,
                                 jnp.float32, vmem_limit)
    # TODO(synk): BatchNorm running_mean/running_var buffer updates (training
    # side effect) are not modeled; they do not affect the forward output.
    return jnp.transpose(y.reshape(N, H, W, C), (0, 3, 1, 2))


# --------------------------------------------------------------------------- #
# Pure-JAX reference (same semantics as the PyTorch module in train mode).
# --------------------------------------------------------------------------- #
def recurrent_block_reference(x_nchw, w_oihw, bias, gamma, beta, t=2):
    def conv_bn_relu(z):
        y = lax.conv_general_dilated(
            z, w_oihw.astype(jnp.float32), window_strides=(1, 1), padding="SAME",
            dimension_numbers=("NCHW", "OIHW", "NCHW"))
        y = y + bias.reshape(1, -1, 1, 1)
        mean = jnp.mean(y, axis=(0, 2, 3), keepdims=True)
        var = jnp.mean((y - mean) ** 2, axis=(0, 2, 3), keepdims=True)
        y = (y - mean) * lax.rsqrt(var + BN_EPS) * gamma.reshape(1, -1, 1, 1) \
            + beta.reshape(1, -1, 1, 1)
        return jnp.maximum(y, 0.0)

    x = x_nchw.astype(jnp.float32)
    x1 = None
    for i in range(t):
        if i == 0:
            x1 = conv_bn_relu(x)
        x1 = conv_bn_relu(x + x1)
    return x1


if __name__ == "__main__":
    # Recurrent_block(ch_out=8, t=2) on input (2, 8, 16, 16).
    N, C, H, W, T = 2, 8, 16, 16, 2
    key = jax.random.PRNGKey(0)
    kx, kw, kb, kg, kbe = jax.random.split(key, 5)

    x = jax.random.normal(kx, (N, C, H, W), dtype=jnp.float32)
    conv_w = jax.random.normal(kw, (C, C, 3, 3), dtype=jnp.float32) * 0.1
    conv_b = jax.random.normal(kb, (C,), dtype=jnp.float32) * 0.1
    bn_gamma = 1.0 + 0.1 * jax.random.normal(kg, (C,), dtype=jnp.float32)
    bn_beta = 0.1 * jax.random.normal(kbe, (C,), dtype=jnp.float32)

    ref = jax.block_until_ready(
        recurrent_block_reference(x, conv_w, conv_b, bn_gamma, bn_beta, t=T))

    # f32 path: tight correctness check; tile_h=8 -> 2 row tiles per image, so
    # the halo streaming and cross-tile BN reduction are actually exercised.
    fwd_f32 = jax.jit(functools.partial(
        recurrent_block_forward, t=T, tile_h=8, compute_dtype=jnp.float32))
    out_f32 = jax.block_until_ready(fwd_f32(x, conv_w, conv_b, bn_gamma, bn_beta))
    assert out_f32.shape == (N, C, H, W), out_f32.shape
    assert jnp.allclose(out_f32, ref, atol=2e-3, rtol=2e-3), \
        float(jnp.max(jnp.abs(out_f32 - ref)))

    # Production path: bf16-carried activations (f32 MXU accumulation & BN stats),
    # auto tile selection. Loose check (bf16 quantization of activations).
    fwd_bf16 = jax.jit(functools.partial(
        recurrent_block_forward, t=T, compute_dtype=jnp.bfloat16))
    out_bf16 = jax.block_until_ready(fwd_bf16(x, conv_w, conv_b, bn_gamma, bn_beta))
    assert jnp.allclose(out_bf16, ref, atol=1e-1, rtol=1e-1), \
        float(jnp.max(jnp.abs(out_bf16 - ref)))

    print("KERNEL_OK")
</pallas_src>

<mosaic_0001>
module attributes {stable_mosaic.version = 11 : i64} {
  func.func @_bn_relu_add_kernel(%arg0: i32, %arg1: memref<512x8xf32, #tpu.memory_space<vmem>>, %arg2: memref<512x8xf32, #tpu.memory_space<vmem>>, %arg3: memref<1x8xf32, #tpu.memory_space<vmem>>, %arg4: memref<1x8xf32, #tpu.memory_space<vmem>>, %arg5: memref<512x8xf32, #tpu.memory_space<vmem>>) attributes {dimension_semantics = [#tpu.dimension_semantics<parallel>], iteration_bounds = array<i64: 1>, scalar_prefetch = 0 : i64, scratch_operands = 0 : i64, tpu.core_type = #tpu.core_type<tc>, window_params = [{transform_indices = @transform_0, window_bounds = array<i64: 512, 8>}, {transform_indices = @transform_1, window_bounds = array<i64: 512, 8>}, {pipeline_mode = #tpu.pipeline_mode<synchronous>, transform_indices = @transform_2, window_bounds = array<i64: 1, 8>}, {pipeline_mode = #tpu.pipeline_mode<synchronous>, transform_indices = @transform_3, window_bounds = array<i64: 1, 8>}, {transform_indices = @transform_4, window_bounds = array<i64: 512, 8>}]} {
    %c0 = arith.constant 0 : index
    %c0_0 = arith.constant 0 : index
    %0 = vector.load %arg1[%c0, %c0_0] : memref<512x8xf32, #tpu.memory_space<vmem>>, vector<512x8xf32>
    %c0_1 = arith.constant 0 : index
    %c0_2 = arith.constant 0 : index
    %1 = vector.load %arg3[%c0_1, %c0_2] : memref<1x8xf32, #tpu.memory_space<vmem>>, vector<1x8xf32>
    %2 = vector.broadcast %1 : vector<1x8xf32> to vector<512x8xf32>
    %3 = arith.mulf %0, %2 : vector<512x8xf32>
    %c0_3 = arith.constant 0 : index
    %c0_4 = arith.constant 0 : index
    %4 = vector.load %arg4[%c0_3, %c0_4] : memref<1x8xf32, #tpu.memory_space<vmem>>, vector<1x8xf32>
    %5 = vector.broadcast %4 : vector<1x8xf32> to vector<512x8xf32>
    %6 = arith.addf %3, %5 : vector<512x8xf32>
    %cst = arith.constant 0.000000e+00 : f32
    %7 = vector.broadcast %cst : f32 to vector<512x8xf32>
    %8 = arith.maximumf %6, %7 : vector<512x8xf32>
    %c0_5 = arith.constant 0 : index
    %c0_6 = arith.constant 0 : index
    %9 = vector.load %arg2[%c0_5, %c0_6] : memref<512x8xf32, #tpu.memory_space<vmem>>, vector<512x8xf32>
    %10 = arith.addf %9, %8 : vector<512x8xf32>
    %c0_7 = arith.constant 0 : index
    %c0_8 = arith.constant 0 : index
    %11 = vector.load %arg5[%c0_7, %c0_8] : memref<512x8xf32, #tpu.memory_space<vmem>>, vector<512x8xf32>
    tpu.vector_store %arg5[%c0_7, %c0_8], %10 {strides = array<i32>} : memref<512x8xf32, #tpu.memory_space<vmem>>, vector<512x8xf32>,
    return
  }
  func.func @transform_0(%arg0: i32) -> (i32, i32) {
    %c0_i32 = arith.constant 0 : i32
    %c0_i32_0 = arith.constant 0 : i32
    return %arg0, %c0_i32 : i32, i32
  }
  func.func @transform_1(%arg0: i32) -> (i32, i32) {
    %c0_i32 = arith.constant 0 : i32
    %c0_i32_0 = arith.constant 0 : i32
    return %arg0, %c0_i32 : i32, i32
  }
  func.func @transform_2(%arg0: i32) -> (i32, i32) {
    %c0_i32 = arith.constant 0 : i32
    %c0_i32_0 = arith.constant 0 : i32
    %c0_i32_1 = arith.constant 0 : i32
    return %c0_i32, %c0_i32_0 : i32, i32
  }
  func.func @transform_3(%arg0: i32) -> (i32, i32) {
    %c0_i32 = arith.constant 0 : i32
    %c0_i32_0 = arith.constant 0 : i32
    %c0_i32_1 = arith.constant 0 : i32
    return %c0_i32, %c0_i32_0 : i32, i32
  }
  func.func @transform_4(%arg0: i32) -> (i32, i32) {
    %c0_i32 = arith.constant 0 : i32
    %c0_i32_0 = arith.constant 0 : i32
    return %arg0, %c0_i32 : i32, i32
  }
}

module attributes {stable_mosaic.version = 11 : i64} {
  func.func @_conv3x3_stats_kernel(%arg0: i32, %arg1: memref<8x16x8xf32, #tpu.memory_space<vmem>>, %arg2: memref<2x16x8xf32, #tpu.memory_space<vmem>>, %arg3: memref<3x3x8x8xf32, #tpu.memory_space<vmem>>, %arg4: memref<1x8xf32, #tpu.memory_space<vmem>>, %arg5: memref<128x8xf32, #tpu.memory_space<vmem>>, %arg6: memref<1x1x8xf32, #tpu.memory_space<vmem>>, %arg7: memref<1x1x8xf32, #tpu.memory_space<vmem>>, %arg8: memref<10x48x8xf32, #tpu.memory_space<vmem>>) attributes {dimension_semantics = [#tpu.dimension_semantics<parallel>], iteration_bounds = array<i64: 4>, scalar_prefetch = 0 : i64, scratch_operands = 1 : i64, tpu.core_type = #tpu.core_type<tc>, window_params = [{transform_indices = @transform_0, window_bounds = array<i64: 8, 16, 8>}, {transform_indices = @transform_1, window_bounds = array<i64: 2, 16, 8>}, {pipeline_mode = #tpu.pipeline_mode<synchronous>, transform_indices = @transform_2, window_bounds = array<i64: 3, 3, 8, 8>}, {pipeline_mode = #tpu.pipeline_mode<synchronous>, transform_indices = @transform_3, window_bounds = array<i64: 1, 8>}, {transform_indices = @transform_4, window_bounds = array<i64: 128, 8>}, {transform_indices = @transform_5, window_bounds = array<i64: 1, 1, 8>}, {transform_indices = @transform_6, window_bounds = array<i64: 1, 1, 8>}]} {
    %cst = arith.constant 0.000000e+00 : f32
    %0 = vector.broadcast %cst : f32 to vector<10x1x8xf32>
    %c0 = arith.constant 0 : index
    %c15 = arith.constant 15 : index
    %c0_0 = arith.constant 0 : index
    %1 = vector.load %arg8[%c0, %c15, %c0_0] : memref<10x48x8xf32, #tpu.memory_space<vmem>>, vector<10x1x8xf32>
    tpu.vector_store %arg8[%c0, %c15, %c0_0], %0 {strides = array<i32>} : memref<10x48x8xf32, #tpu.memory_space<vmem>>, vector<10x1x8xf32>,
    %cst_1 = arith.constant 0.000000e+00 : f32
    %2 = vector.broadcast %cst_1 : f32 to vector<10x1x8xf32>
    %c0_2 = arith.constant 0 : index
    %c32 = arith.constant 32 : index
    %c0_3 = arith.constant 0 : index
    %3 = vector.load %arg8[%c0_2, %c32, %c0_3] : memref<10x48x8xf32, #tpu.memory_space<vmem>>, vector<10x1x8xf32>
    tpu.vector_store %arg8[%c0_2, %c32, %c0_3], %2 {strides = array<i32>} : memref<10x48x8xf32, #tpu.memory_space<vmem>>, vector<10x1x8xf32>,
    %c0_4 = arith.constant 0 : index
    %c0_5 = arith.constant 0 : index
    %c0_6 = arith.constant 0 : index
    %4 = vector.load %arg2[%c0_4, %c0_5, %c0_6] : memref<2x16x8xf32, #tpu.memory_space<vmem>>, vector<1x16x8xf32>
    %c0_7 = arith.constant 0 : index
    %c16 = arith.constant 16 : index
    %c0_8 = arith.constant 0 : index
    %5 = vector.load %arg8[%c0_7, %c16, %c0_8] : memref<10x48x8xf32, #tpu.memory_space<vmem>>, vector<1x16x8xf32>
    tpu.vector_store %arg8[%c0_7, %c16, %c0_8], %4 {strides = array<i32>} : memref<10x48x8xf32, #tpu.memory_space<vmem>>, vector<1x16x8xf32>,
    %c0_9 = arith.constant 0 : index
    %c0_10 = arith.constant 0 : index
    %c0_11 = arith.constant 0 : index
    %6 = vector.load %arg1[%c0_9, %c0_10, %c0_11] : memref<8x16x8xf32, #tpu.memory_space<vmem>>, vector<8x16x8xf32>
    %c1 = arith.constant 1 : index
    %c16_12 = arith.constant 16 : index
    %c0_13 = arith.constant 0 : index
    %7 = vector.load %arg8[%c1, %c16_12, %c0_13] : memref<10x48x8xf32, #tpu.memory_space<vmem>>, vector<8x16x8xf32>
    tpu.vector_store %arg8[%c1, %c16_12, %c0_13], %6 {strides = array<i32>} : memref<10x48x8xf32, #tpu.memory_space<vmem>>, vector<8x16x8xf32>,
    %c1_14 = arith.constant 1 : index
    %c0_15 = arith.constant 0 : index
    %c0_16 = arith.constant 0 : index
    %8 = vector.load %arg2[%c1_14, %c0_15, %c0_16] : memref<2x16x8xf32, #tpu.memory_space<vmem>>, vector<1x16x8xf32>
    %c9 = arith.constant 9 : index
    %c16_17 = arith.constant 16 : index
    %c0_18 = arith.constant 0 : index
    %9 = vector.load %arg8[%c9, %c16_17, %c0_18] : memref<10x48x8xf32, #tpu.memory_space<vmem>>, vector<1x16x8xf32>
    tpu.vector_store %arg8[%c9, %c16_17, %c0_18], %8 {strides = array<i32>} : memref<10x48x8xf32, #tpu.memory_space<vmem>>, vector<1x16x8xf32>,
    %cst_19 = arith.constant 0.000000e+00 : f32
    %10 = vector.broadcast %cst_19 : f32 to vector<128x8xf32>
    %c0_20 = arith.constant 0 : index
    %c15_21 = arith.constant 15 : index
    %c0_22 = arith.constant 0 : index
    %11 = vector.load %arg8[%c0_20, %c15_21, %c0_22] : memref<10x48x8xf32, #tpu.memory_space<vmem>>, vector<8x16x8xf32>
    %12 = vector.shape_cast %11 : vector<8x16x8xf32> to vector<128x8xf32>
    %c0_23 = arith.constant 0 : index
    %c0_24 = arith.constant 0 : index
    %c0_25 = arith.constant 0 : index
    %c0_26 = arith.constant 0 : index
    %13 = vector.load %arg3[%c0_23, %c0_24, %c0_25, %c0_26] : memref<3x3x8x8xf32, #tpu.memory_space<vmem>>, vector<1x1x8x8xf32>
    %14 = vector.shape_cast %13 : vector<1x1x8x8xf32> to vector<8x8xf32>
    %cst_27 = arith.constant dense<0.000000e+00> : vector<128x8xf32>
    %15 = tpu.matmul %12, %14, %cst_27 {dimension_numbers = #tpu.dot_dimension_numbers<[1], [0], [0], [1], [0, 0, 1, 1], [], []>} : vector<128x8xf32>, vector<8x8xf32>, vector<128x8xf32> -> vector<128x8xf32>
    %16 = arith.addf %10, %15 : vector<128x8xf32>
    %c0_28 = arith.constant 0 : index
    %c16_29 = arith.constant 16 : index
    %c0_30 = arith.constant 0 : index
    %17 = vector.load %arg8[%c0_28, %c16_29, %c0_30] : memref<10x48x8xf32, #tpu.memory_space<vmem>>, vector<8x16x8xf32>
    %18 = vector.shape_cast %17 : vector<8x16x8xf32> to vector<128x8xf32>
    %c0_31 = arith.constant 0 : index
    %c1_32 = arith.constant 1 : index
    %c0_33 = arith.constant 0 : index
    %c0_34 = arith.constant 0 : index
    %19 = vector.load %arg3[%c0_31, %c1_32, %c0_33, %c0_34] : memref<3x3x8x8xf32, #tpu.memory_space<vmem>>, vector<1x1x8x8xf32>
    %20 = vector.shape_cast %19 : vector<1x1x8x8xf32> to vector<8x8xf32>
    %cst_35 = arith.constant dense<0.000000e+00> : vector<128x8xf32>
    %21 = tpu.matmul %18, %20, %cst_35 {dimension_numbers = #tpu.dot_dimension_numbers<[1], [0], [0], [1], [0, 0, 1, 1], [], []>} : vector<128x8xf32>, vector<8x8xf32>, vector<128x8xf32> -> vector<128x8xf32>
    %22 = arith.addf %16, %21 : vector<128x8xf32>
    %c0_36 = arith.constant 0 : index
    %c17 = arith.constant 17 : index
    %c0_37 = arith.constant 0 : index
    %23 = vector.load %arg8[%c0_36, %c17, %c0_37] : memref<10x48x8xf32, #tpu.memory_space<vmem>>, vector<8x16x8xf32>
    %24 = vector.shape_cast %23 : vector<8x16x8xf32> to vector<128x8xf32>
    %c0_38 = arith.constant 0 : index
    %c2 = arith.constant 2 : index
    %c0_39 = arith.constant 0 : index
    %c0_40 = arith.constant 0 : index
    %25 = vector.load %arg3[%c0_38, %c2, %c0_39, %c0_40] : memref<3x3x8x8xf32, #tpu.memory_space<vmem>>, vector<1x1x8x8xf32>
    %26 = vector.shape_cast %25 : vector<1x1x8x8xf32> to vector<8x8xf32>
    %cst_41 = arith.constant dense<0.000000e+00> : vector<128x8xf32>
    %27 = tpu.matmul %24, %26, %cst_41 {dimension_numbers = #tpu.dot_dimension_numbers<[1], [0], [0], [1], [0, 0, 1, 1], [], []>} : vector<128x8xf32>, vector<8x8xf32>, vector<128x8xf32> -> vector<128x8xf32>
    %28 = arith.addf %22, %27 : vector<128x8xf32>
    %c1_42 = arith.constant 1 : index
    %c15_43 = arith.constant 15 : index
    %c0_44 = arith.constant 0 : index
    %29 = vector.load %arg8[%c1_42, %c15_43, %c0_44] : memref<10x48x8xf32, #tpu.memory_space<vmem>>, vector<8x16x8xf32>
    %30 = vector.shape_cast %29 : vector<8x16x8xf32> to vector<128x8xf32>
    %c1_45 = arith.constant 1 : index
    %c0_46 = arith.constant 0 : index
    %c0_47 = arith.constant 0 : index
    %c0_48 = arith.constant 0 : index
    %31 = vector.load %arg3[%c1_45, %c0_46, %c0_47, %c0_48] : memref<3x3x8x8xf32, #tpu.memory_space<vmem>>, vector<1x1x8x8xf32>
    %32 = vector.shape_cast %31 : vector<1x1x8x8xf32> to vector<8x8xf32>
    %cst_49 = arith.constant dense<0.000000e+00> : vector<128x8xf32>
    %33 = tpu.matmul %30, %32, %cst_49 {dimension_numbers = #tpu.dot_dimension_numbers<[1], [0], [0], [1], [0, 0, 1, 1], [], []>} : vector<128x8xf32>, vector<8x8xf32>, vector<128x8xf32> -> vector<128x8xf32>
    %34 = arith.addf %28, %33 : vector<128x8xf32>
    %c1_50 = arith.constant 1 : index
    %c16_51 = arith.constant 16 : index
    %c0_52 = arith.constant 0 : index
    %35 = vector.load %arg8[%c1_50, %c16_51, %c0_52] : memref<10x48x8xf32, #tpu.memory_space<vmem>>, vector<8x16x8xf32>
    %36 = vector.shape_cast %35 : vector<8x16x8xf32> to vector<128x8xf32>
    %c1_53 = arith.constant 1 : index
    %c1_54 = arith.constant 1 : index
    %c0_55 = arith.constant 0 : index
    %c0_56 = arith.constant 0 : index
    %37 = vector.load %arg3[%c1_53, %c1_54, %c0_55, %c0_56] : memref<3x3x8x8xf32, #tpu.memory_space<vmem>>, vector<1x1x8x8xf32>
    %38 = vector.shape_cast %37 : vector<1x1x8x8xf32> to vector<8x8xf32>
    %cst_57 = arith.constant dense<0.000000e+00> : vector<128x8xf32>
    %39 = tpu.matmul %36, %38, %cst_57 {dimension_numbers = #tpu.dot_dimension_numbers<[1], [0], [0], [1], [0, 0, 1, 1], [], []>} : vector<128x8xf32>, vector<8x8xf32>, vector<128x8xf32> -> vector<128x8xf32>
    %40 = arith.addf %34, %39 : vector<128x8xf32>
    %c1_58 = arith.constant 1 : index
    %c17_59 = arith.constant 17 : index
    %c0_60 = arith.constant 0 : index
    %41 = vector.load %arg8[%c1_58, %c17_59, %c0_60] : memref<10x48x8xf32, #tpu.memory_space<vmem>>, vector<8x16x8xf32>
    %42 = vector.shape_cast %41 : vector<8x16x8xf32> to vector<128x8xf32>
    %c1_61 = arith.constant 1 : index
    %c2_62 = arith.constant 2 : index
    %c0_63 = arith.constant 0 : index
    %c0_64 = arith.constant 0 : index
    %43 = vector.load %arg3[%c1_61, %c2_62, %c0_63, %c0_64] : memref<3x3x8x8xf32, #tpu.memory_space<vmem>>, vector<1x1x8x8xf32>
    %44 = vector.shape_cast %43 : vector<1x1x8x8xf32> to vector<8x8xf32>
    %cst_65 = arith.constant dense<0.000000e+00> : vector<128x8xf32>
    %45 = tpu.matmul %42, %44, %cst_65 {dimension_numbers = #tpu.dot_dimension_numbers<[1], [0], [0], [1], [0, 0, 1, 1], [], []>} : vector<128x8xf32>, vector<8x8xf32>, vector<128x8xf32> -> vector<128x8xf32>
    %46 = arith.addf %40, %45 : vector<128x8xf32>
    %c2_66 = arith.constant 2 : index
    %c15_67 = arith.constant 15 : index
    %c0_68 = arith.constant 0 : index
    %47 = vector.load %arg8[%c2_66, %c15_67, %c0_68] : memref<10x48x8xf32, #tpu.memory_space<vmem>>, vector<8x16x8xf32>
    %48 = vector.shape_cast %47 : vector<8x16x8xf32> to vector<128x8xf32>
    %c2_69 = arith.constant 2 : index
    %c0_70 = arith.constant 0 : index
    %c0_71 = arith.constant 0 : index
    %c0_72 = arith.constant 0 : index
    %49 = vector.load %arg3[%c2_69, %c0_70, %c0_71, %c0_72] : memref<3x3x8x8xf32, #tpu.memory_space<vmem>>, vector<1x1x8x8xf32>
    %50 = vector.shape_cast %49 : vector<1x1x8x8xf32> to vector<8x8xf32>
    %cst_73 = arith.constant dense<0.000000e+00> : vector<128x8xf32>
    %51 = tpu.matmul %48, %50, %cst_73 {dimension_numbers = #tpu.dot_dimension_numbers<[1], [0], [0], [1], [0, 0, 1, 1], [], []>} : vector<128x8xf32>, vector<8x8xf32>, vector<128x8xf32> -> vector<128x8xf32>
    %52 = arith.addf %46, %51 : vector<128x8xf32>
    %c2_74 = arith.constant 2 : index
    %c16_75 = arith.constant 16 : index
    %c0_76 = arith.constant 0 : index
    %53 = vector.load %arg8[%c2_74, %c16_75, %c0_76] : memref<10x48x8xf32, #tpu.memory_space<vmem>>, vector<8x16x8xf32>
    %54 = vector.shape_cast %53 : vector<8x16x8xf32> to vector<128x8xf32>
    %c2_77 = arith.constant 2 : index
    %c1_78 = arith.constant 1 : index
    %c0_79 = arith.constant 0 : index
    %c0_80 = arith.constant 0 : index
    %55 = vector.load %arg3[%c2_77, %c1_78, %c0_79, %c0_80] : memref<3x3x8x8xf32, #tpu.memory_space<vmem>>, vector<1x1x8x8xf32>
    %56 = vector.shape_cast %55 : vector<1x1x8x8xf32> to vector<8x8xf32>
    %cst_81 = arith.constant dense<0.000000e+00> : vector<128x8xf32>
    %57 = tpu.matmul %54, %56, %cst_81 {dimension_numbers = #tpu.dot_dimension_numbers<[1], [0], [0], [1], [0, 0, 1, 1], [], []>} : vector<128x8xf32>, vector<8x8xf32>, vector<128x8xf32> -> vector<128x8xf32>
    %58 = arith.addf %52, %57 : vector<128x8xf32>
    %c2_82 = arith.constant 2 : index
    %c17_83 = arith.constant 17 : index
    %c0_84 = arith.constant 0 : index
    %59 = vector.load %arg8[%c2_82, %c17_83, %c0_84] : memref<10x48x8xf32, #tpu.memory_space<vmem>>, vector<8x16x8xf32>
    %60 = vector.shape_cast %59 : vector<8x16x8xf32> to vector<128x8xf32>
    %c2_85 = arith.constant 2 : index
    %c2_86 = arith.constant 2 : index
    %c0_87 = arith.constant 0 : index
    %c0_88 = arith.constant 0 : index
    %61 = vector.load %arg3[%c2_85, %c2_86, %c0_87, %c0_88] : memref<3x3x8x8xf32, #tpu.memory_space<vmem>>, vector<1x1x8x8xf32>
    %62 = vector.shape_cast %61 : vector<1x1x8x8xf32> to vector<8x8xf32>
    %cst_89 = arith.constant dense<0.000000e+00> : vector<128x8xf32>
    %63 = tpu.matmul %60, %62, %cst_89 {dimension_numbers = #tpu.dot_dimension_numbers<[1], [0], [0], [1], [0, 0, 1, 1], [], []>} : vector<128x8xf32>, vector<8x8xf32>, vector<128x8xf32> -> vector<128x8xf32>
    %64 = arith.addf %58, %63 : vector<128x8xf32>
    %c0_90 = arith.constant 0 : index
    %c0_91 = arith.constant 0 : index
    %65 = vector.load %arg4[%c0_90, %c0_91] : memref<1x8xf32, #tpu.memory_space<vmem>>, vector<1x8xf32>
    %66 = vector.broadcast %65 : vector<1x8xf32> to vector<128x8xf32>
    %67 = arith.addf %64, %66 : vector<128x8xf32>
    %c0_92 = arith.constant 0 : index
    %c0_93 = arith.constant 0 : index
    %68 = vector.load %arg5[%c0_92, %c0_93] : memref<128x8xf32, #tpu.memory_space<vmem>>, vector<128x8xf32>
    tpu.vector_store %arg5[%c0_92, %c0_93], %67 {strides = array<i32>} : memref<128x8xf32, #tpu.memory_space<vmem>>, vector<128x8xf32>,
    %cst_94 = arith.constant dense<0.000000e+00> : vector<8xf32>
    %69 = vector.multi_reduction <add>, %67, %cst_94 [0] : vector<128x8xf32> to vector<8xf32>
    %70 = vector.shape_cast %69 : vector<8xf32> to vector<1x1x8xf32>
    %c0_95 = arith.constant 0 : index
    %c0_96 = arith.constant 0 : index
    %c0_97 = arith.constant 0 : index
    %71 = vector.load %arg6[%c0_95, %c0_96, %c0_97] : memref<1x1x8xf32, #tpu.memory_space<vmem>>, vector<1x1x8xf32>
    tpu.vector_store %arg6[%c0_95, %c0_96, %c0_97], %70 {strides = array<i32>} : memref<1x1x8xf32, #tpu.memory_space<vmem>>, vector<1x1x8xf32>,
    %72 = arith.mulf %67, %67 : vector<128x8xf32>
    %cst_98 = arith.constant dense<0.000000e+00> : vector<8xf32>
    %73 = vector.multi_reduction <add>, %72, %cst_98 [0] : vector<128x8xf32> to vector<8xf32>
    %74 = vector.shape_cast %73 : vector<8xf32> to vector<1x1x8xf32>
    %c0_99 = arith.constant 0 : index
    %c0_100 = arith.constant 0 : index
    %c0_101 = arith.constant 0 : index
    %75 = vector.load %arg7[%c0_99, %c0_100, %c0_101] : memref<1x1x8xf32, #tpu.memory_space<vmem>>, vector<1x1x8xf32>
    tpu.vector_store %arg7[%c0_99, %c0_100, %c0_101], %74 {strides = array<i32>} : memref<1x1x8xf32, #tpu.memory_space<vmem>>, vector<1x1x8xf32>,
    return
  }
  func.func @transform_0(%arg0: i32) -> (i32, i32, i32) {
    %c0_i32 = arith.constant 0 : i32
    %c0_i32_0 = arith.constant 0 : i32
    %c0_i32_1 = arith.constant 0 : i32
    return %arg0, %c0_i32, %c0_i32_0 : i32, i32, i32
  }
  func.func @transform_1(%arg0: i32) -> (i32, i32, i32) {
    %c0_i32 = arith.constant 0 : i32
    %c0_i32_0 = arith.constant 0 : i32
    %c0_i32_1 = arith.constant 0 : i32
    return %arg0, %c0_i32, %c0_i32_0 : i32, i32, i32
  }
  func.func @transform_2(%arg0: i32) -> (i32, i32, i32, i32) {
    %c0_i32 = arith.constant 0 : i32
    %c0_i32_0 = arith.constant 0 : i32
    %c0_i32_1 = arith.constant 0 : i32
    %c0_i32_2 = arith.constant 0 : i32
    %c0_i32_3 = arith.constant 0 : i32
    return %c0_i32, %c0_i32_0, %c0_i32_1, %c0_i32_2 : i32, i32, i32, i32
  }
  func.func @transform_3(%arg0: i32) -> (i32, i32) {
    %c0_i32 = arith.constant 0 : i32
    %c0_i32_0 = arith.constant 0 : i32
    %c0_i32_1 = arith.constant 0 : i32
    return %c0_i32, %c0_i32_0 : i32, i32
  }
  func.func @transform_4(%arg0: i32) -> (i32, i32) {
    %c0_i32 = arith.constant 0 : i32
    %c0_i32_0 = arith.constant 0 : i32
    return %arg0, %c0_i32 : i32, i32
  }
  func.func @transform_5(%arg0: i32) -> (i32, i32, i32) {
    %c0_i32 = arith.constant 0 : i32
    %c0_i32_0 = arith.constant 0 : i32
    %c0_i32_1 = arith.constant 0 : i32
    return %arg0, %c0_i32, %c0_i32_0 : i32, i32, i32
  }
  func.func @transform_6(%arg0: i32) -> (i32, i32, i32) {
    %c0_i32 = arith.constant 0 : i32
    %c0_i32_0 = arith.constant 0 : i32
    %c0_i32_1 = arith.constant 0 : i32
    return %arg0, %c0_i32, %c0_i32_0 : i32, i32, i32
  }
}

module attributes {stable_mosaic.version = 11 : i64} {
  func.func @_bn_relu_kernel(%arg0: i32, %arg1: memref<512x8xf32, #tpu.memory_space<vmem>>, %arg2: memref<1x8xf32, #tpu.memory_space<vmem>>, %arg3: memref<1x8xf32, #tpu.memory_space<vmem>>, %arg4: memref<512x8xf32, #tpu.memory_space<vmem>>) attributes {dimension_semantics = [#tpu.dimension_semantics<parallel>], iteration_bounds = array<i64: 1>, scalar_prefetch = 0 : i64, scratch_operands = 0 : i64, tpu.core_type = #tpu.core_type<tc>, window_params = [{transform_indices = @transform_0, window_bounds = array<i64: 512, 8>}, {pipeline_mode = #tpu.pipeline_mode<synchronous>, transform_indices = @transform_1, window_bounds = array<i64: 1, 8>}, {pipeline_mode = #tpu.pipeline_mode<synchronous>, transform_indices = @transform_2, window_bounds = array<i64: 1, 8>}, {transform_indices = @transform_3, window_bounds = array<i64: 512, 8>}]} {
    %c0 = arith.constant 0 : index
    %c0_0 = arith.constant 0 : index
    %0 = vector.load %arg1[%c0, %c0_0] : memref<512x8xf32, #tpu.memory_space<vmem>>, vector<512x8xf32>
    %c0_1 = arith.constant 0 : index
    %c0_2 = arith.constant 0 : index
    %1 = vector.load %arg2[%c0_1, %c0_2] : memref<1x8xf32, #tpu.memory_space<vmem>>, vector<1x8xf32>
    %2 = vector.broadcast %1 : vector<1x8xf32> to vector<512x8xf32>
    %3 = arith.mulf %0, %2 : vector<512x8xf32>
    %c0_3 = arith.constant 0 : index
    %c0_4 = arith.constant 0 : index
    %4 = vector.load %arg3[%c0_3, %c0_4] : memref<1x8xf32, #tpu.memory_space<vmem>>, vector<1x8xf32>
    %5 = vector.broadcast %4 : vector<1x8xf32> to vector<512x8xf32>
    %6 = arith.addf %3, %5 : vector<512x8xf32>
    %cst = arith.constant 0.000000e+00 : f32
    %7 = vector.broadcast %cst : f32 to vector<512x8xf32>
    %8 = arith.maximumf %6, %7 : vector<512x8xf32>
    %c0_5 = arith.constant 0 : index
    %c0_6 = arith.constant 0 : index
    %9 = vector.load %arg4[%c0_5, %c0_6] : memref<512x8xf32, #tpu.memory_space<vmem>>, vector<512x8xf32>
    tpu.vector_store %arg4[%c0_5, %c0_6], %8 {strides = array<i32>} : memref<512x8xf32, #tpu.memory_space<vmem>>, vector<512x8xf32>,
    return
  }
  func.func @transform_0(%arg0: i32) -> (i32, i32) {
    %c0_i32 = arith.constant 0 : i32
    %c0_i32_0 = arith.constant 0 : i32
    return %arg0, %c0_i32 : i32, i32
  }
  func.func @transform_1(%arg0: i32) -> (i32, i32) {
    %c0_i32 = arith.constant 0 : i32
    %c0_i32_0 = arith.constant 0 : i32
    %c0_i32_1 = arith.constant 0 : i32
    return %c0_i32, %c0_i32_0 : i32, i32
  }
  func.func @transform_2(%arg0: i32) -> (i32, i32) {
    %c0_i32 = arith.constant 0 : i32
    %c0_i32_0 = arith.constant 0 : i32
    %c0_i32_1 = arith.constant 0 : i32
    return %c0_i32, %c0_i32_0 : i32, i32
  }
  func.func @transform_3(%arg0: i32) -> (i32, i32) {
    %c0_i32 = arith.constant 0 : i32
    %c0_i32_0 = arith.constant 0 : i32
    return %arg0, %c0_i32 : i32, i32
  }
}

</mosaic_0001>

<llo_original>
// kernel: recurrent_block_forward.7
$region0: #{recurrent_block_forward.7}
  #allocation0 [shape = 'u32[]', space=smem, size = 0x4, offset = 0x4, fixed_abs, tag = 'smem constant byte address 0x4 - core index']
  #allocation1 [shape = 'u32[144,128]{1,0:T(1,128)}', space=vmem, size = 0x12000, scoped, tag = 'internal scratch']
  %s0 = inlined_call_operand.vmem [shape: f32[512,8], index: 0, kind: input, shape index: {}]
  %s1 = inlined_call_operand.vmem [shape: f32[512,8], index: 1, kind: input, shape index: {}]
  %s2 = inlined_call_operand.vmem [shape: f32[1,8], index: 2, kind: input, shape index: {}]
  %s3 = inlined_call_operand.vmem [shape: f32[1,8], index: 3, kind: input, shape index: {}]
  %s4 = inlined_call_operand.vmem [shape: f32[512,8], index: 4, kind: output, shape index: {}]
  %s5 = sld [smem:[#allocation0]]
  $region26: #{recurrent_block_forward.7} parent=0
    _
  %s7 = ssub.s32 1, %s5
  %s8 = scalar_select 0, %s7, %s5
  // Predicated region
  $region2: #{recurrent_block_forward.7} parent=0 // pred_check
    _
  $region3: #{recurrent_block_forward.7} parent=0 // pred_check_branch
    %10 = sbr.rel (0) target = $region5
  $region4: #{recurrent_block_forward.7} parent=0 // pred_region
    _
  $region5: #{recurrent_block_forward.7} parent=0 // pred_fallthru
    _
  // Predicated region
  $region6: #{recurrent_block_forward.7} parent=0 // pred_check
    _
  $region7: #{recurrent_block_forward.7} parent=0 // pred_check_branch
    %12 = sbr.rel (0) target = $region9
  $region8: #{recurrent_block_forward.7} parent=0 // pred_region
    _
  $region9: #{recurrent_block_forward.7} parent=0 // pred_fallthru
    _
  // Predicated region
  $region10: #{recurrent_block_forward.7} parent=0 // pred_check
    _
  $region11: #{recurrent_block_forward.7} parent=0 // pred_check_branch
    %14 = sbr.rel (0) target = $region13
  $region12: #{recurrent_block_forward.7} parent=0 // pred_region
    _
  $region13: #{recurrent_block_forward.7} parent=0 // pred_fallthru
    _
  // Predicated region
  $region14: #{recurrent_block_forward.7} parent=0 // pred_check
    _
  $region15: #{recurrent_block_forward.7} parent=0 // pred_check_branch
    %16 = sbr.rel (0) target = $region17
  $region16: #{recurrent_block_forward.7} parent=0 // pred_region
    _
  $region17: #{recurrent_block_forward.7} parent=0 // pred_fallthru
    _
  %v17 = vld [vmem:[%s0] sm:$0xff]
  %v18 = vld [vmem:[%s0 + $0x8] sm:$0xff]
  %v19 = vld [vmem:[%s0 + $0x10] sm:$0xff]
  %v20 = vld [vmem:[%s0 + $0x18] sm:$0xff]
  %v21 = vld [vmem:[%s0 + $0x20] sm:$0xff]
  %v22 = vld [vmem:[%s0 + $0x28] sm:$0xff]
  %v23 = vld [vmem:[%s0 + $0x30] sm:$0xff]
  %v24 = vld [vmem:[%s0 + $0x38] sm:$0xff]
  %v25 = vld [vmem:[%s0 + $0x40] sm:$0xff]
  %v26 = vld [vmem:[%s0 + $0x48] sm:$0xff]
  %v27 = vld [vmem:[%s0 + $0x50] sm:$0xff]
  %v28 = vld [vmem:[%s0 + $0x58] sm:$0xff]
  %v29 = vld [vmem:[%s0 + $0x60] sm:$0xff]
  %v30 = vld [vmem:[%s0 + $0x68] sm:$0xff]
  %v31 = vld [vmem:[%s0 + $0x70] sm:$0xff]
  %v32 = vld [vmem:[%s0 + $0x78] sm:$0xff]
  %v33 = vld [vmem:[%s0 + $0x80] sm:$0xff]
  %v34 = vld [vmem:[%s0 + $0x88] sm:$0xff]
  %v35 = vld [vmem:[%s0 + $0x90] sm:$0xff]
  %v36 = vld [vmem:[%s0 + $0x98] sm:$0xff]
  %v37 = vld [vmem:[%s0 + $0xa0] sm:$0xff]
  %v38 = vld [vmem:[%s0 + $0xa8] sm:$0xff]
  %v39 = vld [vmem:[%s0 + $0xb0] sm:$0xff]
  %v40 = vld [vmem:[%s0 + $0xb8] sm:$0xff]
  %v41 = vld [vmem:[%s0 + $0xc0] sm:$0xff]
  %v42 = vld [vmem:[%s0 + $0xc8] sm:$0xff]
  %v43 = vld [vmem:[%s0 + $0xd0] sm:$0xff]
  %v44 = vld [vmem:[%s0 + $0xd8] sm:$0xff]
  %v45 = vld [vmem:[%s0 + $0xe0] sm:$0xff]
  %v46 = vld [vmem:[%s0 + $0xe8] sm:$0xff]
  %v47 = vld [vmem:[%s0 + $0xf0] sm:$0xff]
  %v48 = vld [vmem:[%s0 + $0xf8] sm:$0xff]
  %v49 = vld [vmem:[%s0 + $0x100] sm:$0xff]
  %v50 = vld [vmem:[%s0 + $0x108] sm:$0xff]
  %v51 = vld [vmem:[%s0 + $0x110] sm:$0xff]
  %v52 = vld [vmem:[%s0 + $0x118] sm:$0xff]
  %v53 = vld [vmem:[%s0 + $0x120] sm:$0xff]
  %v54 = vld [vmem:[%s0 + $0x128] sm:$0xff]
  %v55 = vld [vmem:[%s0 + $0x130] sm:$0xff]
  %v56 = vld [vmem:[%s0 + $0x138] sm:$0xff]
  %v57 = vld [vmem:[%s0 + $0x140] sm:$0xff]
  %v58 = vld [vmem:[%s0 + $0x148] sm:$0xff]
  %v59 = vld [vmem:[%s0 + $0x150] sm:$0xff]
  %v60 = vld [vmem:[%s0 + $0x158] sm:$0xff]
  %v61 = vld [vmem:[%s0 + $0x160] sm:$0xff]
  %v62 = vld [vmem:[%s0 + $0x168] sm:$0xff]
  %v63 = vld [vmem:[%s0 + $0x170] sm:$0xff]
  %v64 = vld [vmem:[%s0 + $0x178] sm:$0xff]
  %v65 = vld [vmem:[%s0 + $0x180] sm:$0xff]
  %v66 = vld [vmem:[%s0 + $0x188] sm:$0xff]
  %v67 = vld [vmem:[%s0 + $0x190] sm:$0xff]
  %v68 = vld [vmem:[%s0 + $0x198] sm:$0xff]
  %v69 = vld [vmem:[%s0 + $0x1a0] sm:$0xff]
  %v70 = vld [vmem:[%s0 + $0x1a8] sm:$0xff]
  %v71 = vld [vmem:[%s0 + $0x1b0] sm:$0xff]
  %v72 = vld [vmem:[%s0 + $0x1b8] sm:$0xff]
  %v73 = vld [vmem:[%s0 + $0x1c0] sm:$0xff]
  %v74 = vld [vmem:[%s0 + $0x1c8] sm:$0xff]
  %v75 = vld [vmem:[%s0 + $0x1d0] sm:$0xff]
  %v76 = vld [vmem:[%s0 + $0x1d8] sm:$0xff]
  %v77 = vld [vmem:[%s0 + $0x1e0] sm:$0xff]
  %v78 = vld [vmem:[%s0 + $0x1e8] sm:$0xff]
  %v79 = vld [vmem:[%s0 + $0x1f0] sm:$0xff]
  %v80 = vld [vmem:[%s0 + $0x1f8] sm:$0xff]
  %v81 = vld [vmem:[%s2] sm:$0x1]
  %v83 = vlaneseq
  %v84 = vshrl.u32 %v83, 7
  %v85 = vsub.s32 0, %v84
  %v86 = vrot.slane %v81, %v85
  %v88 = vmul.f32 %v17, %v86
  %v89 = vmul.f32 %v18, %v86
  %v90 = vmul.f32 %v19, %v86
  %v91 = vmul.f32 %v20, %v86
  %v92 = vmul.f32 %v21, %v86
  %v93 = vmul.f32 %v22, %v86
  %v94 = vmul.f32 %v23, %v86
  %v95 = vmul.f32 %v24, %v86
  %v96 = vmul.f32 %v25, %v86
  %v97 = vmul.f32 %v26, %v86
  %v98 = vmul.f32 %v27, %v86
  %v99 = vmul.f32 %v28, %v86
  %v100 = vmul.f32 %v29, %v86
  %v101 = vmul.f32 %v30, %v86
  %v102 = vmul.f32 %v31, %v86
  %v103 = vmul.f32 %v32, %v86
  %v104 = vmul.f32 %v33, %v86
  %v105 = vmul.f32 %v34, %v86
  %v106 = vmul.f32 %v35, %v86
  %v107 = vmul.f32 %v36, %v86
  %v108 = vmul.f32 %v37, %v86
  %v109 = vmul.f32 %v38, %v86
  %v110 = vmul.f32 %v39, %v86
  %v111 = vmul.f32 %v40, %v86
  %v112 = vmul.f32 %v41, %v86
  %v113 = vmul.f32 %v42, %v86
  %v114 = vmul.f32 %v43, %v86
  %v115 = vmul.f32 %v44, %v86
  %v116 = vmul.f32 %v45, %v86
  %v117 = vmul.f32 %v46, %v86
  %v118 = vmul.f32 %v47, %v86
  %v119 = vmul.f32 %v48, %v86
  %v120 = vmul.f32 %v49, %v86
  %v121 = vmul.f32 %v50, %v86
  %v122 = vmul.f32 %v51, %v86
  %v123 = vmul.f32 %v52, %v86
  %v124 = vmul.f32 %v53, %v86
  %v125 = vmul.f32 %v54, %v86
  %v126 = vmul.f32 %v55, %v86
  %v127 = vmul.f32 %v56, %v86
  %v128 = vmul.f32 %v57, %v86
  %v129 = vmul.f32 %v58, %v86
  %v130 = vmul.f32 %v59, %v86
  %v131 = vmul.f32 %v60, %v86
  %v132 = vmul.f32 %v61, %v86
  %v133 = vmul.f32 %v62, %v86
  %v134 = vmul.f32 %v63, %v86
  %v135 = vmul.f32 %v64, %v86
  %v136 = vmul.f32 %v65, %v86
  %v137 = vmul.f32 %v66, %v86
  %v138 = vmul.f32 %v67, %v86
  %v139 = vmul.f32 %v68, %v86
  %v140 = vmul.f32 %v69, %v86
  %v141 = vmul.f32 %v70, %v86
  %v142 = vmul.f32 %v71, %v86
  %v143 = vmul.f32 %v72, %v86
  %v144 = vmul.f32 %v73, %v86
  %v145 = vmul.f32 %v74, %v86
  %v146 = vmul.f32 %v75, %v86
  %v147 = vmul.f32 %v76, %v86
  %v148 = vmul.f32 %v77, %v86
  %v149 = vmul.f32 %v78, %v86
  %v150 = vmul.f32 %v79, %v86
  %v151 = vmul.f32 %v80, %v86
  %v152 = vld [vmem:[%s3] sm:$0x1]
  %v154 = vlaneseq
  %v155 = vshrl.u32 %v154, 7
  %v156 = vsub.s32 0, %v155
  %v157 = vrot.slane %v152, %v156
  %v159 = vadd.f32 %v88, %v157
  %v160 = vadd.f32 %v89, %v157
  %v161 = vadd.f32 %v90, %v157
  %v162 = vadd.f32 %v91, %v157
  %v163 = vadd.f32 %v92, %v157
  %v164 = vadd.f32 %v93, %v157
  %v165 = vadd.f32 %v94, %v157
  %v166 = vadd.f32 %v95, %v157
  %v167 = vadd.f32 %v96, %v157
  %v168 = vadd.f32 %v97, %v157
  %v169 = vadd.f32 %v98, %v157
  %v170 = vadd.f32 %v99, %v157
  %v171 = vadd.f32 %v100, %v157
  %v172 = vadd.f32 %v101, %v157
  %v173 = vadd.f32 %v102, %v157
  %v174 = vadd.f32 %v103, %v157
  %v175 = vadd.f32 %v104, %v157
  %v176 = vadd.f32 %v105, %v157
  %v177 = vadd.f32 %v106, %v157
  %v178 = vadd.f32 %v107, %v157
  %v179 = vadd.f32 %v108, %v157
  %v180 = vadd.f32 %v109, %v157
  %v181 = vadd.f32 %v110, %v157
  %v182 = vadd.f32 %v111, %v157
  %v183 = vadd.f32 %v112, %v157
  %v184 = vadd.f32 %v113, %v157
  %v185 = vadd.f32 %v114, %v157
  %v186 = vadd.f32 %v115, %v157
  %v187 = vadd.f32 %v116, %v157
  %v188 = vadd.f32 %v117, %v157
  %v189 = vadd.f32 %v118, %v157
  %v190 = vadd.f32 %v119, %v157
  %v191 = vadd.f32 %v120, %v157
  %v192 = vadd.f32 %v121, %v157
  %v193 = vadd.f32 %v122, %v157
  %v194 = vadd.f32 %v123, %v157
  %v195 = vadd.f32 %v124, %v157
  %v196 = vadd.f32 %v125, %v157
  %v197 = vadd.f32 %v126, %v157
  %v198 = vadd.f32 %v127, %v157
  %v199 = vadd.f32 %v128, %v157
  %v200 = vadd.f32 %v129, %v157
  %v201 = vadd.f32 %v130, %v157
  %v202 = vadd.f32 %v131, %v157
  %v203 = vadd.f32 %v132, %v157
  %v204 = vadd.f32 %v133, %v157
  %v205 = vadd.f32 %v134, %v157
  %v206 = vadd.f32 %v135, %v157
  %v207 = vadd.f32 %v136, %v157
  %v208 = vadd.f32 %v137, %v157
  %v209 = vadd.f32 %v138, %v157
  %v210 = vadd.f32 %v139, %v157
  %v211 = vadd.f32 %v140, %v157
  %v212 = vadd.f32 %v141, %v157
  %v213 = vadd.f32 %v142, %v157
  %v214 = vadd.f32 %v143, %v157
  %v215 = vadd.f32 %v144, %v157
  %v216 = vadd.f32 %v145, %v157
  %v217 = vadd.f32 %v146, %v157
  %v218 = vadd.f32 %v147, %v157
  %v219 = vadd.f32 %v148, %v157
  %v220 = vadd.f32 %v149, %v157
  %v221 = vadd.f32 %v150, %v157
  %v222 = vadd.f32 %v151, %v157
  %v223 = vmax.f32 %v159, 0.0
  %v224 = vmax.f32 %v160, 0.0
  %v225 = vmax.f32 %v161, 0.0
  %v226 = vmax.f32 %v162, 0.0
  %v227 = vmax.f32 %v163, 0.0
  %v228 = vmax.f32 %v164, 0.0
  %v229 = vmax.f32 %v165, 0.0
  %v230 = vmax.f32 %v166, 0.0
  %v231 = vmax.f32 %v167, 0.0
  %v232 = vmax.f32 %v168, 0.0
  %v233 = vmax.f32 %v169, 0.0
  %v234 = vmax.f32 %v170, 0.0
  %v235 = vmax.f32 %v171, 0.0
  %v236 = vmax.f32 %v172, 0.0
  %v237 = vmax.f32 %v173, 0.0
  %v238 = vmax.f32 %v174, 0.0
  %v239 = vmax.f32 %v175, 0.0
  %v240 = vmax.f32 %v176, 0.0
  %v241 = vmax.f32 %v177, 0.0
  %v242 = vmax.f32 %v178, 0.0
  %v243 = vmax.f32 %v179, 0.0
  %v244 = vmax.f32 %v180, 0.0
  %v245 = vmax.f32 %v181, 0.0
  %v246 = vmax.f32 %v182, 0.0
  %v247 = vmax.f32 %v183, 0.0
  %v248 = vmax.f32 %v184, 0.0
  %v249 = vmax.f32 %v185, 0.0
  %v250 = vmax.f32 %v186, 0.0
  %v251 = vmax.f32 %v187, 0.0
  %v252 = vmax.f32 %v188, 0.0
  %v253 = vmax.f32 %v189, 0.0
  %v254 = vmax.f32 %v190, 0.0
  %v255 = vmax.f32 %v191, 0.0
  %v256 = vmax.f32 %v192, 0.0
  %v257 = vmax.f32 %v193, 0.0
  %v258 = vmax.f32 %v194, 0.0
  %v259 = vmax.f32 %v195, 0.0
  %v260 = vmax.f32 %v196, 0.0
  %v261 = vmax.f32 %v197, 0.0
  %v262 = vmax.f32 %v198, 0.0
  %v263 = vmax.f32 %v199, 0.0
  %v264 = vmax.f32 %v200, 0.0
  %v265 = vmax.f32 %v201, 0.0
  %v266 = vmax.f32 %v202, 0.0
  %v267 = vmax.f32 %v203, 0.0
  %v268 = vmax.f32 %v204, 0.0
  %v269 = vmax.f32 %v205, 0.0
  %v270 = vmax.f32 %v206, 0.0
  %v271 = vmax.f32 %v207, 0.0
  %v272 = vmax.f32 %v208, 0.0
  %v273 = vmax.f32 %v209, 0.0
  %v274 = vmax.f32 %v210, 0.0
  %v275 = vmax.f32 %v211, 0.0
  %v276 = vmax.f32 %v212, 0.0
  %v277 = vmax.f32 %v213, 0.0
  %v278 = vmax.f32 %v214, 0.0
  %v279 = vmax.f32 %v215, 0.0
  %v280 = vmax.f32 %v216, 0.0
  %v281 = vmax.f32 %v217, 0.0
  %v282 = vmax.f32 %v218, 0.0
  %v283 = vmax.f32 %v219, 0.0
  %v284 = vmax.f32 %v220, 0.0
  %v285 = vmax.f32 %v221, 0.0
  %v286 = vmax.f32 %v222, 0.0
  %v287 = vld [vmem:[%s1] sm:$0xff]
  %v288 = vld [vmem:[%s1 + $0x8] sm:$0xff]
  %v289 = vld [vmem:[%s1 + $0x10] sm:$0xff]
  %v290 = vld [vmem:[%s1 + $0x18] sm:$0xff]
  %v291 = vld [vmem:[%s1 + $0x20] sm:$0xff]
  %v292 = vld [vmem:[%s1 + $0x28] sm:$0xff]
  %v293 = vld [vmem:[%s1 + $0x30] sm:$0xff]
  %v294 = vld [vmem:[%s1 + $0x38] sm:$0xff]
  %v295 = vld [vmem:[%s1 + $0x40] sm:$0xff]
  %v296 = vld [vmem:[%s1 + $0x48] sm:$0xff]
  %v297 = vld [vmem:[%s1 + $0x50] sm:$0xff]
  %v298 = vld [vmem:[%s1 + $0x58] sm:$0xff]
  %v299 = vld [vmem:[%s1 + $0x60] sm:$0xff]
  %v300 = vld [vmem:[%s1 + $0x68] sm:$0xff]
  %v301 = vld [vmem:[%s1 + $0x70] sm:$0xff]
  %v302 = vld [vmem:[%s1 + $0x78] sm:$0xff]
  %v303 = vld [vmem:[%s1 + $0x80] sm:$0xff]
  %v304 = vld [vmem:[%s1 + $0x88] sm:$0xff]
  %v305 = vld [vmem:[%s1 + $0x90] sm:$0xff]
  %v306 = vld [vmem:[%s1 + $0x98] sm:$0xff]
  %v307 = vld [vmem:[%s1 + $0xa0] sm:$0xff]
  %v308 = vld [vmem:[%s1 + $0xa8] sm:$0xff]
  %v309 = vld [vmem:[%s1 + $0xb0] sm:$0xff]
  %v310 = vld [vmem:[%s1 + $0xb8] sm:$0xff]
  %v311 = vld [vmem:[%s1 + $0xc0] sm:$0xff]
  %v312 = vld [vmem:[%s1 + $0xc8] sm:$0xff]
  %v313 = vld [vmem:[%s1 + $0xd0] sm:$0xff]
  %v314 = vld [vmem:[%s1 + $0xd8] sm:$0xff]
  %v315 = vld [vmem:[%s1 + $0xe0] sm:$0xff]
  %v316 = vld [vmem:[%s1 + $0xe8] sm:$0xff]
  %v317 = vld [vmem:[%s1 + $0xf0] sm:$0xff]
  %v318 = vld [vmem:[%s1 + $0xf8] sm:$0xff]
  %v319 = vld [vmem:[%s1 + $0x100] sm:$0xff]
  %v320 = vld [vmem:[%s1 + $0x108] sm:$0xff]
  %v321 = vld [vmem:[%s1 + $0x110] sm:$0xff]
  %v322 = vld [vmem:[%s1 + $0x118] sm:$0xff]
  %v323 = vld [vmem:[%s1 + $0x120] sm:$0xff]
  %v324 = vld [vmem:[%s1 + $0x128] sm:$0xff]
  %v325 = vld [vmem:[%s1 + $0x130] sm:$0xff]
  %v326 = vld [vmem:[%s1 + $0x138] sm:$0xff]
  %v327 = vld [vmem:[%s1 + $0x140] sm:$0xff]
  %v328 = vld [vmem:[%s1 + $0x148] sm:$0xff]
  %v329 = vld [vmem:[%s1 + $0x150] sm:$0xff]
  %v330 = vld [vmem:[%s1 + $0x158] sm:$0xff]
  %v331 = vld [vmem:[%s1 + $0x160] sm:$0xff]
  %v332 = vld [vmem:[%s1 + $0x168] sm:$0xff]
  %v333 = vld [vmem:[%s1 + $0x170] sm:$0xff]
  %v334 = vld [vmem:[%s1 + $0x178] sm:$0xff]
  %v335 = vld [vmem:[%s1 + $0x180] sm:$0xff]
  %v336 = vld [vmem:[%s1 + $0x188] sm:$0xff]
  %v337 = vld [vmem:[%s1 + $0x190] sm:$0xff]
  %v338 = vld [vmem:[%s1 + $0x198] sm:$0xff]
  %v339 = vld [vmem:[%s1 + $0x1a0] sm:$0xff]
  %v340 = vld [vmem:[%s1 + $0x1a8] sm:$0xff]
  %v341 = vld [vmem:[%s1 + $0x1b0] sm:$0xff]
  %v342 = vld [vmem:[%s1 + $0x1b8] sm:$0xff]
  %v343 = vld [vmem:[%s1 + $0x1c0] sm:$0xff]
  %v344 = vld [vmem:[%s1 + $0x1c8] sm:$0xff]
  %v345 = vld [vmem:[%s1 + $0x1d0] sm:$0xff]
  %v346 = vld [vmem:[%s1 + $0x1d8] sm:$0xff]
  %v347 = vld [vmem:[%s1 + $0x1e0] sm:$0xff]
  %v348 = vld [vmem:[%s1 + $0x1e8] sm:$0xff]
  %v349 = vld [vmem:[%s1 + $0x1f0] sm:$0xff]
  %v350 = vld [vmem:[%s1 + $0x1f8] sm:$0xff]
  %v351 = vadd.f32 %v287, %v223
  %v352 = vadd.f32 %v288, %v224
  %v353 = vadd.f32 %v289, %v225
  %v354 = vadd.f32 %v290, %v226
  %v355 = vadd.f32 %v291, %v227
  %v356 = vadd.f32 %v292, %v228
  %v357 = vadd.f32 %v293, %v229
  %v358 = vadd.f32 %v294, %v230
  %v359 = vadd.f32 %v295, %v231
  %v360 = vadd.f32 %v296, %v232
  %v361 = vadd.f32 %v297, %v233
  %v362 = vadd.f32 %v298, %v234
  %v363 = vadd.f32 %v299, %v235
  %v364 = vadd.f32 %v300, %v236
  %v365 = vadd.f32 %v301, %v237
  %v366 = vadd.f32 %v302, %v238
  %v367 = vadd.f32 %v303, %v239
  %v368 = vadd.f32 %v304, %v240
  %v369 = vadd.f32 %v305, %v241
  %v370 = vadd.f32 %v306, %v242
  %v371 = vadd.f32 %v307, %v243
  %v372 = vadd.f32 %v308, %v244
  %v373 = vadd.f32 %v309, %v245
  %v374 = vadd.f32 %v310, %v246
  %v375 = vadd.f32 %v311, %v247
  %v376 = vadd.f32 %v312, %v248
  %v377 = vadd.f32 %v313, %v249
  %v378 = vadd.f32 %v314, %v250
  %v379 = vadd.f32 %v315, %v251
  %v380 = vadd.f32 %v316, %v252
  %v381 = vadd.f32 %v317, %v253
  %v382 = vadd.f32 %v318, %v254
  %v383 = vadd.f32 %v319, %v255
  %v384 = vadd.f32 %v320, %v256
  %v385 = vadd.f32 %v321, %v257
  %v386 = vadd.f32 %v322, %v258
  %v387 = vadd.f32 %v323, %v259
  %v388 = vadd.f32 %v324, %v260
  %v389 = vadd.f32 %v325, %v261
  %v390 = vadd.f32 %v326, %v262
  %v391 = vadd.f32 %v327, %v263
  %v392 = vadd.f32 %v328, %v264
  %v393 = vadd.f32 %v329, %v265
  %v394 = vadd.f32 %v330, %v266
  %v395 = vadd.f32 %v331, %v267
  %v396 = vadd.f32 %v332, %v268
  %v397 = vadd.f32 %v333, %v269
  %v398 = vadd.f32 %v334, %v270
  %v399 = vadd.f32 %v335, %v271
  %v400 = vadd.f32 %v336, %v272
  %v401 = vadd.f32 %v337, %v273
  %v402 = vadd.f32 %v338, %v274
  %v403 = vadd.f32 %v339, %v275
  %v404 = vadd.f32 %v340, %v276
  %v405 = vadd.f32 %v341, %v277
  %v406 = vadd.f32 %v342, %v278
  %v407 = vadd.f32 %v343, %v279
  %v408 = vadd.f32 %v344, %v280
  %v409 = vadd.f32 %v345, %v281
  %v410 = vadd.f32 %v346, %v282
  %v411 = vadd.f32 %v347, %v283
  %v412 = vadd.f32 %v348, %v284
  %v413 = vadd.f32 %v349, %v285
  %v414 = vadd.f32 %v350, %v286
  %vm415 = vcmask 64512
  %416 = vst.msk [vmem:[%s4] sm:$0xff] %vm415, %v351
  %417 = vst.msk [vmem:[%s4 + $0x8] sm:$0xff] %vm415, %v352
  %418 = vst.msk [vmem:[%s4 + $0x10] sm:$0xff] %vm415, %v353
  %419 = vst.msk [vmem:[%s4 + $0x18] sm:$0xff] %vm415, %v354
  %420 = vst.msk [vmem:[%s4 + $0x20] sm:$0xff] %vm415, %v355
  %421 = vst.msk [vmem:[%s4 + $0x28] sm:$0xff] %vm415, %v356
  %422 = vst.msk [vmem:[%s4 + $0x30] sm:$0xff] %vm415, %v357
  %423 = vst.msk [vmem:[%s4 + $0x38] sm:$0xff] %vm415, %v358
  %424 = vst.msk [vmem:[%s4 + $0x40] sm:$0xff] %vm415, %v359
  %425 = vst.msk [vmem:[%s4 + $0x48] sm:$0xff] %vm415, %v360
  %426 = vst.msk [vmem:[%s4 + $0x50] sm:$0xff] %vm415, %v361
  %427 = vst.msk [vmem:[%s4 + $0x58] sm:$0xff] %vm415, %v362
  %428 = vst.msk [vmem:[%s4 + $0x60] sm:$0xff] %vm415, %v363
  %429 = vst.msk [vmem:[%s4 + $0x68] sm:$0xff] %vm415, %v364
  %430 = vst.msk [vmem:[%s4 + $0x70] sm:$0xff] %vm415, %v365
  %431 = vst.msk [vmem:[%s4 + $0x78] sm:$0xff] %vm415, %v366
  %432 = vst.msk [vmem:[%s4 + $0x80] sm:$0xff] %vm415, %v367
  %433 = vst.msk [vmem:[%s4 + $0x88] sm:$0xff] %vm415, %v368
  %434 = vst.msk [vmem:[%s4 + $0x90] sm:$0xff] %vm415, %v369
  %435 = vst.msk [vmem:[%s4 + $0x98] sm:$0xff] %vm415, %v370
  %436 = vst.msk [vmem:[%s4 + $0xa0] sm:$0xff] %vm415, %v371
  %437 = vst.msk [vmem:[%s4 + $0xa8] sm:$0xff] %vm415, %v372
  %438 = vst.msk [vmem:[%s4 + $0xb0] sm:$0xff] %vm415, %v373
  %439 = vst.msk [vmem:[%s4 + $0xb8] sm:$0xff] %vm415, %v374
  %440 = vst.msk [vmem:[%s4 + $0xc0] sm:$0xff] %vm415, %v375
  %441 = vst.msk [vmem:[%s4 + $0xc8] sm:$0xff] %vm415, %v376
  %442 = vst.msk [vmem:[%s4 + $0xd0] sm:$0xff] %vm415, %v377
  %443 = vst.msk [vmem:[%s4 + $0xd8] sm:$0xff] %vm415, %v378
  %444 = vst.msk [vmem:[%s4 + $0xe0] sm:$0xff] %vm415, %v379
  %445 = vst.msk [vmem:[%s4 + $0xe8] sm:$0xff] %vm415, %v380
  %446 = vst.msk [vmem:[%s4 + $0xf0] sm:$0xff] %vm415, %v381
  %447 = vst.msk [vmem:[%s4 + $0xf8] sm:$0xff] %vm415, %v382
  %448 = vst.msk [vmem:[%s4 + $0x100] sm:$0xff] %vm415, %v383
  %449 = vst.msk [vmem:[%s4 + $0x108] sm:$0xff] %vm415, %v384
  %450 = vst.msk [vmem:[%s4 + $0x110] sm:$0xff] %vm415, %v385
  %451 = vst.msk [vmem:[%s4 + $0x118] sm:$0xff] %vm415, %v386
  %452 = vst.msk [vmem:[%s4 + $0x120] sm:$0xff] %vm415, %v387
  %453 = vst.msk [vmem:[%s4 + $0x128] sm:$0xff] %vm415, %v388
  %454 = vst.msk [vmem:[%s4 + $0x130] sm:$0xff] %vm415, %v389
  %455 = vst.msk [vmem:[%s4 + $0x138] sm:$0xff] %vm415, %v390
  %456 = vst.msk [vmem:[%s4 + $0x140] sm:$0xff] %vm415, %v391
  %457 = vst.msk [vmem:[%s4 + $0x148] sm:$0xff] %vm415, %v392
  %458 = vst.msk [vmem:[%s4 + $0x150] sm:$0xff] %vm415, %v393
  %459 = vst.msk [vmem:[%s4 + $0x158] sm:$0xff] %vm415, %v394
  %460 = vst.msk [vmem:[%s4 + $0x160] sm:$0xff] %vm415, %v395
  %461 = vst.msk [vmem:[%s4 + $0x168] sm:$0xff] %vm415, %v396
  %462 = vst.msk [vmem:[%s4 + $0x170] sm:$0xff] %vm415, %v397
  %463 = vst.msk [vmem:[%s4 + $0x178] sm:$0xff] %vm415, %v398
  %464 = vst.msk [vmem:[%s4 + $0x180] sm:$0xff] %vm415, %v399
  %465 = vst.msk [vmem:[%s4 + $0x188] sm:$0xff] %vm415, %v400
  %466 = vst.msk [vmem:[%s4 + $0x190] sm:$0xff] %vm415, %v401
  %467 = vst.msk [vmem:[%s4 + $0x198] sm:$0xff] %vm415, %v402
  %468 = vst.msk [vmem:[%s4 + $0x1a0] sm:$0xff] %vm415, %v403
  %469 = vst.msk [vmem:[%s4 + $0x1a8] sm:$0xff] %vm415, %v404
  %470 = vst.msk [vmem:[%s4 + $0x1b0] sm:$0xff] %vm415, %v405
  %471 = vst.msk [vmem:[%s4 + $0x1b8] sm:$0xff] %vm415, %v406
  %472 = vst.msk [vmem:[%s4 + $0x1c0] sm:$0xff] %vm415, %v407
  %473 = vst.msk [vmem:[%s4 + $0x1c8] sm:$0xff] %vm415, %v408
  %474 = vst.msk [vmem:[%s4 + $0x1d0] sm:$0xff] %vm415, %v409
  %475 = vst.msk [vmem:[%s4 + $0x1d8] sm:$0xff] %vm415, %v410
  %476 = vst.msk [vmem:[%s4 + $0x1e0] sm:$0xff] %vm415, %v411
  %477 = vst.msk [vmem:[%s4 + $0x1e8] sm:$0xff] %vm415, %v412
  %478 = vst.msk [vmem:[%s4 + $0x1f0] sm:$0xff] %vm415, %v413
  %479 = vst.msk [vmem:[%s4 + $0x1f8] sm:$0xff] %vm415, %v414
  // Predicated region
  $region18: #{recurrent_block_forward.7} parent=0 // pred_check
    _
  $region19: #{recurrent_block_forward.7} parent=0 // pred_check_branch
    %481 = sbr.rel (0) target = $region21
  $region20: #{recurrent_block_forward.7} parent=0 // pred_region
    _
  $region21: #{recurrent_block_forward.7} parent=0 // pred_fallthru
    _
  // Predicated region
  $region22: #{recurrent_block_forward.7} parent=0 // pred_check
    _
  $region23: #{recurrent_block_forward.7} parent=0 // pred_check_branch
    %483 = sbr.rel (0) target = $region25
  $region24: #{recurrent_block_forward.7} parent=0 // pred_region
    _
  $region25: #{recurrent_block_forward.7} parent=0 // pred_fallthru
    _

// kernel: recurrent_block_forward.11
$region0: #{recurrent_block_forward.11}
  #allocation0 [shape = 'u32[]', space=smem, size = 0x4, offset = 0x4, fixed_abs, tag = 'smem constant byte address 0x4 - core index']
  #allocation1 [shape = 'u32[144,128]{1,0:T(1,128)}', space=vmem, size = 0x12000, scoped, tag = 'internal scratch']
  %s0 = inlined_call_operand.vmem [shape: f32[512,8], index: 0, kind: input, shape index: {}]
  %s1 = inlined_call_operand.vmem [shape: f32[1,8], index: 1, kind: input, shape index: {}]
  %s2 = inlined_call_operand.vmem [shape: f32[1,8], index: 2, kind: input, shape index: {}]
  %s3 = inlined_call_operand.vmem [shape: f32[512,8], index: 3, kind: output, shape index: {}]
  %s4 = sld [smem:[#allocation0]]
  $region22: #{recurrent_block_forward.11} parent=0
    _
  %s6 = ssub.s32 1, %s4
  %s7 = scalar_select 0, %s6, %s4
  // Predicated region
  $region2: #{recurrent_block_forward.11} parent=0 // pred_check
    _
  $region3: #{recurrent_block_forward.11} parent=0 // pred_check_branch
    %9 = sbr.rel (0) target = $region5
  $region4: #{recurrent_block_forward.11} parent=0 // pred_region
    _
  $region5: #{recurrent_block_forward.11} parent=0 // pred_fallthru
    _
  // Predicated region
  $region6: #{recurrent_block_forward.11} parent=0 // pred_check
    _
  $region7: #{recurrent_block_forward.11} parent=0 // pred_check_branch
    %11 = sbr.rel (0) target = $region9
  $region8: #{recurrent_block_forward.11} parent=0 // pred_region
    _
  $region9: #{recurrent_block_forward.11} parent=0 // pred_fallthru
    _
  // Predicated region
  $region10: #{recurrent_block_forward.11} parent=0 // pred_check
    _
  $region11: #{recurrent_block_forward.11} parent=0 // pred_check_branch
    %13 = sbr.rel (0) target = $region13
  $region12: #{recurrent_block_forward.11} parent=0 // pred_region
    _
  $region13: #{recurrent_block_forward.11} parent=0 // pred_fallthru
    _
  %v14 = vld [vmem:[%s0] sm:$0xff]
  %v15 = vld [vmem:[%s0 + $0x8] sm:$0xff]
  %v16 = vld [vmem:[%s0 + $0x10] sm:$0xff]
  %v17 = vld [vmem:[%s0 + $0x18] sm:$0xff]
  %v18 = vld [vmem:[%s0 + $0x20] sm:$0xff]
  %v19 = vld [vmem:[%s0 + $0x28] sm:$0xff]
  %v20 = vld [vmem:[%s0 + $0x30] sm:$0xff]
  %v21 = vld [vmem:[%s0 + $0x38] sm:$0xff]
  %v22 = vld [vmem:[%s0 + $0x40] sm:$0xff]
  %v23 = vld [vmem:[%s0 + $0x48] sm:$0xff]
  %v24 = vld [vmem:[%s0 + $0x50] sm:$0xff]
  %v25 = vld [vmem:[%s0 + $0x58] sm:$0xff]
  %v26 = vld [vmem:[%s0 + $0x60] sm:$0xff]
  %v27 = vld [vmem:[%s0 + $0x68] sm:$0xff]
  %v28 = vld [vmem:[%s0 + $0x70] sm:$0xff]
  %v29 = vld [vmem:[%s0 + $0x78] sm:$0xff]
  %v30 = vld [vmem:[%s0 + $0x80] sm:$0xff]
  %v31 = vld [vmem:[%s0 + $0x88] sm:$0xff]
  %v32 = vld [vmem:[%s0 + $0x90] sm:$0xff]
  %v33 = vld [vmem:[%s0 + $0x98] sm:$0xff]
  %v34 = vld [vmem:[%s0 + $0xa0] sm:$0xff]
  %v35 = vld [vmem:[%s0 + $0xa8] sm:$0xff]
  %v36 = vld [vmem:[%s0 + $0xb0] sm:$0xff]
  %v37 = vld [vmem:[%s0 + $0xb8] sm:$0xff]
  %v38 = vld [vmem:[%s0 + $0xc0] sm:$0xff]
  %v39 = vld [vmem:[%s0 + $0xc8] sm:$0xff]
  %v40 = vld [vmem:[%s0 + $0xd0] sm:$0xff]
  %v41 = vld [vmem:[%s0 + $0xd8] sm:$0xff]
  %v42 = vld [vmem:[%s0 + $0xe0] sm:$0xff]
  %v43 = vld [vmem:[%s0 + $0xe8] sm:$0xff]
  %v44 = vld [vmem:[%s0 + $0xf0] sm:$0xff]
  %v45 = vld [vmem:[%s0 + $0xf8] sm:$0xff]
  %v46 = vld [vmem:[%s0 + $0x100] sm:$0xff]
  %v47 = vld [vmem:[%s0 + $0x108] sm:$0xff]
  %v48 = vld [vmem:[%s0 + $0x110] sm:$0xff]
  %v49 = vld [vmem:[%s0 + $0x118] sm:$0xff]
  %v50 = vld [vmem:[%s0 + $0x120] sm:$0xff]
  %v51 = vld [vmem:[%s0 + $0x128] sm:$0xff]
  %v52 = vld [vmem:[%s0 + $0x130] sm:$0xff]
  %v53 = vld [vmem:[%s0 + $0x138] sm:$0xff]
  %v54 = vld [vmem:[%s0 + $0x140] sm:$0xff]
  %v55 = vld [vmem:[%s0 + $0x148] sm:$0xff]
  %v56 = vld [vmem:[%s0 + $0x150] sm:$0xff]
  %v57 = vld [vmem:[%s0 + $0x158] sm:$0xff]
  %v58 = vld [vmem:[%s0 + $0x160] sm:$0xff]
  %v59 = vld [vmem:[%s0 + $0x168] sm:$0xff]
  %v60 = vld [vmem:[%s0 + $0x170] sm:$0xff]
  %v61 = vld [vmem:[%s0 + $0x178] sm:$0xff]
  %v62 = vld [vmem:[%s0 + $0x180] sm:$0xff]
  %v63 = vld [vmem:[%s0 + $0x188] sm:$0xff]
  %v64 = vld [vmem:[%s0 + $0x190] sm:$0xff]
  %v65 = vld [vmem:[%s0 + $0x198] sm:$0xff]
  %v66 = vld [vmem:[%s0 + $0x1a0] sm:$0xff]
  %v67 = vld [vmem:[%s0 + $0x1a8] sm:$0xff]
  %v68 = vld [vmem:[%s0 + $0x1b0] sm:$0xff]
  %v69 = vld [vmem:[%s0 + $0x1b8] sm:$0xff]
  %v70 = vld [vmem:[%s0 + $0x1c0] sm:$0xff]
  %v71 = vld [vmem:[%s0 + $0x1c8] sm:$0xff]
  %v72 = vld [vmem:[%s0 + $0x1d0] sm:$0xff]
  %v73 = vld [vmem:[%s0 + $0x1d8] sm:$0xff]
  %v74 = vld [vmem:[%s0 + $0x1e0] sm:$0xff]
  %v75 = vld [vmem:[%s0 + $0x1e8] sm:$0xff]
  %v76 = vld [vmem:[%s0 + $0x1f0] sm:$0xff]
  %v77 = vld [vmem:[%s0 + $0x1f8] sm:$0xff]
  %v78 = vld [vmem:[%s1] sm:$0x1]
  %v80 = vlaneseq
  %v81 = vshrl.u32 %v80, 7
  %v82 = vsub.s32 0, %v81
  %v83 = vrot.slane %v78, %v82
  %v85 = vmul.f32 %v14, %v83
  %v86 = vmul.f32 %v15, %v83
  %v87 = vmul.f32 %v16, %v83
  %v88 = vmul.f32 %v17, %v83
  %v89 = vmul.f32 %v18, %v83
  %v90 = vmul.f32 %v19, %v83
  %v91 = vmul.f32 %v20, %v83
  %v92 = vmul.f32 %v21, %v83
  %v93 = vmul.f32 %v22, %v83
  %v94 = vmul.f32 %v23, %v83
  %v95 = vmul.f32 %v24, %v83
  %v96 = vmul.f32 %v25, %v83
  %v97 = vmul.f32 %v26, %v83
  %v98 = vmul.f32 %v27, %v83
  %v99 = vmul.f32 %v28, %v83
  %v100 = vmul.f32 %v29, %v83
  %v101 = vmul.f32 %v30, %v83
  %v102 = vmul.f32 %v31, %v83
  %v103 = vmul.f32 %v32, %v83
  %v104 = vmul.f32 %v33, %v83
  %v105 = vmul.f32 %v34, %v83
  %v106 = vmul.f32 %v35, %v83
  %v107 = vmul.f32 %v36, %v83
  %v108 = vmul.f32 %v37, %v83
  %v109 = vmul.f32 %v38, %v83
  %v110 = vmul.f32 %v39, %v83
  %v111 = vmul.f32 %v40, %v83
  %v112 = vmul.f32 %v41, %v83
  %v113 = vmul.f32 %v42, %v83
  %v114 = vmul.f32 %v43, %v83
  %v115 = vmul.f32 %v44, %v83
  %v116 = vmul.f32 %v45, %v83
  %v117 = vmul.f32 %v46, %v83
  %v118 = vmul.f32 %v47, %v83
  %v119 = vmul.f32 %v48, %v83
  %v120 = vmul.f32 %v49, %v83
  %v121 = vmul.f32 %v50, %v83
  %v122 = vmul.f32 %v51, %v83
  %v123 = vmul.f32 %v52, %v83
  %v124 = vmul.f32 %v53, %v83
  %v125 = vmul.f32 %v54, %v83
  %v126 = vmul.f32 %v55, %v83
  %v127 = vmul.f32 %v56, %v83
  %v128 = vmul.f32 %v57, %v83
  %v129 = vmul.f32 %v58, %v83
  %v130 = vmul.f32 %v59, %v83
  %v131 = vmul.f32 %v60, %v83
  %v132 = vmul.f32 %v61, %v83
  %v133 = vmul.f32 %v62, %v83
  %v134 = vmul.f32 %v63, %v83
  %v135 = vmul.f32 %v64, %v83
  %v136 = vmul.f32 %v65, %v83
  %v137 = vmul.f32 %v66, %v83
  %v138 = vmul.f32 %v67, %v83
  %v139 = vmul.f32 %v68, %v83
  %v140 = vmul.f32 %v69, %v83
  %v141 = vmul.f32 %v70, %v83
  %v142 = vmul.f32 %v71, %v83
  %v143 = vmul.f32 %v72, %v83
  %v144 = vmul.f32 %v73, %v83
  %v145 = vmul.f32 %v74, %v83
  %v146 = vmul.f32 %v75, %v83
  %v147 = vmul.f32 %v76, %v83
  %v148 = vmul.f32 %v77, %v83
  %v149 = vld [vmem:[%s2] sm:$0x1]
  %v151 = vlaneseq
  %v152 = vshrl.u32 %v151, 7
  %v153 = vsub.s32 0, %v152
  %v154 = vrot.slane %v149, %v153
  %v156 = vadd.f32 %v85, %v154
  %v157 = vadd.f32 %v86, %v154
  %v158 = vadd.f32 %v87, %v154
  %v159 = vadd.f32 %v88, %v154
  %v160 = vadd.f32 %v89, %v154
  %v161 = vadd.f32 %v90, %v154
  %v162 = vadd.f32 %v91, %v154
  %v163 = vadd.f32 %v92, %v154
  %v164 = vadd.f32 %v93, %v154
  %v165 = vadd.f32 %v94, %v154
  %v166 = vadd.f32 %v95, %v154
  %v167 = vadd.f32 %v96, %v154
  %v168 = vadd.f32 %v97, %v154
  %v169 = vadd.f32 %v98, %v154
  %v170 = vadd.f32 %v99, %v154
  %v171 = vadd.f32 %v100, %v154
  %v172 = vadd.f32 %v101, %v154
  %v173 = vadd.f32 %v102, %v154
  %v174 = vadd.f32 %v103, %v154
  %v175 = vadd.f32 %v104, %v154
  %v176 = vadd.f32 %v105, %v154
  %v177 = vadd.f32 %v106, %v154
  %v178 = vadd.f32 %v107, %v154
  %v179 = vadd.f32 %v108, %v154
  %v180 = vadd.f32 %v109, %v154
  %v181 = vadd.f32 %v110, %v154
  %v182 = vadd.f32 %v111, %v154
  %v183 = vadd.f32 %v112, %v154
  %v184 = vadd.f32 %v113, %v154
  %v185 = vadd.f32 %v114, %v154
  %v186 = vadd.f32 %v115, %v154
  %v187 = vadd.f32 %v116, %v154
  %v188 = vadd.f32 %v117, %v154
  %v189 = vadd.f32 %v118, %v154
  %v190 = vadd.f32 %v119, %v154
  %v191 = vadd.f32 %v120, %v154
  %v192 = vadd.f32 %v121, %v154
  %v193 = vadd.f32 %v122, %v154
  %v194 = vadd.f32 %v123, %v154
  %v195 = vadd.f32 %v124, %v154
  %v196 = vadd.f32 %v125, %v154
  %v197 = vadd.f32 %v126, %v154
  %v198 = vadd.f32 %v127, %v154
  %v199 = vadd.f32 %v128, %v154
  %v200 = vadd.f32 %v129, %v154
  %v201 = vadd.f32 %v130, %v154
  %v202 = vadd.f32 %v131, %v154
  %v203 = vadd.f32 %v132, %v154
  %v204 = vadd.f32 %v133, %v154
  %v205 = vadd.f32 %v134, %v154
  %v206 = vadd.f32 %v135, %v154
  %v207 = vadd.f32 %v136, %v154
  %v208 = vadd.f32 %v137, %v154
  %v209 = vadd.f32 %v138, %v154
  %v210 = vadd.f32 %v139, %v154
  %v211 = vadd.f32 %v140, %v154
  %v212 = vadd.f32 %v141, %v154
  %v213 = vadd.f32 %v142, %v154
  %v214 = vadd.f32 %v143, %v154
  %v215 = vadd.f32 %v144, %v154
  %v216 = vadd.f32 %v145, %v154
  %v217 = vadd.f32 %v146, %v154
  %v218 = vadd.f32 %v147, %v154
  %v219 = vadd.f32 %v148, %v154
  %v220 = vmax.f32 %v156, 0.0
  %v221 = vmax.f32 %v157, 0.0
  %v222 = vmax.f32 %v158, 0.0
  %v223 = vmax.f32 %v159, 0.0
  %v224 = vmax.f32 %v160, 0.0
  %v225 = vmax.f32 %v161, 0.0
  %v226 = vmax.f32 %v162, 0.0
  %v227 = vmax.f32 %v163, 0.0
  %v228 = vmax.f32 %v164, 0.0
  %v229 = vmax.f32 %v165, 0.0
  %v230 = vmax.f32 %v166, 0.0
  %v231 = vmax.f32 %v167, 0.0
  %v232 = vmax.f32 %v168, 0.0
  %v233 = vmax.f32 %v169, 0.0
  %v234 = vmax.f32 %v170, 0.0
  %v235 = vmax.f32 %v171, 0.0
  %v236 = vmax.f32 %v172, 0.0
  %v237 = vmax.f32 %v173, 0.0
  %v238 = vmax.f32 %v174, 0.0
  %v239 = vmax.f32 %v175, 0.0
  %v240 = vmax.f32 %v176, 0.0
  %v241 = vmax.f32 %v177, 0.0
  %v242 = vmax.f32 %v178, 0.0
  %v243 = vmax.f32 %v179, 0.0
  %v244 = vmax.f32 %v180, 0.0
  %v245 = vmax.f32 %v181, 0.0
  %v246 = vmax.f32 %v182, 0.0
  %v247 = vmax.f32 %v183, 0.0
  %v248 = vmax.f32 %v184, 0.0
  %v249 = vmax.f32 %v185, 0.0
  %v250 = vmax.f32 %v186, 0.0
  %v251 = vmax.f32 %v187, 0.0
  %v252 = vmax.f32 %v188, 0.0
  %v253 = vmax.f32 %v189, 0.0
  %v254 = vmax.f32 %v190, 0.0
  %v255 = vmax.f32 %v191, 0.0
  %v256 = vmax.f32 %v192, 0.0
  %v257 = vmax.f32 %v193, 0.0
  %v258 = vmax.f32 %v194, 0.0
  %v259 = vmax.f32 %v195, 0.0
  %v260 = vmax.f32 %v196, 0.0
  %v261 = vmax.f32 %v197, 0.0
  %v262 = vmax.f32 %v198, 0.0
  %v263 = vmax.f32 %v199, 0.0
  %v264 = vmax.f32 %v200, 0.0
  %v265 = vmax.f32 %v201, 0.0
  %v266 = vmax.f32 %v202, 0.0
  %v267 = vmax.f32 %v203, 0.0
  %v268 = vmax.f32 %v204, 0.0
  %v269 = vmax.f32 %v205, 0.0
  %v270 = vmax.f32 %v206, 0.0
  %v271 = vmax.f32 %v207, 0.0
  %v272 = vmax.f32 %v208, 0.0
  %v273 = vmax.f32 %v209, 0.0
  %v274 = vmax.f32 %v210, 0.0
  %v275 = vmax.f32 %v211, 0.0
  %v276 = vmax.f32 %v212, 0.0
  %v277 = vmax.f32 %v213, 0.0
  %v278 = vmax.f32 %v214, 0.0
  %v279 = vmax.f32 %v215, 0.0
  %v280 = vmax.f32 %v216, 0.0
  %v281 = vmax.f32 %v217, 0.0
  %v282 = vmax.f32 %v218, 0.0
  %v283 = vmax.f32 %v219, 0.0
  %vm284 = vcmask 64512
  %285 = vst.msk [vmem:[%s3] sm:$0xff] %vm284, %v220
  %286 = vst.msk [vmem:[%s3 + $0x8] sm:$0xff] %vm284, %v221
  %287 = vst.msk [vmem:[%s3 + $0x10] sm:$0xff] %vm284, %v222
  %288 = vst.msk [vmem:[%s3 + $0x18] sm:$0xff] %vm284, %v223
  %289 = vst.msk [vmem:[%s3 + $0x20] sm:$0xff] %vm284, %v224
  %290 = vst.msk [vmem:[%s3 + $0x28] sm:$0xff] %vm284, %v225
  %291 = vst.msk [vmem:[%s3 + $0x30] sm:$0xff] %vm284, %v226
  %292 = vst.msk [vmem:[%s3 + $0x38] sm:$0xff] %vm284, %v227
  %293 = vst.msk [vmem:[%s3 + $0x40] sm:$0xff] %vm284, %v228
  %294 = vst.msk [vmem:[%s3 + $0x48] sm:$0xff] %vm284, %v229
  %295 = vst.msk [vmem:[%s3 + $0x50] sm:$0xff] %vm284, %v230
  %296 = vst.msk [vmem:[%s3 + $0x58] sm:$0xff] %vm284, %v231
  %297 = vst.msk [vmem:[%s3 + $0x60] sm:$0xff] %vm284, %v232
  %298 = vst.msk [vmem:[%s3 + $0x68] sm:$0xff] %vm284, %v233
  %299 = vst.msk [vmem:[%s3 + $0x70] sm:$0xff] %vm284, %v234
  %300 = vst.msk [vmem:[%s3 + $0x78] sm:$0xff] %vm284, %v235
  %301 = vst.msk [vmem:[%s3 + $0x80] sm:$0xff] %vm284, %v236
  %302 = vst.msk [vmem:[%s3 + $0x88] sm:$0xff] %vm284, %v237
  %303 = vst.msk [vmem:[%s3 + $0x90] sm:$0xff] %vm284, %v238
  %304 = vst.msk [vmem:[%s3 + $0x98] sm:$0xff] %vm284, %v239
  %305 = vst.msk [vmem:[%s3 + $0xa0] sm:$0xff] %vm284, %v240
  %306 = vst.msk [vmem:[%s3 + $0xa8] sm:$0xff] %vm284, %v241
  %307 = vst.msk [vmem:[%s3 + $0xb0] sm:$0xff] %vm284, %v242
  %308 = vst.msk [vmem:[%s3 + $0xb8] sm:$0xff] %vm284, %v243
  %309 = vst.msk [vmem:[%s3 + $0xc0] sm:$0xff] %vm284, %v244
  %310 = vst.msk [vmem:[%s3 + $0xc8] sm:$0xff] %vm284, %v245
  %311 = vst.msk [vmem:[%s3 + $0xd0] sm:$0xff] %vm284, %v246
  %312 = vst.msk [vmem:[%s3 + $0xd8] sm:$0xff] %vm284, %v247
  %313 = vst.msk [vmem:[%s3 + $0xe0] sm:$0xff] %vm284, %v248
  %314 = vst.msk [vmem:[%s3 + $0xe8] sm:$0xff] %vm284, %v249
  %315 = vst.msk [vmem:[%s3 + $0xf0] sm:$0xff] %vm284, %v250
  %316 = vst.msk [vmem:[%s3 + $0xf8] sm:$0xff] %vm284, %v251
  %317 = vst.msk [vmem:[%s3 + $0x100] sm:$0xff] %vm284, %v252
  %318 = vst.msk [vmem:[%s3 + $0x108] sm:$0xff] %vm284, %v253
  %319 = vst.msk [vmem:[%s3 + $0x110] sm:$0xff] %vm284, %v254
  %320 = vst.msk [vmem:[%s3 + $0x118] sm:$0xff] %vm284, %v255
  %321 = vst.msk [vmem:[%s3 + $0x120] sm:$0xff] %vm284, %v256
  %322 = vst.msk [vmem:[%s3 + $0x128] sm:$0xff] %vm284, %v257
  %323 = vst.msk [vmem:[%s3 + $0x130] sm:$0xff] %vm284, %v258
  %324 = vst.msk [vmem:[%s3 + $0x138] sm:$0xff] %vm284, %v259
  %325 = vst.msk [vmem:[%s3 + $0x140] sm:$0xff] %vm284, %v260
  %326 = vst.msk [vmem:[%s3 + $0x148] sm:$0xff] %vm284, %v261
  %327 = vst.msk [vmem:[%s3 + $0x150] sm:$0xff] %vm284, %v262
  %328 = vst.msk [vmem:[%s3 + $0x158] sm:$0xff] %vm284, %v263
  %329 = vst.msk [vmem:[%s3 + $0x160] sm:$0xff] %vm284, %v264
  %330 = vst.msk [vmem:[%s3 + $0x168] sm:$0xff] %vm284, %v265
  %331 = vst.msk [vmem:[%s3 + $0x170] sm:$0xff] %vm284, %v266
  %332 = vst.msk [vmem:[%s3 + $0x178] sm:$0xff] %vm284, %v267
  %333 = vst.msk [vmem:[%s3 + $0x180] sm:$0xff] %vm284, %v268
  %334 = vst.msk [vmem:[%s3 + $0x188] sm:$0xff] %vm284, %v269
  %335 = vst.msk [vmem:[%s3 + $0x190] sm:$0xff] %vm284, %v270
  %336 = vst.msk [vmem:[%s3 + $0x198] sm:$0xff] %vm284, %v271
  %337 = vst.msk [vmem:[%s3 + $0x1a0] sm:$0xff] %vm284, %v272
  %338 = vst.msk [vmem:[%s3 + $0x1a8] sm:$0xff] %vm284, %v273
  %339 = vst.msk [vmem:[%s3 + $0x1b0] sm:$0xff] %vm284, %v274
  %340 = vst.msk [vmem:[%s3 + $0x1b8] sm:$0xff] %vm284, %v275
  %341 = vst.msk [vmem:[%s3 + $0x1c0] sm:$0xff] %vm284, %v276
  %342 = vst.msk [vmem:[%s3 + $0x1c8] sm:$0xff] %vm284, %v277
  %343 = vst.msk [vmem:[%s3 + $0x1d0] sm:$0xff] %vm284, %v278
  %344 = vst.msk [vmem:[%s3 + $0x1d8] sm:$0xff] %vm284, %v279
  %345 = vst.msk [vmem:[%s3 + $0x1e0] sm:$0xff] %vm284, %v280
  %346 = vst.msk [vmem:[%s3 + $0x1e8] sm:$0xff] %vm284, %v281
  %347 = vst.msk [vmem:[%s3 + $0x1f0] sm:$0xff] %vm284, %v282
  %348 = vst.msk [vmem:[%s3 + $0x1f8] sm:$0xff] %vm284, %v283
  // Predicated region
  $region14: #{recurrent_block_forward.11} parent=0 // pred_check
    _
  $region15: #{recurrent_block_forward.11} parent=0 // pred_check_branch
    %350 = sbr.rel (0) target = $region17
  $region16: #{recurrent_block_forward.11} parent=0 // pred_region
    _
  $region17: #{recurrent_block_forward.11} parent=0 // pred_fallthru
    _
  // Predicated region
  $region18: #{recurrent_block_forward.11} parent=0 // pred_check
    _
  $region19: #{recurrent_block_forward.11} parent=0 // pred_check_branch
    %352 = sbr.rel (0) target = $region21
  $region20: #{recurrent_block_forward.11} parent=0 // pred_region
    _
  $region21: #{recurrent_block_forward.11} parent=0 // pred_fallthru
    _

// kernel: recurrent_block_forward.6
$region0: #{recurrent_block_forward.6}
  #allocation0 [shape = 'u32[]', space=smem, size = 0x4, offset = 0x4, fixed_abs, tag = 'smem constant byte address 0x4 - core index']
  #allocation1 [shape = 'u32[144,128]{1,0:T(1,128)}', space=vmem, size = 0x12000, scoped, tag = 'internal scratch']
  #allocation2 [shape = 'f32[10,48,8]{2,1,0:T(8,128)}', space=vmem, size = 0x3c000, scoped, tag = 'scratch operand']
  %s0 = inlined_call_operand.vmem [shape: f32[32,16,8], index: 0, kind: input, shape index: {}]
  %s1 = inlined_call_operand.vmem [shape: f32[8,16,8], index: 1, kind: input, shape index: {}]
  %s2 = inlined_call_operand.vmem [shape: f32[3,3,8,8], index: 2, kind: input, shape index: {}]
  %s3 = inlined_call_operand.vmem [shape: f32[1,8], index: 3, kind: input, shape index: {}]
  %s4 = inlined_call_operand.vmem [shape: f32[512,8], index: 4, kind: output, shape index: {0}]
  %s5 = inlined_call_operand.vmem [shape: f32[4,1,8], index: 5, kind: output, shape index: {1}]
  %s6 = inlined_call_operand.vmem [shape: f32[4,1,8], index: 6, kind: output, shape index: {2}]
  %7 = xla_tuple %s4, %s5, %s6
  %s8 = sld [smem:[#allocation0]]
  $region65: #{recurrent_block_forward.6} parent=0
    _
  %s10 = ssub.s32 1, %s8
  %s11 = scalar_select 0, %s10, %s8
  loop: start=0, step=1, limit=6
  $region2: #{recurrent_block_forward.6} parent=0 // loop_pre_header
    _
  $region3: #{recurrent_block_forward.6} parent=0 // loop_header
    %s13 = sphi 0, %s17
    %p14 = scmp.ge.s32.totalorder %s13, 6
    %s23 = sphi 0, %s25
    %s26 = sphi 0, %s23
    %s27 = sphi 0, %s26
    %s43 = sphi 0, %s27
    %s49 = sphi 0, %s51
    %s52 = sphi 0, %s49
    %s53 = sphi 0, %s52
    %s69 = sphi 0, %s53
    %s73 = sphi 0, %s73
    %s75 = sphi 0, %s73
    %s76 = sphi 0, %s75
    %s90 = sphi 0, %s76
    %s94 = sphi 0, %s94
    %s96 = sphi 0, %s94
    %s97 = sphi 0, %s96
    %s111 = sphi 0, %s97
    %s117 = sphi 0, %s119
    %s120 = sphi 0, %s117
    %s121 = sphi 0, %s120
    %s137 = sphi 0, %s121
    %s143 = sphi 0, %s145
    %s146 = sphi 0, %s143
    %s147 = sphi 0, %s146
    %s163 = sphi 0, %s147
    %s169 = sphi 0, %s171
    %s172 = sphi 0, %s169
    %s173 = sphi 0, %s172
    %s189 = sphi 0, %s173
  $region4: #{recurrent_block_forward.6} parent=0 // loop_header_branch
    %16 = sbr.rel (%p14) target = $region8
  $region5: #{recurrent_block_forward.6} parent=0 // loop_body
    %s18 = ssub.s32 %s13, 1
    %s19 = ssub.s32 %s13, 2
    %s20 = sadd.s32 %s13, 1
    %s21 = ssub.s32 %s13, %s20
    %p22 = scmp.eq.s32.totalorder %s21, 0
    %s24 = sadd.s32 %s23, 1
    %s25 = scalar_select %p22, %s23, %s24
    %p28 = pneg %p22
    %p29 = scmp.eq.s32.totalorder %s13, 3
    %p30 = por %p28, %p29
    %p31 = scmp.ne.s32.totalorder %s23, %s26
    %p32 = scmp.eq.s32.totalorder %s13, 0
    %p33 = por %p31, %p32
    %p34 = scmp.ne.s32.totalorder %s23, %s26
    %p35 = scmp.eq.s32.totalorder %s18, 3
    %p36 = por %p34, %p35
    %p37 = scmp.ne.s32.totalorder %s26, %s27
    %p38 = scmp.eq.s32.totalorder %s18, 0
    %p39 = por %p37, %p38
    %p40 = scmp.ne.s32.totalorder %s26, %s27
    %p41 = scmp.eq.s32.totalorder %s19, 3
    %p42 = por %p40, %p41
    %p44 = scmp.ne.s32.totalorder %s27, %s43
    %p45 = scmp.eq.s32.totalorder %s19, 0
    %p46 = por %p44, %p45
    %s47 = ssub.s32 %s13, %s20
    %p48 = scmp.eq.s32.totalorder %s47, 0
    %s50 = sadd.s32 %s49, 1
    %s51 = scalar_select %p48, %s49, %s50
    %p54 = pneg %p48
    %p55 = scmp.eq.s32.totalorder %s13, 3
    %p56 = por %p54, %p55
    %p57 = scmp.ne.s32.totalorder %s49, %s52
    %p58 = scmp.eq.s32.totalorder %s13, 0
    %p59 = por %p57, %p58
    %p60 = scmp.ne.s32.totalorder %s49, %s52
    %p61 = scmp.eq.s32.totalorder %s18, 3
    %p62 = por %p60, %p61
    %p63 = scmp.ne.s32.totalorder %s52, %s53
    %p64 = scmp.eq.s32.totalorder %s18, 0
    %p65 = por %p63, %p64
    %p66 = scmp.ne.s32.totalorder %s52, %s53
    %p67 = scmp.eq.s32.totalorder %s19, 3
    %p68 = por %p66, %p67
    %p70 = scmp.ne.s32.totalorder %s53, %s69
    %p71 = scmp.eq.s32.totalorder %s19, 0
    %p72 = por %p70, %p71
    %s74 = sadd.s32 %s73, 1
    %p77 = scmp.eq.s32.totalorder %s13, 3
    %p78 = scmp.ne.s32.totalorder %s73, %s75
    %p79 = scmp.eq.s32.totalorder %s13, 0
    %p80 = por %p78, %p79
    %p81 = scmp.ne.s32.totalorder %s73, %s75
    %p82 = scmp.eq.s32.totalorder %s18, 3
    %p83 = por %p81, %p82
    %p84 = scmp.ne.s32.totalorder %s75, %s76
    %p85 = scmp.eq.s32.totalorder %s18, 0
    %p86 = por %p84, %p85
    %p87 = scmp.ne.s32.totalorder %s75, %s76
    %p88 = scmp.eq.s32.totalorder %s19, 3
    %p89 = por %p87, %p88
    %p91 = scmp.ne.s32.totalorder %s76, %s90
    %p92 = scmp.eq.s32.totalorder %s19, 0
    %p93 = por %p91, %p92
    %s95 = sadd.s32 %s94, 1
    %p98 = scmp.eq.s32.totalorder %s13, 3
    %p99 = scmp.ne.s32.totalorder %s94, %s96
    %p100 = scmp.eq.s32.totalorder %s13, 0
    %p101 = por %p99, %p100
    %p102 = scmp.ne.s32.totalorder %s94, %s96
    %p103 = scmp.eq.s32.totalorder %s18, 3
    %p104 = por %p102, %p103
    %p105 = scmp.ne.s32.totalorder %s96, %s97
    %p106 = scmp.eq.s32.totalorder %s18, 0
    %p107 = por %p105, %p106
    %p108 = scmp.ne.s32.totalorder %s96, %s97
    %p109 = scmp.eq.s32.totalorder %s19, 3
    %p110 = por %p108, %p109
    %p112 = scmp.ne.s32.totalorder %s97, %s111
    %p113 = scmp.eq.s32.totalorder %s19, 0
    %p114 = por %p112, %p113
    %s115 = ssub.s32 %s13, %s20
    %p116 = scmp.eq.s32.totalorder %s115, 0
    %s118 = sadd.s32 %s117, 1
    %s119 = scalar_select %p116, %s117, %s118
    %p122 = pneg %p116
    %p123 = scmp.eq.s32.totalorder %s13, 3
    %p124 = por %p122, %p123
    %p125 = scmp.ne.s32.totalorder %s117, %s120
    %p126 = scmp.eq.s32.totalorder %s13, 0
    %p127 = por %p125, %p126
    %p128 = scmp.ne.s32.totalorder %s117, %s120
    %p129 = scmp.eq.s32.totalorder %s18, 3
    %p130 = por %p128, %p129
    %p131 = scmp.ne.s32.totalorder %s120, %s121
    %p132 = scmp.eq.s32.totalorder %s18, 0
    %p133 = por %p131, %p132
    %p134 = scmp.ne.s32.totalorder %s120, %s121
    %p135 = scmp.eq.s32.totalorder %s19, 3
    %p136 = por %p134, %p135
    %p138 = scmp.ne.s32.totalorder %s121, %s137
    %p139 = scmp.eq.s32.totalorder %s19, 0
    %p140 = por %p138, %p139
    %s141 = ssub.s32 %s13, %s20
    %p142 = scmp.eq.s32.totalorder %s141, 0
    %s144 = sadd.s32 %s143, 1
    %s145 = scalar_select %p142, %s143, %s144
    %p148 = pneg %p142
    %p149 = scmp.eq.s32.totalorder %s13, 3
    %p150 = por %p148, %p149
    %p151 = scmp.ne.s32.totalorder %s143, %s146
    %p152 = scmp.eq.s32.totalorder %s13, 0
    %p153 = por %p151, %p152
    %p154 = scmp.ne.s32.totalorder %s143, %s146
    %p155 = scmp.eq.s32.totalorder %s18, 3
    %p156 = por %p154, %p155
    %p157 = scmp.ne.s32.totalorder %s146, %s147
    %p158 = scmp.eq.s32.totalorder %s18, 0
    %p159 = por %p157, %p158
    %p160 = scmp.ne.s32.totalorder %s146, %s147
    %p161 = scmp.eq.s32.totalorder %s19, 3
    %p162 = por %p160, %p161
    %p164 = scmp.ne.s32.totalorder %s147, %s163
    %p165 = scmp.eq.s32.totalorder %s19, 0
    %p166 = por %p164, %p165
    %s167 = ssub.s32 %s13, %s20
    %p168 = scmp.eq.s32.totalorder %s167, 0
    %s170 = sadd.s32 %s169, 1
    %s171 = scalar_select %p168, %s169, %s170
    %p174 = pneg %p168
    %p175 = scmp.eq.s32.totalorder %s13, 3
    %p176 = por %p174, %p175
    %p177 = scmp.ne.s32.totalorder %s169, %s172
    %p178 = scmp.eq.s32.totalorder %s13, 0
    %p179 = por %p177, %p178
    %p180 = scmp.ne.s32.totalorder %s169, %s172
    %p181 = scmp.eq.s32.totalorder %s18, 3
    %p182 = por %p180, %p181
    %p183 = scmp.ne.s32.totalorder %s172, %s173
    %p184 = scmp.eq.s32.totalorder %s18, 0
    %p185 = por %p183, %p184
    %p186 = scmp.ne.s32.totalorder %s172, %s173
    %p187 = scmp.eq.s32.totalorder %s19, 3
    %p188 = por %p186, %p187
    %p190 = scmp.ne.s32.totalorder %s173, %s189
    %p191 = scmp.eq.s32.totalorder %s19, 0
    %p192 = por %p190, %p191
    %p193 = scmp.le.s32.totalorder 1, %s13
    %p194 = scmp.lt.s32.totalorder %s13, 5
    %p195 = pnand %p193, %p194
    %p196 = pneg %p195
    // Predicated region
    $region9: #{recurrent_block_forward.6} parent=5 // pred_check
      _
    $region10: #{recurrent_block_forward.6} parent=5 // pred_check_branch
      %198 = sbr.rel (%p195) target = $region12
    $region11: #{recurrent_block_forward.6} parent=5 // pred_region
      %s199 = ssub.s32 %s13, 1
      // Predicated region
      $region13: #{recurrent_block_forward.6} parent=11 // pred_check
        %p200 = pneg %p86
      $region14: #{recurrent_block_forward.6} parent=11 // pred_check_branch
        %202 = sbr.rel (%p200) target = $region16
      $region15: #{recurrent_block_forward.6} parent=11 // pred_region
        _
      $region16: #{recurrent_block_forward.6} parent=11 // pred_fallthru
        _
      // Predicated region
      $region17: #{recurrent_block_forward.6} parent=11 // pred_check
        %p203 = pneg %p107
      $region18: #{recurrent_block_forward.6} parent=11 // pred_check_branch
        %205 = sbr.rel (%p203) target = $region20
      $region19: #{recurrent_block_forward.6} parent=11 // pred_region
        _
      $region20: #{recurrent_block_forward.6} parent=11 // pred_fallthru
        _
    $region12: #{recurrent_block_forward.6} parent=5 // pred_fallthru
      _
    %p206 = scmp.lt.s32.totalorder %s13, 4
    // Predicated region
    $region21: #{recurrent_block_forward.6} parent=5 // pred_check
      %p207 = pneg %p206
    $region22: #{recurrent_block_forward.6} parent=5 // pred_check_branch
      %209 = sbr.rel (%p207) target = $region24
    $region23: #{recurrent_block_forward.6} parent=5 // pred_region
      // Predicated region
      $region25: #{recurrent_block_forward.6} parent=23 // pred_check
        %p210 = pneg %p33
      $region26: #{recurrent_block_forward.6} parent=23 // pred_check_branch
        %212 = sbr.rel (%p210) target = $region28
      $region27: #{recurrent_block_forward.6} parent=23 // pred_region
        %s213 = smul.u32 8, %s13
        %p214 = scmp.lt.s32.totalorder %s213, 31
        %s215 = scalar_select %p214, %s213, 31
        %s216 = smul.addr %s215, 2
        %s217 = smul.addr %s216, 8
        %s218 = scalar_lea.vmem %s0, %s217
        %s219 = smul.u32 8, %s13
      $region28: #{recurrent_block_forward.6} parent=23 // pred_fallthru
        _
      // Predicated region
      $region29: #{recurrent_block_forward.6} parent=23 // pred_check
        %p220 = pneg %p59
      $region30: #{recurrent_block_forward.6} parent=23 // pred_check_branch
        %222 = sbr.rel (%p220) target = $region32
      $region31: #{recurrent_block_forward.6} parent=23 // pred_region
        %s223 = smul.u32 2, %s13
        %p224 = scmp.lt.s32.totalorder %s223, 7
        %s225 = scalar_select %p224, %s223, 7
        %s226 = smul.addr %s225, 2
        %s227 = smul.addr %s226, 8
        %s228 = scalar_lea.vmem %s1, %s227
        %s229 = smul.u32 2, %s13
      $region32: #{recurrent_block_forward.6} parent=23 // pred_fallthru
        _
    $region24: #{recurrent_block_forward.6} parent=5 // pred_fallthru
      _
    %p230 = scmp.le.s32.totalorder 1, %s13
    %p231 = scmp.lt.s32.totalorder %s13, 5
    %p232 = pnand %p230, %p231
    %p233 = pneg %p232
    // Predicated region
    $region33: #{recurrent_block_forward.6} parent=5 // pred_check
      _
    $region34: #{recurrent_block_forward.6} parent=5 // pred_check_branch
      %235 = sbr.rel (%p232) target = $region36
    $region35: #{recurrent_block_forward.6} parent=5 // pred_region
      %s236 = ssub.s32 %s13, 1
      %s237 = smul.u32 8, %s18
      %p238 = scmp.lt.s32.totalorder %s237, 31
      %s239 = scalar_select %p238, %s237, 31
      %s240 = smul.addr %s239, 2
      %s241 = smul.addr %s240, 8
      %s242 = scalar_lea.vmem %s0, %s241
      %p243 = pneg %p39
      %p244 = pneg %p36
      %s245 = smul.u32 2, %s18
      %p246 = scmp.lt.s32.totalorder %s245, 7
      %s247 = scalar_select %p246, %s245, 7
      %s248 = smul.addr %s247, 2
      %s249 = smul.addr %s248, 8
      %s250 = scalar_lea.vmem %s1, %s249
      %p251 = pneg %p65
      %p252 = pneg %p62
      %p253 = pneg %p86
      %p254 = pneg %p83
      %p255 = pneg %p107
      %p256 = pneg %p104
      %p257 = pneg %p133
      %p258 = pneg %p130
      %s259 = smul.u32 16, %s18
      %p260 = scmp.lt.s32.totalorder %s259, 63
      %s261 = scalar_select %p260, %s259, 63
      %s262 = smul.addr %s261, 8
      %s263 = scalar_lea.vmem %s4, %s262
      %p264 = pneg %p159
      %p265 = pneg %p156
      %p266 = scmp.lt.s32.totalorder %s18, 3
      %s267 = scalar_select %p266, %s18, 3
      %s268 = scalar_lea.vmem %s5, %s267
      %p269 = pneg %p185
      %p270 = pneg %p182
      %p271 = scmp.lt.s32.totalorder %s18, 3
      %s272 = scalar_select %p271, %s18, 3
      %s273 = scalar_lea.vmem %s6, %s272
      %s274 = smul.u32 8, %s18
      %p275 = scmp.lt.s32.totalorder %s274, 31
      %s276 = scalar_select %p275, %s274, 31
      %s277 = smul.addr %s276, 2
      %s278 = smul.addr %s277, 8
      %s279 = scalar_lea.vmem %s0, %s278
      %s280 = smul.u32 8, %s18
      %s281 = smul.u32 2, %s18
      %p282 = scmp.lt.s32.totalorder %s281, 7
      %s283 = scalar_select %p282, %s281, 7
      %s284 = smul.addr %s283, 2
      %s285 = smul.addr %s284, 8
      %s286 = scalar_lea.vmem %s1, %s285
      %s287 = smul.u32 2, %s18
      %s288 = smul.u32 16, %s18
      %p289 = scmp.lt.s32.totalorder %s288, 63
      %s290 = scalar_select %p289, %s288, 63
      %s291 = smul.addr %s290, 8
      %s292 = scalar_lea.vmem %s4, %s291
      %s293 = smul.u32 16, %s18
      %p294 = scmp.lt.s32.totalorder %s18, 3
      %s295 = scalar_select %p294, %s18, 3
      %s296 = scalar_lea.vmem %s5, %s295
      %p297 = scmp.lt.s32.totalorder %s18, 3
      %s298 = scalar_select %p297, %s18, 3
      %s299 = scalar_lea.vmem %s6, %s298
      %vm300 = vcmask 57344
      %301 = vst.msk [vmem:[#allocation2 + $0xf] sm:$0x1] %vm300, 0.0
      %302 = vst.msk [vmem:[#allocation2 + $0x3f] sm:$0x1] %vm300, 0.0
      %303 = vst.msk [vmem:[#allocation2 + $0x6f] sm:$0x1] %vm300, 0.0
      %304 = vst.msk [vmem:[#allocation2 + $0x9f] sm:$0x1] %vm300, 0.0
      %305 = vst.msk [vmem:[#allocation2 + $0xcf] sm:$0x1] %vm300, 0.0
      %306 = vst.msk [vmem:[#allocation2 + $0xff] sm:$0x1] %vm300, 0.0
      %307 = vst.msk [vmem:[#allocation2 + $0x12f] sm:$0x1] %vm300, 0.0
      %308 = vst.msk [vmem:[#allocation2 + $0x15f] sm:$0x1] %vm300, 0.0
      %309 = vst.msk [vmem:[#allocation2 + $0x18f] sm:$0x1] %vm300, 0.0
      %310 = vst.msk [vmem:[#allocation2 + $0x1bf] sm:$0x1] %vm300, 0.0
      %311 = vst.msk [vmem:[#allocation2 + $0x20] sm:$0x1] %vm300, 0.0
      %312 = vst.msk [vmem:[#allocation2 + $0x50] sm:$0x1] %vm300, 0.0
      %313 = vst.msk [vmem:[#allocation2 + $0x80] sm:$0x1] %vm300, 0.0
      %314 = vst.msk [vmem:[#allocation2 + $0xb0] sm:$0x1] %vm300, 0.0
      %315 = vst.msk [vmem:[#allocation2 + $0xe0] sm:$0x1] %vm300, 0.0
      %316 = vst.msk [vmem:[#allocation2 + $0x110] sm:$0x1] %vm300, 0.0
      %317 = vst.msk [vmem:[#allocation2 + $0x140] sm:$0x1] %vm300, 0.0
      %318 = vst.msk [vmem:[#allocation2 + $0x170] sm:$0x1] %vm300, 0.0
      %319 = vst.msk [vmem:[#allocation2 + $0x1a0] sm:$0x1] %vm300, 0.0
      %320 = vst.msk [vmem:[#allocation2 + $0x1d0] sm:$0x1] %vm300, 0.0
      %v321 = vld [vmem:[%s286] sm:$0xff]
      %v322 = vld [vmem:[%s286 + $0x8] sm:$0xff]
      %vm323 = vcmask 64512
      %324 = vst.msk [vmem:[#allocation2 + $0x10] sm:$0xff] %vm323, %v321
      %325 = vst.msk [vmem:[#allocation2 + $0x18] sm:$0xff] %vm323, %v322
      %v326 = vld [vmem:[%s279] sm:$0xff]
      %v327 = vld [vmem:[%s279 + $0x8] sm:$0xff]
      %v328 = vld [vmem:[%s279 + $0x10] sm:$0xff]
      %v329 = vld [vmem:[%s279 + $0x18] sm:$0xff]
      %v330 = vld [vmem:[%s279 + $0x20] sm:$0xff]
      %v331 = vld [vmem:[%s279 + $0x28] sm:$0xff]
      %v332 = vld [vmem:[%s279 + $0x30] sm:$0xff]
      %v333 = vld [vmem:[%s279 + $0x38] sm:$0xff]
      %v334 = vld [vmem:[%s279 + $0x40] sm:$0xff]
      %v335 = vld [vmem:[%s279 + $0x48] sm:$0xff]
      %v336 = vld [vmem:[%s279 + $0x50] sm:$0xff]
      %v337 = vld [vmem:[%s279 + $0x58] sm:$0xff]
      %v338 = vld [vmem:[%s279 + $0x60] sm:$0xff]
      %v339 = vld [vmem:[%s279 + $0x68] sm:$0xff]
      %v340 = vld [vmem:[%s279 + $0x70] sm:$0xff]
      %v341 = vld [vmem:[%s279 + $0x78] sm:$0xff]
      %s342 = scalar_lea.vmem [#allocation2], 48
      %343 = vst.msk [vmem:[%s342 + $0x10] sm:$0xff] %vm323, %v326
      %344 = vst.msk [vmem:[%s342 + $0x18] sm:$0xff] %vm323, %v327
      %345 = vst.msk [vmem:[%s342 + $0x40] sm:$0xff] %vm323, %v328
      %346 = vst.msk [vmem:[%s342 + $0x48] sm:$0xff] %vm323, %v329
      %347 = vst.msk [vmem:[%s342 + $0x70] sm:$0xff] %vm323, %v330
      %348 = vst.msk [vmem:[%s342 + $0x78] sm:$0xff] %vm323, %v331
      %349 = vst.msk [vmem:[%s342 + $0xa0] sm:$0xff] %vm323, %v332
      %350 = vst.msk [vmem:[%s342 + $0xa8] sm:$0xff] %vm323, %v333
      %351 = vst.msk [vmem:[%s342 + $0xd0] sm:$0xff] %vm323, %v334
      %352 = vst.msk [vmem:[%s342 + $0xd8] sm:$0xff] %vm323, %v335
      %353 = vst.msk [vmem:[%s342 + $0x100] sm:$0xff] %vm323, %v336
      %354 = vst.msk [vmem:[%s342 + $0x108] sm:$0xff] %vm323, %v337
      %355 = vst.msk [vmem:[%s342 + $0x130] sm:$0xff] %vm323, %v338
      %356 = vst.msk [vmem:[%s342 + $0x138] sm:$0xff] %vm323, %v339
      %357 = vst.msk [vmem:[%s342 + $0x160] sm:$0xff] %vm323, %v340
      %358 = vst.msk [vmem:[%s342 + $0x168] sm:$0xff] %vm323, %v341
      %s359 = scalar_lea.vmem %s286, 16
      %v360 = vld [vmem:[%s359] sm:$0xff]
      %v361 = vld [vmem:[%s359 + $0x8] sm:$0xff]
      %s362 = scalar_lea.vmem [#allocation2], 432
      %363 = vst.msk [vmem:[%s362 + $0x10] sm:$0xff] %vm323, %v360
      %364 = vst.msk [vmem:[%s362 + $0x18] sm:$0xff] %vm323, %v361
      %v365 = vld [vmem:[#allocation2 + $0xf] sm:$0xff]
      %v366 = vld [vmem:[#allocation2 + $0x17] sm:$0xff]
      %v367 = vld [vmem:[#allocation2 + $0x3f] sm:$0xff]
      %v368 = vld [vmem:[#allocation2 + $0x47] sm:$0xff]
      %v369 = vld [vmem:[#allocation2 + $0x6f] sm:$0xff]
      %v370 = vld [vmem:[#allocation2 + $0x77] sm:$0xff]
      %v371 = vld [vmem:[#allocation2 + $0x9f] sm:$0xff]
      %v372 = vld [vmem:[#allocation2 + $0xa7] sm:$0xff]
      %v373 = vld [vmem:[#allocation2 + $0xcf] sm:$0xff]
      %v374 = vld [vmem:[#allocation2 + $0xd7] sm:$0xff]
      %v375 = vld [vmem:[#allocation2 + $0xff] sm:$0xff]
      %v376 = vld [vmem:[#allocation2 + $0x107] sm:$0xff]
      %v377 = vld [vmem:[#allocation2 + $0x12f] sm:$0xff]
      %v378 = vld [vmem:[#allocation2 + $0x137] sm:$0xff]
      %v379 = vld [vmem:[#allocation2 + $0x15f] sm:$0xff]
      %v380 = vld [vmem:[#allocation2 + $0x167] sm:$0xff]
      %v381 = vld [vmem:[%s2] sm:$0xff]
      %v382 = vld [vmem:[#allocation2 + $0x10] sm:$0xff]
      %v383 = vld [vmem:[#allocation2 + $0x18] sm:$0xff]
      %v384 = vld [vmem:[#allocation2 + $0x40] sm:$0xff]
      %v385 = vld [vmem:[#allocation2 + $0x48] sm:$0xff]
      %v386 = vld [vmem:[#allocation2 + $0x70] sm:$0xff]
      %v387 = vld [vmem:[#allocation2 + $0x78] sm:$0xff]
      %v388 = vld [vmem:[#allocation2 + $0xa0] sm:$0xff]
      %v389 = vld [vmem:[#allocation2 + $0xa8] sm:$0xff]
      %v390 = vld [vmem:[#allocation2 + $0xd0] sm:$0xff]
      %v391 = vld [vmem:[#allocation2 + $0xd8] sm:$0xff]
      %v392 = vld [vmem:[#allocation2 + $0x100] sm:$0xff]
      %v393 = vld [vmem:[#allocation2 + $0x108] sm:$0xff]
      %v394 = vld [vmem:[#allocation2 + $0x130] sm:$0xff]
      %v395 = vld [vmem:[#allocation2 + $0x138] sm:$0xff]
      %v396 = vld [vmem:[#allocation2 + $0x160] sm:$0xff]
      %v397 = vld [vmem:[#allocation2 + $0x168] sm:$0xff]
      %s398 = scalar_lea.vmem %s2, 8
      %v399 = vld [vmem:[%s398] sm:$0xff]
      %v401 = vsel %vm323, %v382, 0
      %v404 = vsel %vm323, %v383, 0
      %v407 = vsel %vm323, %v384, 0
      %v410 = vsel %vm323, %v385, 0
      %v413 = vsel %vm323, %v386, 0
      %v416 = vsel %vm323, %v387, 0
      %v419 = vsel %vm323, %v388, 0
      %v422 = vsel %vm323, %v389, 0
      %v425 = vsel %vm323, %v390, 0
      %v428 = vsel %vm323, %v391, 0
      %v431 = vsel %vm323, %v392, 0
      %v434 = vsel %vm323, %v393, 0
      %v437 = vsel %vm323, %v394, 0
      %v440 = vsel %vm323, %v395, 0
      %v443 = vsel %vm323, %v396, 0
      %v446 = vsel %vm323, %v397, 0
      %448 = vmatprep.subr.mxu0 0.0
      %449 = vmatpush1.msra.mxu0 %v399
      %450 = vmatprep.subr.mxu0 0.0
      %451 = vmatpush1.msra.mxu0 0.0
      %452 = vmatprep.subr.mxu0 0.0
      %453 = vmatpush1.msra.mxu0 0.0
      %454 = vmatprep.subr.mxu0 0.0
      %455 = vmatpush1.msra.mxu0 0.0
      %456 = vmatprep.subr.mxu0 0.0
      %457 = vmatpush1.msra.mxu0 0.0
      %458 = vmatprep.subr.mxu0 0.0
      %459 = vmatpush1.msra.mxu0 0.0
      %460 = vmatprep.subr.mxu0 0.0
      %461 = vmatpush1.msra.mxu0 0.0
      %462 = vmatprep.subr.mxu0 0.0
      %463 = vmatpush1.msra.mxu0 0.0
      %464 = vmatprep.subr.mxu0 0.0
      %465 = vmatpush1.msra.mxu0 0.0
      %466 = vmatprep.subr.mxu0 0.0
      %467 = vmatpush1.msra.mxu0 0.0
      %468 = vmatprep.subr.mxu0 0.0
      %469 = vmatpush1.msra.mxu0 0.0
      %470 = vmatprep.subr.mxu0 0.0
      %471 = vmatpush1.msra.mxu0 0.0
      %472 = vmatprep.subr.mxu0 0.0
      %473 = vmatpush1.msra.mxu0 0.0
      %474 = vmatprep.subr.mxu0 0.0
      %475 = vmatpush1.msra.mxu0 0.0
      %476 = vmatprep.subr.mxu0 0.0
      %477 = vmatpush1.msra.mxu0 0.0
      %478 = vmatprep.subr.mxu0 0.0
      %479 = vmatpush1.msra.mxu0 0.0
      %480 = vmatprep.subr.mxu0 0.0
      %481 = vmatpush1.msra.mxu0 0.0
      %482 = vmatprep.subr.mxu0 0.0
      %483 = vmatpush1.msra.mxu0 0.0
      %484 = vmatprep.subr.mxu0 0.0
      %485 = vmatpush1.msra.mxu0 0.0
      %486 = vmatprep.subr.mxu0 0.0
      %487 = vmatpush1.msra.mxu0 0.0
      %488 = vmatprep.subr.mxu0 0.0
      %489 = vmatpush1.msra.mxu0 0.0
      %490 = vmatprep.subr.mxu0 0.0
      %491 = vmatpush1.msra.mxu0 0.0
      %492 = vmatprep.subr.mxu0 0.0
      %493 = vmatpush1.msra.mxu0 0.0
      %494 = vmatprep.subr.mxu0 0.0
      %495 = vmatpush1.msra.mxu0 0.0
      %496 = vmatprep.subr.mxu0 0.0
      %497 = vmatpush1.msra.mxu0 0.0
      %498 = vmatprep.subr.mxu0 0.0
      %499 = vmatpush1.msra.mxu0 0.0
      %500 = vmatprep.subr.mxu0 0.0
      %501 = vmatpush1.msra.mxu0 0.0
      %502 = vmatprep.subr.mxu0 0.0
      %503 = vmatpush1.msra.mxu0 0.0
      %504 = vmatprep.subr.mxu0 0.0
      %505 = vmatpush1.msra.mxu0 0.0
      %506 = vmatprep.subr.mxu0 0.0
      %507 = vmatpush1.msra.mxu0 0.0
      %508 = vmatprep.subr.mxu0 0.0
      %509 = vmatpush1.msra.mxu0 0.0
      %510 = vmatprep.subr.mxu0 0.0
      %511 = vmatpush1.msra.mxu0 0.0
      %512 = vmatprep.mubr.f32.mxu0 0.0
      %513 = vmatmul.mubr.f32.gmra.mrb[0].mxu0 %v401
      %v514 = vpop.f32.mrb[0].mxu0
      %v515 = vadd.f32 0.0, %v514
      %v516 = vpop.f32.mrb[0].mxu0
      %517 = vmatprep.mubr.f32.mxu0 0.0
      %518 = vmatmul.mubr.f32.gmra.mrb[0].mxu0 %v404
      %v519 = vpop.f32.mrb[0].mxu0
      %v520 = vadd.f32 0.0, %v519
      %v521 = vpop.f32.mrb[0].mxu0
      %522 = vmatprep.mubr.f32.mxu0 0.0
      %523 = vmatmul.mubr.f32.gmra.mrb[0].mxu0 %v407
      %v524 = vpop.f32.mrb[0].mxu0
      %v525 = vadd.f32 0.0, %v524
      %v526 = vpop.f32.mrb[0].mxu0
      %527 = vmatprep.mubr.f32.mxu0 0.0
      %528 = vmatmul.mubr.f32.gmra.mrb[0].mxu0 %v410
      %v529 = vpop.f32.mrb[0].mxu0
      %v530 = vadd.f32 0.0, %v529
      %v531 = vpop.f32.mrb[0].mxu0
      %532 = vmatprep.mubr.f32.mxu0 0.0
      %533 = vmatmul.mubr.f32.gmra.mrb[0].mxu0 %v413
      %v534 = vpop.f32.mrb[0].mxu0
      %v535 = vadd.f32 0.0, %v534
      %v536 = vpop.f32.mrb[0].mxu0
      %537 = vmatprep.mubr.f32.mxu0 0.0
      %538 = vmatmul.mubr.f32.gmra.mrb[0].mxu0 %v416
      %v539 = vpop.f32.mrb[0].mxu0
      %v540 = vadd.f32 0.0, %v539
      %v541 = vpop.f32.mrb[0].mxu0
      %542 = vmatprep.mubr.f32.mxu0 0.0
      %543 = vmatmul.mubr.f32.gmra.mrb[0].mxu0 %v419
      %v544 = vpop.f32.mrb[0].mxu0
      %v545 = vadd.f32 0.0, %v544
      %v546 = vpop.f32.mrb[0].mxu0
      %547 = vmatprep.mubr.f32.mxu0 0.0
      %548 = vmatmul.mubr.f32.gmra.mrb[0].mxu0 %v422
      %v549 = vpop.f32.mrb[0].mxu0
      %v550 = vadd.f32 0.0, %v549
      %v551 = vpop.f32.mrb[0].mxu0
      %552 = vmatprep.mubr.f32.mxu0 0.0
      %553 = vmatmul.mubr.f32.gmra.mrb[0].mxu0 %v425
      %v554 = vpop.f32.mrb[0].mxu0
      %v555 = vadd.f32 0.0, %v554
      %v556 = vpop.f32.mrb[0].mxu0
      %557 = vmatprep.mubr.f32.mxu0 0.0
      %558 = vmatmul.mubr.f32.gmra.mrb[0].mxu0 %v428
      %v559 = vpop.f32.mrb[0].mxu0
      %v560 = vadd.f32 0.0, %v559
      %v561 = vpop.f32.mrb[0].mxu0
      %562 = vmatprep.mubr.f32.mxu0 0.0
      %563 = vmatmul.mubr.f32.gmra.mrb[0].mxu0 %v431
      %v564 = vpop.f32.mrb[0].mxu0
      %v565 = vadd.f32 0.0, %v564
      %v566 = vpop.f32.mrb[0].mxu0
      %567 = vmatprep.mubr.f32.mxu0 0.0
      %568 = vmatmul.mubr.f32.gmra.mrb[0].mxu0 %v434
      %v569 = vpop.f32.mrb[0].mxu0
      %v570 = vadd.f32 0.0, %v569
      %v571 = vpop.f32.mrb[0].mxu0
      %572 = vmatprep.mubr.f32.mxu0 0.0
      %573 = vmatmul.mubr.f32.gmra.mrb[0].mxu0 %v437
      %v574 = vpop.f32.mrb[0].mxu0
      %v575 = vadd.f32 0.0, %v574
      %v576 = vpop.f32.mrb[0].mxu0
      %577 = vmatprep.mubr.f32.mxu0 0.0
      %578 = vmatmul.mubr.f32.gmra.mrb[0].mxu0 %v440
      %v579 = vpop.f32.mrb[0].mxu0
      %v580 = vadd.f32 0.0, %v579
      %v581 = vpop.f32.mrb[0].mxu0
      %582 = vmatprep.mubr.f32.mxu0 0.0
      %583 = vmatmul.mubr.f32.gmra.mrb[0].mxu0 %v443
      %v584 = vpop.f32.mrb[0].mxu0
      %v585 = vadd.f32 0.0, %v584
      %v586 = vpop.f32.mrb[0].mxu0
      %587 = vmatprep.mubr.f32.mxu0 0.0
      %588 = vmatmul.mubr.f32.gmra.mrb[0].mxu0 %v446
      %v589 = vpop.f32.mrb[0].mxu0
      %v590 = vadd.f32 0.0, %v589
      %v591 = vpop.f32.mrb[0].mxu0
      %592 = vdwg.mxu0
      %v594 = vsel %vm323, %v365, 0
      %v597 = vsel %vm323, %v366, 0
      %v600 = vsel %vm323, %v367, 0
      %v603 = vsel %vm323, %v368, 0
      %v606 = vsel %vm323, %v369, 0
      %v609 = vsel %vm323, %v370, 0
      %v612 = vsel %vm323, %v371, 0
      %v615 = vsel %vm323, %v372, 0
      %v618 = vsel %vm323, %v373, 0
      %v621 = vsel %vm323, %v374, 0
      %v624 = vsel %vm323, %v375, 0
      %v627 = vsel %vm323, %v376, 0
      %v630 = vsel %vm323, %v377, 0
      %v633 = vsel %vm323, %v378, 0
      %v636 = vsel %vm323, %v379, 0
      %v639 = vsel %vm323, %v380, 0
      %641 = vmatprep.subr.mxu0 0.0
      %642 = vmatpush1.msra.mxu0 %v381
      %643 = vmatprep.subr.mxu0 0.0
      %644 = vmatpush1.msra.mxu0 0.0
      %645 = vmatprep.subr.mxu0 0.0
      %646 = vmatpush1.msra.mxu0 0.0
      %647 = vmatprep.subr.mxu0 0.0
      %648 = vmatpush1.msra.mxu0 0.0
      %649 = vmatprep.subr.mxu0 0.0
      %650 = vmatpush1.msra.mxu0 0.0
      %651 = vmatprep.subr.mxu0 0.0
      %652 = vmatpush1.msra.mxu0 0.0
      %653 = vmatprep.subr.mxu0 0.0
      %654 = vmatpush1.msra.mxu0 0.0
      %655 = vmatprep.subr.mxu0 0.0
      %656 = vmatpush1.msra.mxu0 0.0
      %657 = vmatprep.subr.mxu0 0.0
      %658 = vmatpush1.msra.mxu0 0.0
      %659 = vmatprep.subr.mxu0 0.0
      %660 = vmatpush1.msra.mxu0 0.0
      %661 = vmatprep.subr.mxu0 0.0
      %662 = vmatpush1.msra.mxu0 0.0
      %663 = vmatprep.subr.mxu0 0.0
      %664 = vmatpush1.msra.mxu0 0.0
      %665 = vmatprep.subr.mxu0 0.0
      %666 = vmatpush1.msra.mxu0 0.0
      %667 = vmatprep.subr.mxu0 0.0
      %668 = vmatpush1.msra.mxu0 0.0
      %669 = vmatprep.subr.mxu0 0.0
      %670 = vmatpush1.msra.mxu0 0.0
      %671 = vmatprep.subr.mxu0 0.0
      %672 = vmatpush1.msra.mxu0 0.0
      %673 = vmatprep.subr.mxu0 0.0
      %674 = vmatpush1.msra.mxu0 0.0
      %675 = vmatprep.subr.mxu0 0.0
      %676 = vmatpush1.msra.mxu0 0.0
      %677 = vmatprep.subr.mxu0 0.0
      %678 = vmatpush1.msra.mxu0 0.0
      %679 = vmatprep.subr.mxu0 0.0
      %680 = vmatpush1.msra.mxu0 0.0
      %681 = vmatprep.subr.mxu0 0.0
      %682 = vmatpush1.msra.mxu0 0.0
      %683 = vmatprep.subr.mxu0 0.0
      %684 = vmatpush1.msra.mxu0 0.0
      %685 = vmatprep.subr.mxu0 0.0
      %686 = vmatpush1.msra.mxu0 0.0
      %687 = vmatprep.subr.mxu0 0.0
      %688 = vmatpush1.msra.mxu0 0.0
      %689 = vmatprep.subr.mxu0 0.0
      %690 = vmatpush1.msra.mxu0 0.0
      %691 = vmatprep.subr.mxu0 0.0
      %692 = vmatpush1.msra.mxu0 0.0
      %693 = vmatprep.subr.mxu0 0.0
      %694 = vmatpush1.msra.mxu0 0.0
      %695 = vmatprep.subr.mxu0 0.0
      %696 = vmatpush1.msra.mxu0 0.0
      %697 = vmatprep.subr.mxu0 0.0
      %698 = vmatpush1.msra.mxu0 0.0
      %699 = vmatprep.subr.mxu0 0.0
      %700 = vmatpush1.msra.mxu0 0.0
      %701 = vmatprep.subr.mxu0 0.0
      %702 = vmatpush1.msra.mxu0 0.0
      %703 = vmatprep.subr.mxu0 0.0
      %704 = vmatpush1.msra.mxu0 0.0
      %705 = vmatprep.mubr.f32.mxu0 0.0
      %706 = vmatmul.mubr.f32.gmra.mrb[0].mxu0 %v594
      %v707 = vpop.f32.mrb[0].mxu0
      %v708 = vadd.f32 %v515, %v707
      %v709 = vpop.f32.mrb[0].mxu0
      %710 = vmatprep.mubr.f32.mxu0 0.0
      %711 = vmatmul.mubr.f32.gmra.mrb[0].mxu0 %v597
      %v712 = vpop.f32.mrb[0].mxu0
      %v713 = vadd.f32 %v520, %v712
      %v714 = vpop.f32.mrb[0].mxu0
      %715 = vmatprep.mubr.f32.mxu0 0.0
      %716 = vmatmul.mubr.f32.gmra.mrb[0].mxu0 %v600
      %v717 = vpop.f32.mrb[0].mxu0
      %v718 = vadd.f32 %v525, %v717
      %v719 = vpop.f32.mrb[0].mxu0
      %720 = vmatprep.mubr.f32.mxu0 0.0
      %721 = vmatmul.mubr.f32.gmra.mrb[0].mxu0 %v603
      %v722 = vpop.f32.mrb[0].mxu0
      %v723 = vadd.f32 %v530, %v722
      %v724 = vpop.f32.mrb[0].mxu0
      %725 = vmatprep.mubr.f32.mxu0 0.0
      %726 = vmatmul.mubr.f32.gmra.mrb[0].mxu0 %v606
      %v727 = vpop.f32.mrb[0].mxu0
      %v728 = vadd.f32 %v535, %v727
      %v729 = vpop.f32.mrb[0].mxu0
      %730 = vmatprep.mubr.f32.mxu0 0.0
      %731 = vmatmul.mubr.f32.gmra.mrb[0].mxu0 %v609
      %v732 = vpop.f32.mrb[0].mxu0
      %v733 = vadd.f32 %v540, %v732
      %v734 = vpop.f32.mrb[0].mxu0
      %735 = vmatprep.mubr.f32.mxu0 0.0
      %736 = vmatmul.mubr.f32.gmra.mrb[0].mxu0 %v612
      %v737 = vpop.f32.mrb[0].mxu0
      %v738 = vadd.f32 %v545, %v737
      %v739 = vpop.f32.mrb[0].mxu0
      %740 = vmatprep.mubr.f32.mxu0 0.0
      %741 = vmatmul.mubr.f32.gmra.mrb[0].mxu0 %v615
      %v742 = vpop.f32.mrb[0].mxu0
      %v743 = vadd.f32 %v550, %v742
      %v744 = vpop.f32.mrb[0].mxu0
      %745 = vmatprep.mubr.f32.mxu0 0.0
      %746 = vmatmul.mubr.f32.gmra.mrb[0].mxu0 %v618
      %v747 = vpop.f32.mrb[0].mxu0
      %v748 = vadd.f32 %v555, %v747
      %v749 = vpop.f32.mrb[0].mxu0
      %750 = vmatprep.mubr.f32.mxu0 0.0
      %751 = vmatmul.mubr.f32.gmra.mrb[0].mxu0 %v621
      %v752 = vpop.f32.mrb[0].mxu0
      %v753 = vadd.f32 %v560, %v752
      %v754 = vpop.f32.mrb[0].mxu0
      %755 = vmatprep.mubr.f32.mxu0 0.0
      %756 = vmatmul.mubr.f32.gmra.mrb[0].mxu0 %v624
      %v757 = vpop.f32.mrb[0].mxu0
      %v758 = vadd.f32 %v565, %v757
      %v759 = vpop.f32.mrb[0].mxu0
      %760 = vmatprep.mubr.f32.mxu0 0.0
      %761 = vmatmul.mubr.f32.gmra.mrb[0].mxu0 %v627
      %v762 = vpop.f32.mrb[0].mxu0
      %v763 = vadd.f32 %v570, %v762
      %v764 = vpop.f32.mrb[0].mxu0
      %765 = vmatprep.mubr.f32.mxu0 0.0
      %766 = vmatmul.mubr.f32.gmra.mrb[0].mxu0 %v630
      %v767 = vpop.f32.mrb[0].mxu0
      %v768 = vadd.f32 %v575, %v767
      %v769 = vpop.f32.mrb[0].mxu0
      %770 = vmatprep.mubr.f32.mxu0 0.0
      %771 = vmatmul.mubr.f32.gmra.mrb[0].mxu0 %v633
      %v772 = vpop.f32.mrb[0].mxu0
      %v773 = vadd.f32 %v580, %v772
      %v774 = vpop.f32.mrb[0].mxu0
      %775 = vmatprep.mubr.f32.mxu0 0.0
      %776 = vmatmul.mubr.f32.gmra.mrb[0].mxu0 %v636
      %v777 = vpop.f32.mrb[0].mxu0
      %v778 = vadd.f32 %v585, %v777
      %v779 = vpop.f32.mrb[0].mxu0
      %780 = vmatprep.mubr.f32.mxu0 0.0
      %781 = vmatmul.mubr.f32.gmra.mrb[0].mxu0 %v639
      %v782 = vpop.f32.mrb[0].mxu0
      %v783 = vadd.f32 %v590, %v782
      %v784 = vpop.f32.mrb[0].mxu0
      %785 = vdwg.mxu0
      %v786 = vld [vmem:[#allocation2 + $0x11] sm:$0xff]
      %v787 = vld [vmem:[#allocation2 + $0x19] sm:$0xff]
      %v788 = vld [vmem:[#allocation2 + $0x41] sm:$0xff]
      %v789 = vld [vmem:[#allocation2 + $0x49] sm:$0xff]
      %v790 = vld [vmem:[#allocation2 + $0x71] sm:$0xff]
      %v791 = vld [vmem:[#allocation2 + $0x79] sm:$0xff]
      %v792 = vld [vmem:[#allocation2 + $0xa1] sm:$0xff]
      %v793 = vld [vmem:[#allocation2 + $0xa9] sm:$0xff]
      %v794 = vld [vmem:[#allocation2 + $0xd1] sm:$0xff]
      %v795 = vld [vmem:[#allocation2 + $0xd9] sm:$0xff]
      %v796 = vld [vmem:[#allocation2 + $0x101] sm:$0xff]
      %v797 = vld [vmem:[#allocation2 + $0x109] sm:$0xff]
      %v798 = vld [vmem:[#allocation2 + $0x131] sm:$0xff]
      %v799 = vld [vmem:[#allocation2 + $0x139] sm:$0xff]
      %v800 = vld [vmem:[#allocation2 + $0x161] sm:$0xff]
      %v801 = vld [vmem:[#allocation2 + $0x169] sm:$0xff]
      %s802 = scalar_lea.vmem %s2, 16
      %v803 = vld [vmem:[%s802] sm:$0xff]
      %v805 = vsel %vm323, %v786, 0
      %v808 = vsel %vm323, %v787, 0
      %v811 = vsel %vm323, %v788, 0
      %v814 = vsel %vm323, %v789, 0
      %v817 = vsel %vm323, %v790, 0
      %v820 = vsel %vm323, %v791, 0
      %v823 = vsel %vm323, %v792, 0
      %v826 = vsel %vm323, %v793, 0
      %v829 = vsel %vm323, %v794, 0
      %v832 = vsel %vm323, %v795, 0
      %v835 = vsel %vm323, %v796, 0
      %v838 = vsel %vm323, %v797, 0
      %v841 = vsel %vm323, %v798, 0
      %v844 = vsel %vm323, %v799, 0
      %v847 = vsel %vm323, %v800, 0
      %v850 = vsel %vm323, %v801, 0
      %852 = vmatprep.subr.mxu0 0.0
      %853 = vmatpush1.msra.mxu0 %v803
      %854 = vmatprep.subr.mxu0 0.0
      %855 = vmatpush1.msra.mxu0 0.0
      %856 = vmatprep.subr.mxu0 0.0
      %857 = vmatpush1.msra.mxu0 0.0
      %858 = vmatprep.subr.mxu0 0.0
      %859 = vmatpush1.msra.mxu0 0.0
      %860 = vmatprep.subr.mxu0 0.0
      %861 = vmatpush1.msra.mxu0 0.0
      %862 = vmatprep.subr.mxu0 0.0
      %863 = vmatpush1.msra.mxu0 0.0
      %864 = vmatprep.subr.mxu0 0.0
      %865 = vmatpush1.msra.mxu0 0.0
      %866 = vmatprep.subr.mxu0 0.0
      %867 = vmatpush1.msra.mxu0 0.0
      %868 = vmatprep.subr.mxu0 0.0
      %869 = vmatpush1.msra.mxu0 0.0
      %870 = vmatprep.subr.mxu0 0.0
      %871 = vmatpush1.msra.mxu0 0.0
      %872 = vmatprep.subr.mxu0 0.0
      %873 = vmatpush1.msra.mxu0 0.0
      %874 = vmatprep.subr.mxu0 0.0
      %875 = vmatpush1.msra.mxu0 0.0
      %876 = vmatprep.subr.mxu0 0.0
      %877 = vmatpush1.msra.mxu0 0.0
      %878 = vmatprep.subr.mxu0 0.0
      %879 = vmatpush1.msra.mxu0 0.0
      %880 = vmatprep.subr.mxu0 0.0
      %881 = vmatpush1.msra.mxu0 0.0
      %882 = vmatprep.subr.mxu0 0.0
      %883 = vmatpush1.msra.mxu0 0.0
      %884 = vmatprep.subr.mxu0 0.0
      %885 = vmatpush1.msra.mxu0 0.0
      %886 = vmatprep.subr.mxu0 0.0
      %887 = vmatpush1.msra.mxu0 0.0
      %888 = vmatprep.subr.mxu0 0.0
      %889 = vmatpush1.msra.mxu0 0.0
      %890 = vmatprep.subr.mxu0 0.0
      %891 = vmatpush1.msra.mxu0 0.0
      %892 = vmatprep.subr.mxu0 0.0
      %893 = vmatpush1.msra.mxu0 0.0
      %894 = vmatprep.subr.mxu0 0.0
      %895 = vmatpush1.msra.mxu0 0.0
      %896 = vmatprep.subr.mxu0 0.0
      %897 = vmatpush1.msra.mxu0 0.0
      %898 = vmatprep.subr.mxu0 0.0
      %899 = vmatpush1.msra.mxu0 0.0
      %900 = vmatprep.subr.mxu0 0.0
      %901 = vmatpush1.msra.mxu0 0.0
      %902 = vmatprep.subr.mxu0 0.0
      %903 = vmatpush1.msra.mxu0 0.0
      %904 = vmatprep.subr.mxu0 0.0
      %905 = vmatpush1.msra.mxu0 0.0
      %906 = vmatprep.subr.mxu0 0.0
      %907 = vmatpush1.msra.mxu0 0.0
      %908 = vmatprep.subr.mxu0 0.0
      %909 = vmatpush1.msra.mxu0 0.0
      %910 = vmatprep.subr.mxu0 0.0
      %911 = vmatpush1.msra.mxu0 0.0
      %912 = vmatprep.subr.mxu0 0.0
      %913 = vmatpush1.msra.mxu0 0.0
      %914 = vmatprep.subr.mxu0 0.0
      %915 = vmatpush1.msra.mxu0 0.0
      %916 = vmatprep.mubr.f32.mxu0 0.0
      %917 = vmatmul.mubr.f32.gmra.mrb[0].mxu0 %v805
      %v918 = vpop.f32.mrb[0].mxu0
      %v919 = vadd.f32 0.0, %v918
      %v920 = vpop.f32.mrb[0].mxu0
      %921 = vmatprep.mubr.f32.mxu0 0.0
      %922 = vmatmul.mubr.f32.gmra.mrb[0].mxu0 %v808
      %v923 = vpop.f32.mrb[0].mxu0
      %v924 = vadd.f32 0.0, %v923
      %v925 = vpop.f32.mrb[0].mxu0
      %926 = vmatprep.mubr.f32.mxu0 0.0
      %927 = vmatmul.mubr.f32.gmra.mrb[0].mxu0 %v811
      %v928 = vpop.f32.mrb[0].mxu0
      %v929 = vadd.f32 0.0, %v928
      %v930 = vpop.f32.mrb[0].mxu0
      %931 = vmatprep.mubr.f32.mxu0 0.0
      %932 = vmatmul.mubr.f32.gmra.mrb[0].mxu0 %v814
      %v933 = vpop.f32.mrb[0].mxu0
      %v934 = vadd.f32 0.0, %v933
      %v935 = vpop.f32.mrb[0].mxu0
      %936 = vmatprep.mubr.f32.mxu0 0.0
      %937 = vmatmul.mubr.f32.gmra.mrb[0].mxu0 %v817
      %v938 = vpop.f32.mrb[0].mxu0
      %v939 = vadd.f32 0.0, %v938
      %v940 = vpop.f32.mrb[0].mxu0
      %941 = vmatprep.mubr.f32.mxu0 0.0
      %942 = vmatmul.mubr.f32.gmra.mrb[0].mxu0 %v820
      %v943 = vpop.f32.mrb[0].mxu0
      %v944 = vadd.f32 0.0, %v943
      %v945 = vpop.f32.mrb[0].mxu0
      %946 = vmatprep.mubr.f32.mxu0 0.0
      %947 = vmatmul.mubr.f32.gmra.mrb[0].mxu0 %v823
      %v948 = vpop.f32.mrb[0].mxu0
      %v949 = vadd.f32 0.0, %v948
      %v950 = vpop.f32.mrb[0].mxu0
      %951 = vmatprep.mubr.f32.mxu0 0.0
      %952 = vmatmul.mubr.f32.gmra.mrb[0].mxu0 %v826
      %v953 = vpop.f32.mrb[0].mxu0
      %v954 = vadd.f32 0.0, %v953
      %v955 = vpop.f32.mrb[0].mxu0
      %956 = vmatprep.mubr.f32.mxu0 0.0
      %957 = vmatmul.mubr.f32.gmra.mrb[0].mxu0 %v829
      %v958 = vpop.f32.mrb[0].mxu0
      %v959 = vadd.f32 0.0, %v958
      %v960 = vpop.f32.mrb[0].mxu0
      %961 = vmatprep.mubr.f32.mxu0 0.0
      %962 = vmatmul.mubr.f32.gmra.mrb[0].mxu0 %v832
      %v963 = vpop.f32.mrb[0].mxu0
      %v964 = vadd.f32 0.0, %v963
      %v965 = vpop.f32.mrb[0].mxu0
      %966 = vmatprep.mubr.f32.mxu0 0.0
      %967 = vmatmul.mubr.f32.gmra.mrb[0].mxu0 %v835
      %v968 = vpop.f32.mrb[0].mxu0
      %v969 = vadd.f32 0.0, %v968
      %v970 = vpop.f32.mrb[0].mxu0
      %971 = vmatprep.mubr.f32.mxu0 0.0
      %972 = vmatmul.mubr.f32.gmra.mrb[0].mxu0 %v838
      %v973 = vpop.f32.mrb[0].mxu0
      %v974 = vadd.f32 0.0, %v973
      %v975 = vpop.f32.mrb[0].mxu0
      %976 = vmatprep.mubr.f32.mxu0 0.0
      %977 = vmatmul.mubr.f32.gmra.mrb[0].mxu0 %v841
      %v978 = vpop.f32.mrb[0].mxu0
      %v979 = vadd.f32 0.0, %v978
      %v980 = vpop.f32.mrb[0].mxu0
      %981 = vmatprep.mubr.f32.mxu0 0.0
      %982 = vmatmul.mubr.f32.gmra.mrb[0].mxu0 %v844
      %v983 = vpop.f32.mrb[0].mxu0
      %v984 = vadd.f32 0.0, %v983
      %v985 = vpop.f32.mrb[0].mxu0
      %986 = vmatprep.mubr.f32.mxu0 0.0
      %987 = vmatmul.mubr.f32.gmra.mrb[0].mxu0 %v847
      %v988 = vpop.f32.mrb[0].mxu0
      %v989 = vadd.f32 0.0, %v988
      %v990 = vpop.f32.mrb[0].mxu0
      %991 = vmatprep.mubr.f32.mxu0 0.0
      %992 = vmatmul.mubr.f32.gmra.mrb[0].mxu0 %v850
      %v993 = vpop.f32.mrb[0].mxu0
      %v994 = vadd.f32 0.0, %v993
      %v995 = vpop.f32.mrb[0].mxu0
      %996 = vdwg.mxu0
      %v997 = vadd.f32 %v708, %v919
      %v998 = vadd.f32 %v713, %v924
      %v999 = vadd.f32 %v718, %v929
      %v1000 = vadd.f32 %v723, %v934
      %v1001 = vadd.f32 %v728, %v939
      %v1002 = vadd.f32 %v733, %v944
      %v1003 = vadd.f32 %v738, %v949
      %v1004 = vadd.f32 %v743, %v954
      %v1005 = vadd.f32 %v748, %v959
      %v1006 = vadd.f32 %v753, %v964
      %v1007 = vadd.f32 %v758, %v969
      %v1008 = vadd.f32 %v763, %v974
      %v1009 = vadd.f32 %v768, %v979
      %v1010 = vadd.f32 %v773, %v984
      %v1011 = vadd.f32 %v778, %v989
      %v1012 = vadd.f32 %v783, %v994
      %v1013 = vld [vmem:[%s342 + $0xf] sm:$0xff]
      %v1014 = vld [vmem:[%s342 + $0x17] sm:$0xff]
      %v1015 = vld [vmem:[%s342 + $0x3f] sm:$0xff]
      %v1016 = vld [vmem:[%s342 + $0x47] sm:$0xff]
      %v1017 = vld [vmem:[%s342 + $0x6f] sm:$0xff]
      %v1018 = vld [vmem:[%s342 + $0x77] sm:$0xff]
      %v1019 = vld [vmem:[%s342 + $0x9f] sm:$0xff]
      %v1020 = vld [vmem:[%s342 + $0xa7] sm:$0xff]
      %v1021 = vld [vmem:[%s342 + $0xcf] sm:$0xff]
      %v1022 = vld [vmem:[%s342 + $0xd7] sm:$0xff]
      %v1023 = vld [vmem:[%s342 + $0xff] sm:$0xff]
      %v1024 = vld [vmem:[%s342 + $0x107] sm:$0xff]
      %v1025 = vld [vmem:[%s342 + $0x12f] sm:$0xff]
      %v1026 = vld [vmem:[%s342 + $0x137] sm:$0xff]
      %v1027 = vld [vmem:[%s342 + $0x15f] sm:$0xff]
      %v1028 = vld [vmem:[%s342 + $0x167] sm:$0xff]
      %s1029 = scalar_lea.vmem %s2, 24
      %v1030 = vld [vmem:[%s1029] sm:$0xff]
      %v1032 = vsel %vm323, %v1013, 0
      %v1035 = vsel %vm323, %v1014, 0
      %v1038 = vsel %vm323, %v1015, 0
      %v1041 = vsel %vm323, %v1016, 0
      %v1044 = vsel %vm323, %v1017, 0
      %v1047 = vsel %vm323, %v1018, 0
      %v1050 = vsel %vm323, %v1019, 0
      %v1053 = vsel %vm323, %v1020, 0
      %v1056 = vsel %vm323, %v1021, 0
      %v1059 = vsel %vm323, %v1022, 0
      %v1062 = vsel %vm323, %v1023, 0
      %v1065 = vsel %vm323, %v1024, 0
      %v1068 = vsel %vm323, %v1025, 0
      %v1071 = vsel %vm323, %v1026, 0
      %v1074 = vsel %vm323, %v1027, 0
      %v1077 = vsel %vm323, %v1028, 0
      %1079 = vmatprep.subr.mxu0 0.0
      %1080 = vmatpush1.msra.mxu0 %v1030
      %1081 = vmatprep.subr.mxu0 0.0
      %1082 = vmatpush1.msra.mxu0 0.0
      %1083 = vmatprep.subr.mxu0 0.0
      %1084 = vmatpush1.msra.mxu0 0.0
      %1085 = vmatprep.subr.mxu0 0.0
      %1086 = vmatpush1.msra.mxu0 0.0
      %1087 = vmatprep.subr.mxu0 0.0
      %1088 = vmatpush1.msra.mxu0 0.0
      %1089 = vmatprep.subr.mxu0 0.0
      %1090 = vmatpush1.msra.mxu0 0.0
      %1091 = vmatprep.subr.mxu0 0.0
      %1092 = vmatpush1.msra.mxu0 0.0
      %1093 = vmatprep.subr.mxu0 0.0
      %1094 = vmatpush1.msra.mxu0 0.0
      %1095 = vmatprep.subr.mxu0 0.0
      %1096 = vmatpush1.msra.mxu0 0.0
      %1097 = vmatprep.subr.mxu0 0.0
      %1098 = vmatpush1.msra.mxu0 0.0
      %1099 = vmatprep.subr.mxu0 0.0
      %1100 = vmatpush1.msra.mxu0 0.0
      %1101 = vmatprep.subr.mxu0 0.0
      %1102 = vmatpush1.msra.mxu0 0.0
      %1103 = vmatprep.subr.mxu0 0.0
      %1104 = vmatpush1.msra.mxu0 0.0
      %1105 = vmatprep.subr.mxu0 0.0
      %1106 = vmatpush1.msra.mxu0 0.0
      %1107 = vmatprep.subr.mxu0 0.0
      %1108 = vmatpush1.msra.mxu0 0.0
      %1109 = vmatprep.subr.mxu0 0.0
      %1110 = vmatpush1.msra.mxu0 0.0
      %1111 = vmatprep.subr.mxu0 0.0
      %1112 = vmatpush1.msra.mxu0 0.0
      %1113 = vmatprep.subr.mxu0 0.0
      %1114 = vmatpush1.msra.mxu0 0.0
      %1115 = vmatprep.subr.mxu0 0.0
      %1116 = vmatpush1.msra.mxu0 0.0
      %1117 = vmatprep.subr.mxu0 0.0
      %1118 = vmatpush1.msra.mxu0 0.0
      %1119 = vmatprep.subr.mxu0 0.0
      %1120 = vmatpush1.msra.mxu0 0.0
      %1121 = vmatprep.subr.mxu0 0.0
      %1122 = vmatpush1.msra.mxu0 0.0
      %1123 = vmatprep.subr.mxu0 0.0
      %1124 = vmatpush1.msra.mxu0 0.0
      %1125 = vmatprep.subr.mxu0 0.0
      %1126 = vmatpush1.msra.mxu0 0.0
      %1127 = vmatprep.subr.mxu0 0.0
      %1128 = vmatpush1.msra.mxu0 0.0
      %1129 = vmatprep.subr.mxu0 0.0
      %1130 = vmatpush1.msra.mxu0 0.0
      %1131 = vmatprep.subr.mxu0 0.0
      %1132 = vmatpush1.msra.mxu0 0.0
      %1133 = vmatprep.subr.mxu0 0.0
      %1134 = vmatpush1.msra.mxu0 0.0
      %1135 = vmatprep.subr.mxu0 0.0
      %1136 = vmatpush1.msra.mxu0 0.0
      %1137 = vmatprep.subr.mxu0 0.0
      %1138 = vmatpush1.msra.mxu0 0.0
      %1139 = vmatprep.subr.mxu0 0.0
      %1140 = vmatpush1.msra.mxu0 0.0
      %1141 = vmatprep.subr.mxu0 0.0
      %1142 = vmatpush1.msra.mxu0 0.0
      %1143 = vmatprep.mubr.f32.mxu0 0.0
      %1144 = vmatmul.mubr.f32.gmra.mrb[0].mxu0 %v1032
      %v1145 = vpop.f32.mrb[0].mxu0
      %v1146 = vadd.f32 0.0, %v1145
      %v1147 = vpop.f32.mrb[0].mxu0
      %1148 = vmatprep.mubr.f32.mxu0 0.0
      %1149 = vmatmul.mubr.f32.gmra.mrb[0].mxu0 %v1035
      %v1150 = vpop.f32.mrb[0].mxu0
      %v1151 = vadd.f32 0.0, %v1150
      %v1152 = vpop.f32.mrb[0].mxu0
      %1153 = vmatprep.mubr.f32.mxu0 0.0
      %1154 = vmatmul.mubr.f32.gmra.mrb[0].mxu0 %v1038
      %v1155 = vpop.f32.mrb[0].mxu0
      %v1156 = vadd.f32 0.0, %v1155
      %v1157 = vpop.f32.mrb[0].mxu0
      %1158 = vmatprep.mubr.f32.mxu0 0.0
      %1159 = vmatmul.mubr.f32.gmra.mrb[0].mxu0 %v1041
      %v1160 = vpop.f32.mrb[0].mxu0
      %v1161 = vadd.f32 0.0, %v1160
      %v1162 = vpop.f32.mrb[0].mxu0
      %1163 = vmatprep.mubr.f32.mxu0 0.0
      %1164 = vmatmul.mubr.f32.gmra.mrb[0].mxu0 %v1044
      %v1165 = vpop.f32.mrb[0].mxu0
      %v1166 = vadd.f32 0.0, %v1165
      %v1167 = vpop.f32.mrb[0].mxu0
      %1168 = vmatprep.mubr.f32.mxu0 0.0
      %1169 = vmatmul.mubr.f32.gmra.mrb[0].mxu0 %v1047
      %v1170 = vpop.f32.mrb[0].mxu0
      %v1171 = vadd.f32 0.0, %v1170
      %v1172 = vpop.f32.mrb[0].mxu0
      %1173 = vmatprep.mubr.f32.mxu0 0.0
      %1174 = vmatmul.mubr.f32.gmra.mrb[0].mxu0 %v1050
      %v1175 = vpop.f32.mrb[0].mxu0
      %v1176 = vadd.f32 0.0, %v1175
      %v1177 = vpop.f32.mrb[0].mxu0
      %1178 = vmatprep.mubr.f32.mxu0 0.0
      %1179 = vmatmul.mubr.f32.gmra.mrb[0].mxu0 %v1053
      %v1180 = vpop.f32.mrb[0].mxu0
      %v1181 = vadd.f32 0.0, %v1180
      %v1182 = vpop.f32.mrb[0].mxu0
      %1183 = vmatprep.mubr.f32.mxu0 0.0
      %1184 = vmatmul.mubr.f32.gmra.mrb[0].mxu0 %v1056
      %v1185 = vpop.f32.mrb[0].mxu0
      %v1186 = vadd.f32 0.0, %v1185
      %v1187 = vpop.f32.mrb[0].mxu0
      %1188 = vmatprep.mubr.f32.mxu0 0.0
      %1189 = vmatmul.mubr.f32.gmra.mrb[0].mxu0 %v1059
      %v1190 = vpop.f32.mrb[0].mxu0
      %v1191 = vadd.f32 0.0, %v1190
      %v1192 = vpop.f32.mrb[0].mxu0
      %1193 = vmatprep.mubr.f32.mxu0 0.0
      %1194 = vmatmul.mubr.f32.gmra.mrb[0].mxu0 %v1062
      %v1195 = vpop.f32.mrb[0].mxu0
      %v1196 = vadd.f32 0.0, %v1195
      %v1197 = vpop.f32.mrb[0].mxu0
      %1198 = vmatprep.mubr.f32.mxu0 0.0
      %1199 = vmatmul.mubr.f32.gmra.mrb[0].mxu0 %v1065
      %v1200 = vpop.f32.mrb[0].mxu0
      %v1201 = vadd.f32 0.0, %v1200
      %v1202 = vpop.f32.mrb[0].mxu0
      %1203 = vmatprep.mubr.f32.mxu0 0.0
      %1204 = vmatmul.mubr.f32.gmra.mrb[0].mxu0 %v1068
      %v1205 = vpop.f32.mrb[0].mxu0
      %v1206 = vadd.f32 0.0, %v1205
      %v1207 = vpop.f32.mrb[0].mxu0
      %1208 = vmatprep.mubr.f32.mxu0 0.0
      %1209 = vmatmul.mubr.f32.gmra.mrb[0].mxu0 %v1071
      %v1210 = vpop.f32.mrb[0].mxu0
      %v1211 = vadd.f32 0.0, %v1210
      %v1212 = vpop.f32.mrb[0].mxu0
      %1213 = vmatprep.mubr.f32.mxu0 0.0
      %1214 = vmatmul.mubr.f32.gmra.mrb[0].mxu0 %v1074
      %v1215 = vpop.f32.mrb[0].mxu0
      %v1216 = vadd.f32 0.0, %v1215
      %v1217 = vpop.f32.mrb[0].mxu0
      %1218 = vmatprep.mubr.f32.mxu0 0.0
      %1219 = vmatmul.mubr.f32.gmra.mrb[0].mxu0 %v1077
      %v1220 = vpop.f32.mrb[0].mxu0
      %v1221 = vadd.f32 0.0, %v1220
      %v1222 = vpop.f32.mrb[0].mxu0
      %1223 = vdwg.mxu0
      %v1224 = vadd.f32 %v997, %v1146
      %v1225 = vadd.f32 %v998, %v1151
      %v1226 = vadd.f32 %v999, %v1156
      %v1227 = vadd.f32 %v1000, %v1161
      %v1228 = vadd.f32 %v1001, %v1166
      %v1229 = vadd.f32 %v1002, %v1171
      %v1230 = vadd.f32 %v1003, %v1176
      %v1231 = vadd.f32 %v1004, %v1181
      %v1232 = vadd.f32 %v1005, %v1186
      %v1233 = vadd.f32 %v1006, %v1191
      %v1234 = vadd.f32 %v1007, %v1196
      %v1235 = vadd.f32 %v1008, %v1201
      %v1236 = vadd.f32 %v1009, %v1206
      %v1237 = vadd.f32 %v1010, %v1211
      %v1238 = vadd.f32 %v1011, %v1216
      %v1239 = vadd.f32 %v1012, %v1221
      %v1240 = vld [vmem:[%s342 + $0x10] sm:$0xff]
      %v1241 = vld [vmem:[%s342 + $0x18] sm:$0xff]
      %v1242 = vld [vmem:[%s342 + $0x40] sm:$0xff]
      %v1243 = vld [vmem:[%s342 + $0x48] sm:$0xff]
      %v1244 = vld [vmem:[%s342 + $0x70] sm:$0xff]
      %v1245 = vld [vmem:[%s342 + $0x78] sm:$0xff]
      %v1246 = vld [vmem:[%s342 + $0xa0] sm:$0xff]
      %v1247 = vld [vmem:[%s342 + $0xa8] sm:$0xff]
      %v1248 = vld [vmem:[%s342 + $0xd0] sm:$0xff]
      %v1249 = vld [vmem:[%s342 + $0xd8] sm:$0xff]
      %v1250 = vld [vmem:[%s342 + $0x100] sm:$0xff]
      %v1251 = vld [vmem:[%s342 + $0x108] sm:$0xff]
      %v1252 = vld [vmem:[%s342 + $0x130] sm:$0xff]
      %v1253 = vld [vmem:[%s342 + $0x138] sm:$0xff]
      %v1254 = vld [vmem:[%s342 + $0x160] sm:$0xff]
      %v1255 = vld [vmem:[%s342 + $0x168] sm:$0xff]
      %s1256 = scalar_lea.vmem %s2, 32
      %v1257 = vld [vmem:[%s1256] sm:$0xff]
      %v1259 = vsel %vm323, %v1240, 0
      %v1262 = vsel %vm323, %v1241, 0
      %v1265 = vsel %vm323, %v1242, 0
      %v1268 = vsel %vm323, %v1243, 0
      %v1271 = vsel %vm323, %v1244, 0
      %v1274 = vsel %vm323, %v1245, 0
      %v1277 = vsel %vm323, %v1246, 0
      %v1280 = vsel %vm323, %v1247, 0
      %v1283 = vsel %vm323, %v1248, 0
      %v1286 = vsel %vm323, %v1249, 0
      %v1289 = vsel %vm323, %v1250, 0
      %v1292 = vsel %vm323, %v1251, 0
      %v1295 = vsel %vm323, %v1252, 0
      %v1298 = vsel %vm323, %v1253, 0
      %v1301 = vsel %vm323, %v1254, 0
      %v1304 = vsel %vm323, %v1255, 0
      %1306 = vmatprep.subr.mxu0 0.0
      %1307 = vmatpush1.msra.mxu0 %v1257
      %1308 = vmatprep.subr.mxu0 0.0
      %1309 = vmatpush1.msra.mxu0 0.0
      %1310 = vmatprep.subr.mxu0 0.0
      %1311 = vmatpush1.msra.mxu0 0.0
      %1312 = vmatprep.subr.mxu0 0.0
      %1313 = vmatpush1.msra.mxu0 0.0
      %1314 = vmatprep.subr.mxu0 0.0
      %1315 = vmatpush1.msra.mxu0 0.0
      %1316 = vmatprep.subr.mxu0 0.0
      %1317 = vmatpush1.msra.mxu0 0.0
      %1318 = vmatprep.subr.mxu0 0.0
      %1319 = vmatpush1.msra.mxu0 0.0
      %1320 = vmatprep.subr.mxu0 0.0
      %1321 = vmatpush1.msra.mxu0 0.0
      %1322 = vmatprep.subr.mxu0 0.0
      %1323 = vmatpush1.msra.mxu0 0.0
      %1324 = vmatprep.subr.mxu0 0.0
      %1325 = vmatpush1.msra.mxu0 0.0
      %1326 = vmatprep.subr.mxu0 0.0
      %1327 = vmatpush1.msra.mxu0 0.0
      %1328 = vmatprep.subr.mxu0 0.0
      %1329 = vmatpush1.msra.mxu0 0.0
      %1330 = vmatprep.subr.mxu0 0.0
      %1331 = vmatpush1.msra.mxu0 0.0
      %1332 = vmatprep.subr.mxu0 0.0
      %1333 = vmatpush1.msra.mxu0 0.0
      %1334 = vmatprep.subr.mxu0 0.0
      %1335 = vmatpush1.msra.mxu0 0.0
      %1336 = vmatprep.subr.mxu0 0.0
      %1337 = vmatpush1.msra.mxu0 0.0
      %1338 = vmatprep.subr.mxu0 0.0
      %1339 = vmatpush1.msra.mxu0 0.0
      %1340 = vmatprep.subr.mxu0 0.0
      %1341 = vmatpush1.msra.mxu0 0.0
      %1342 = vmatprep.subr.mxu0 0.0
      %1343 = vmatpush1.msra.mxu0 0.0
      %1344 = vmatprep.subr.mxu0 0.0
      %1345 = vmatpush1.msra.mxu0 0.0
      %1346 = vmatprep.subr.mxu0 0.0
      %1347 = vmatpush1.msra.mxu0 0.0
      %1348 = vmatprep.subr.mxu0 0.0
      %1349 = vmatpush1.msra.mxu0 0.0
      %1350 = vmatprep.subr.mxu0 0.0
      %1351 = vmatpush1.msra.mxu0 0.0
      %1352 = vmatprep.subr.mxu0 0.0
      %1353 = vmatpush1.msra.mxu0 0.0
      %1354 = vmatprep.subr.mxu0 0.0
      %1355 = vmatpush1.msra.mxu0 0.0
      %1356 = vmatprep.subr.mxu0 0.0
      %1357 = vmatpush1.msra.mxu0 0.0
      %1358 = vmatprep.subr.mxu0 0.0
      %1359 = vmatpush1.msra.mxu0 0.0
      %1360 = vmatprep.subr.mxu0 0.0
      %1361 = vmatpush1.msra.mxu0 0.0
      %1362 = vmatprep.subr.mxu0 0.0
      %1363 = vmatpush1.msra.mxu0 0.0
      %1364 = vmatprep.subr.mxu0 0.0
      %1365 = vmatpush1.msra.mxu0 0.0
      %1366 = vmatprep.subr.mxu0 0.0
      %1367 = vmatpush1.msra.mxu0 0.0
      %1368 = vmatprep.subr.mxu0 0.0
      %1369 = vmatpush1.msra.mxu0 0.0
      %1370 = vmatprep.mubr.f32.mxu0 0.0
      %1371 = vmatmul.mubr.f32.gmra.mrb[0].mxu0 %v1259
      %v1372 = vpop.f32.mrb[0].mxu0
      %v1373 = vadd.f32 0.0, %v1372
      %v1374 = vpop.f32.mrb[0].mxu0
      %1375 = vmatprep.mubr.f32.mxu0 0.0
      %1376 = vmatmul.mubr.f32.gmra.mrb[0].mxu0 %v1262
      %v1377 = vpop.f32.mrb[0].mxu0
      %v1378 = vadd.f32 0.0, %v1377
      %v1379 = vpop.f32.mrb[0].mxu0
      %1380 = vmatprep.mubr.f32.mxu0 0.0
      %1381 = vmatmul.mubr.f32.gmra.mrb[0].mxu0 %v1265
      %v1382 = vpop.f32.mrb[0].mxu0
      %v1383 = vadd.f32 0.0, %v1382
      %v1384 = vpop.f32.mrb[0].mxu0
      %1385 = vmatprep.mubr.f32.mxu0 0.0
      %1386 = vmatmul.mubr.f32.gmra.mrb[0].mxu0 %v1268
      %v1387 = vpop.f32.mrb[0].mxu0
      %v1388 = vadd.f32 0.0, %v1387
      %v1389 = vpop.f32.mrb[0].mxu0
      %1390 = vmatprep.mubr.f32.mxu0 0.0
      %1391 = vmatmul.mubr.f32.gmra.mrb[0].mxu0 %v1271
      %v1392 = vpop.f32.mrb[0].mxu0
      %v1393 = vadd.f32 0.0, %v1392
      %v1394 = vpop.f32.mrb[0].mxu0
      %1395 = vmatprep.mubr.f32.mxu0 0.0
      %1396 = vmatmul.mubr.f32.gmra.mrb[0].mxu0 %v1274
      %v1397 = vpop.f32.mrb[0].mxu0
      %v1398 = vadd.f32 0.0, %v1397
      %v1399 = vpop.f32.mrb[0].mxu0
      %1400 = vmatprep.mubr.f32.mxu0 0.0
      %1401 = vmatmul.mubr.f32.gmra.mrb[0].mxu0 %v1277
      %v1402 = vpop.f32.mrb[0].mxu0
      %v1403 = vadd.f32 0.0, %v1402
      %v1404 = vpop.f32.mrb[0].mxu0
      %1405 = vmatprep.mubr.f32.mxu0 0.0
      %1406 = vmatmul.mubr.f32.gmra.mrb[0].mxu0 %v1280
      %v1407 = vpop.f32.mrb[0].mxu0
      %v1408 = vadd.f32 0.0, %v1407
      %v1409 = vpop.f32.mrb[0].mxu0
      %1410 = vmatprep.mubr.f32.mxu0 0.0
      %1411 = vmatmul.mubr.f32.gmra.mrb[0].mxu0 %v1283
      %v1412 = vpop.f32.mrb[0].mxu0
      %v1413 = vadd.f32 0.0, %v1412
      %v1414 = vpop.f32.mrb[0].mxu0
      %1415 = vmatprep.mubr.f32.mxu0 0.0
      %1416 = vmatmul.mubr.f32.gmra.mrb[0].mxu0 %v1286
      %v1417 = vpop.f32.mrb[0].mxu0
      %v1418 = vadd.f32 0.0, %v1417
      %v1419 = vpop.f32.mrb[0].mxu0
      %1420 = vmatprep.mubr.f32.mxu0 0.0
      %1421 = vmatmul.mubr.f32.gmra.mrb[0].mxu0 %v1289
      %v1422 = vpop.f32.mrb[0].mxu0
      %v1423 = vadd.f32 0.0, %v1422
      %v1424 = vpop.f32.mrb[0].mxu0
      %1425 = vmatprep.mubr.f32.mxu0 0.0
      %1426 = vmatmul.mubr.f32.gmra.mrb[0].mxu0 %v1292
      %v1427 = vpop.f32.mrb[0].mxu0
      %v1428 = vadd.f32 0.0, %v1427
      %v1429 = vpop.f32.mrb[0].mxu0
      %1430 = vmatprep.mubr.f32.mxu0 0.0
      %1431 = vmatmul.mubr.f32.gmra.mrb[0].mxu0 %v1295
      %v1432 = vpop.f32.mrb[0].mxu0
      %v1433 = vadd.f32 0.0, %v1432
      %v1434 = vpop.f32.mrb[0].mxu0
      %1435 = vmatprep.mubr.f32.mxu0 0.0
      %1436 = vmatmul.mubr.f32.gmra.mrb[0].mxu0 %v1298
      %v1437 = vpop.f32.mrb[0].mxu0
      %v1438 = vadd.f32 0.0, %v1437
      %v1439 = vpop.f32.mrb[0].mxu0
      %1440 = vmatprep.mubr.f32.mxu0 0.0
      %1441 = vmatmul.mubr.f32.gmra.mrb[0].mxu0 %v1301
      %v1442 = vpop.f32.mrb[0].mxu0
      %v1443 = vadd.f32 0.0, %v1442
      %v1444 = vpop.f32.mrb[0].mxu0
      %1445 = vmatprep.mubr.f32.mxu0 0.0
      %1446 = vmatmul.mubr.f32.gmra.mrb[0].mxu0 %v1304
      %v1447 = vpop.f32.mrb[0].mxu0
      %v1448 = vadd.f32 0.0, %v1447
      %v1449 = vpop.f32.mrb[0].mxu0
      %1450 = vdwg.mxu0
      %v1451 = vadd.f32 %v1224, %v1373
      %v1452 = vadd.f32 %v1225, %v1378
      %v1453 = vadd.f32 %v1226, %v1383
      %v1454 = vadd.f32 %v1227, %v1388
      %v1455 = vadd.f32 %v1228, %v1393
      %v1456 = vadd.f32 %v1229, %v1398
      %v1457 = vadd.f32 %v1230, %v1403
      %v1458 = vadd.f32 %v1231, %v1408
      %v1459 = vadd.f32 %v1232, %v1413
      %v1460 = vadd.f32 %v1233, %v1418
      %v1461 = vadd.f32 %v1234, %v1423
      %v1462 = vadd.f32 %v1235, %v1428
      %v1463 = vadd.f32 %v1236, %v1433
      %v1464 = vadd.f32 %v1237, %v1438
      %v1465 = vadd.f32 %v1238, %v1443
      %v1466 = vadd.f32 %v1239, %v1448
      %v1467 = vld [vmem:[%s342 + $0x11] sm:$0xff]
      %v1468 = vld [vmem:[%s342 + $0x19] sm:$0xff]
      %v1469 = vld [vmem:[%s342 + $0x41] sm:$0xff]
      %v1470 = vld [vmem:[%s342 + $0x49] sm:$0xff]
      %v1471 = vld [vmem:[%s342 + $0x71] sm:$0xff]
      %v1472 = vld [vmem:[%s342 + $0x79] sm:$0xff]
      %v1473 = vld [vmem:[%s342 + $0xa1] sm:$0xff]
      %v1474 = vld [vmem:[%s342 + $0xa9] sm:$0xff]
      %v1475 = vld [vmem:[%s342 + $0xd1] sm:$0xff]
      %v1476 = vld [vmem:[%s342 + $0xd9] sm:$0xff]
      %v1477 = vld [vmem:[%s342 + $0x101] sm:$0xff]
      %v1478 = vld [vmem:[%s342 + $0x109] sm:$0xff]
      %v1479 = vld [vmem:[%s342 + $0x131] sm:$0xff]
      %v1480 = vld [vmem:[%s342 + $0x139] sm:$0xff]
      %v1481 = vld [vmem:[%s342 + $0x161] sm:$0xff]
      %v1482 = vld [vmem:[%s342 + $0x169] sm:$0xff]
      %s1483 = scalar_lea.vmem %s2, 40
      %v1484 = vld [vmem:[%s1483] sm:$0xff]
      %v1486 = vsel %vm323, %v1467, 0
      %v1489 = vsel %vm323, %v1468, 0
      %v1492 = vsel %vm323, %v1469, 0
      %v1495 = vsel %vm323, %v1470, 0
      %v1498 = vsel %vm323, %v1471, 0
      %v1501 = vsel %vm323, %v1472, 0
      %v1504 = vsel %vm323, %v1473, 0
      %v1507 = vsel %vm323, %v1474, 0
      %v1510 = vsel %vm323, %v1475, 0
      %v1513 = vsel %vm323, %v1476, 0
      %v1516 = vsel %vm323, %v1477, 0
      %v1519 = vsel %vm323, %v1478, 0
      %v1522 = vsel %vm323, %v1479, 0
      %v1525 = vsel %vm323, %v1480, 0
      %v1528 = vsel %vm323, %v1481, 0
      %v1531 = vsel %vm323, %v1482, 0
      %1533 = vmatprep.subr.mxu0 0.0
      %1534 = vmatpush1.msra.mxu0 %v1484
      %1535 = vmatprep.subr.mxu0 0.0
      %1536 = vmatpush1.msra.mxu0 0.0
      %1537 = vmatprep.subr.mxu0 0.0
      %1538 = vmatpush1.msra.mxu0 0.0
      %1539 = vmatprep.subr.mxu0 0.0
      %1540 = vmatpush1.msra.mxu0 0.0
      %1541 = vmatprep.subr.mxu0 0.0
      %1542 = vmatpush1.msra.mxu0 0.0
      %1543 = vmatprep.subr.mxu0 0.0
      %1544 = vmatpush1.msra.mxu0 0.0
      %1545 = vmatprep.subr.mxu0 0.0
      %1546 = vmatpush1.msra.mxu0 0.0
      %1547 = vmatprep.subr.mxu0 0.0
      %1548 = vmatpush1.msra.mxu0 0.0
      %1549 = vmatprep.subr.mxu0 0.0
      %1550 = vmatpush1.msra.mxu0 0.0
      %1551 = vmatprep.subr.mxu0 0.0
      %1552 = vmatpush1.msra.mxu0 0.0
      %1553 = vmatprep.subr.mxu0 0.0
      %1554 = vmatpush1.msra.mxu0 0.0
      %1555 = vmatprep.subr.mxu0 0.0
      %1556 = vmatpush1.msra.mxu0 0.0
      %1557 = vmatprep.subr.mxu0 0.0
      %1558 = vmatpush1.msra.mxu0 0.0
      %1559 = vmatprep.subr.mxu0 0.0
      %1560 = vmatpush1.msra.mxu0 0.0
      %1561 = vmatprep.subr.mxu0 0.0
      %1562 = vmatpush1.msra.mxu0 0.0
      %1563 = vmatprep.subr.mxu0 0.0
      %1564 = vmatpush1.msra.mxu0 0.0
      %1565 = vmatprep.subr.mxu0 0.0
      %1566 = vmatpush1.msra.mxu0 0.0
      %1567 = vmatprep.subr.mxu0 0.0
      %1568 = vmatpush1.msra.mxu0 0.0
      %1569 = vmatprep.subr.mxu0 0.0
      %1570 = vmatpush1.msra.mxu0 0.0
      %1571 = vmatprep.subr.mxu0 0.0
      %1572 = vmatpush1.msra.mxu0 0.0
      %1573 = vmatprep.subr.mxu0 0.0
      %1574 = vmatpush1.msra.mxu0 0.0
      %1575 = vmatprep.subr.mxu0 0.0
      %1576 = vmatpush1.msra.mxu0 0.0
      %1577 = vmatprep.subr.mxu0 0.0
      %1578 = vmatpush1.msra.mxu0 0.0
      %1579 = vmatprep.subr.mxu0 0.0
      %1580 = vmatpush1.msra.mxu0 0.0
      %1581 = vmatprep.subr.mxu0 0.0
      %1582 = vmatpush1.msra.mxu0 0.0
      %1583 = vmatprep.subr.mxu0 0.0
      %1584 = vmatpush1.msra.mxu0 0.0
      %1585 = vmatprep.subr.mxu0 0.0
      %1586 = vmatpush1.msra.mxu0 0.0
      %1587 = vmatprep.subr.mxu0 0.0
      %1588 = vmatpush1.msra.mxu0 0.0
      %1589 = vmatprep.subr.mxu0 0.0
      %1590 = vmatpush1.msra.mxu0 0.0
      %1591 = vmatprep.subr.mxu0 0.0
      %1592 = vmatpush1.msra.mxu0 0.0
      %1593 = vmatprep.subr.mxu0 0.0
      %1594 = vmatpush1.msra.mxu0 0.0
      %1595 = vmatprep.subr.mxu0 0.0
      %1596 = vmatpush1.msra.mxu0 0.0
      %1597 = vmatprep.mubr.f32.mxu0 0.0
      %1598 = vmatmul.mubr.f32.gmra.mrb[0].mxu0 %v1486
      %v1599 = vpop.f32.mrb[0].mxu0
      %v1600 = vadd.f32 0.0, %v1599
      %v1601 = vpop.f32.mrb[0].mxu0
      %1602 = vmatprep.mubr.f32.mxu0 0.0
      %1603 = vmatmul.mubr.f32.gmra.mrb[0].mxu0 %v1489
      %v1604 = vpop.f32.mrb[0].mxu0
      %v1605 = vadd.f32 0.0, %v1604
      %v1606 = vpop.f32.mrb[0].mxu0
      %1607 = vmatprep.mubr.f32.mxu0 0.0
      %1608 = vmatmul.mubr.f32.gmra.mrb[0].mxu0 %v1492
      %v1609 = vpop.f32.mrb[0].mxu0
      %v1610 = vadd.f32 0.0, %v1609
      %v1611 = vpop.f32.mrb[0].mxu0
      %1612 = vmatprep.mubr.f32.mxu0 0.0
      %1613 = vmatmul.mubr.f32.gmra.mrb[0].mxu0 %v1495
      %v1614 = vpop.f32.mrb[0].mxu0
      %v1615 = vadd.f32 0.0, %v1614
      %v1616 = vpop.f32.mrb[0].mxu0
      %1617 = vmatprep.mubr.f32.mxu0 0.0
      %1618 = vmatmul.mubr.f32.gmra.mrb[0].mxu0 %v1498
      %v1619 = vpop.f32.mrb[0].mxu0
      %v1620 = vadd.f32 0.0, %v1619
      %v1621 = vpop.f32.mrb[0].mxu0
      %1622 = vmatprep.mubr.f32.mxu0 0.0
      %1623 = vmatmul.mubr.f32.gmra.mrb[0].mxu0 %v1501
      %v1624 = vpop.f32.mrb[0].mxu0
      %v1625 = vadd.f32 0.0, %v1624
      %v1626 = vpop.f32.mrb[0].mxu0
      %1627 = vmatprep.mubr.f32.mxu0 0.0
      %1628 = vmatmul.mubr.f32.gmra.mrb[0].mxu0 %v1504
      %v1629 = vpop.f32.mrb[0].mxu0
      %v1630 = vadd.f32 0.0, %v1629
      %v1631 = vpop.f32.mrb[0].mxu0
      %1632 = vmatprep.mubr.f32.mxu0 0.0
      %1633 = vmatmul.mubr.f32.gmra.mrb[0].mxu0 %v1507
      %v1634 = vpop.f32.mrb[0].mxu0
      %v1635 = vadd.f32 0.0, %v1634
      %v1636 = vpop.f32.mrb[0].mxu0
      %1637 = vmatprep.mubr.f32.mxu0 0.0
      %1638 = vmatmul.mubr.f32.gmra.mrb[0].mxu0 %v1510
      %v1639 = vpop.f32.mrb[0].mxu0
      %v1640 = vadd.f32 0.0, %v1639
      %v1641 = vpop.f32.mrb[0].mxu0
      %1642 = vmatprep.mubr.f32.mxu0 0.0
      %1643 = vmatmul.mubr.f32.gmra.mrb[0].mxu0 %v1513
      %v1644 = vpop.f32.mrb[0].mxu0
      %v1645 = vadd.f32 0.0, %v1644
      %v1646 = vpop.f32.mrb[0].mxu0
      %1647 = vmatprep.mubr.f32.mxu0 0.0
      %1648 = vmatmul.mubr.f32.gmra.mrb[0].mxu0 %v1516
      %v1649 = vpop.f32.mrb[0].mxu0
      %v1650 = vadd.f32 0.0, %v1649
      %v1651 = vpop.f32.mrb[0].mxu0
      %1652 = vmatprep.mubr.f32.mxu0 0.0
      %1653 = vmatmul.mubr.f32.gmra.mrb[0].mxu0 %v1519
      %v1654 = vpop.f32.mrb[0].mxu0
      %v1655 = vadd.f32 0.0, %v1654
      %v1656 = vpop.f32.mrb[0].mxu0
      %1657 = vmatprep.mubr.f32.mxu0 0.0
      %1658 = vmatmul.mubr.f32.gmra.mrb[0].mxu0 %v1522
      %v1659 = vpop.f32.mrb[0].mxu0
      %v1660 = vadd.f32 0.0, %v1659
      %v1661 = vpop.f32.mrb[0].mxu0
      %1662 = vmatprep.mubr.f32.mxu0 0.0
      %1663 = vmatmul.mubr.f32.gmra.mrb[0].mxu0 %v1525
      %v1664 = vpop.f32.mrb[0].mxu0
      %v1665 = vadd.f32 0.0, %v1664
      %v1666 = vpop.f32.mrb[0].mxu0
      %1667 = vmatprep.mubr.f32.mxu0 0.0
      %1668 = vmatmul.mubr.f32.gmra.mrb[0].mxu0 %v1528
      %v1669 = vpop.f32.mrb[0].mxu0
      %v1670 = vadd.f32 0.0, %v1669
      %v1671 = vpop.f32.mrb[0].mxu0
      %1672 = vmatprep.mubr.f32.mxu0 0.0
      %1673 = vmatmul.mubr.f32.gmra.mrb[0].mxu0 %v1531
      %v1674 = vpop.f32.mrb[0].mxu0
      %v1675 = vadd.f32 0.0, %v1674
      %v1676 = vpop.f32.mrb[0].mxu0
      %1677 = vdwg.mxu0
      %v1678 = vadd.f32 %v1451, %v1600
      %v1679 = vadd.f32 %v1452, %v1605
      %v1680 = vadd.f32 %v1453, %v1610
      %v1681 = vadd.f32 %v1454, %v1615
      %v1682 = vadd.f32 %v1455, %v1620
      %v1683 = vadd.f32 %v1456, %v1625
      %v1684 = vadd.f32 %v1457, %v1630
      %v1685 = vadd.f32 %v1458, %v1635
      %v1686 = vadd.f32 %v1459, %v1640
      %v1687 = vadd.f32 %v1460, %v1645
      %v1688 = vadd.f32 %v1461, %v1650
      %v1689 = vadd.f32 %v1462, %v1655
      %v1690 = vadd.f32 %v1463, %v1660
      %v1691 = vadd.f32 %v1464, %v1665
      %v1692 = vadd.f32 %v1465, %v1670
      %v1693 = vadd.f32 %v1466, %v1675
      %s1694 = scalar_lea.vmem [#allocation2], 96
      %v1695 = vld [vmem:[%s1694 + $0xf] sm:$0xff]
      %v1696 = vld [vmem:[%s1694 + $0x17] sm:$0xff]
      %v1697 = vld [vmem:[%s1694 + $0x3f] sm:$0xff]
      %v1698 = vld [vmem:[%s1694 + $0x47] sm:$0xff]
      %v1699 = vld [vmem:[%s1694 + $0x6f] sm:$0xff]
      %v1700 = vld [vmem:[%s1694 + $0x77] sm:$0xff]
      %v1701 = vld [vmem:[%s1694 + $0x9f] sm:$0xff]
      %v1702 = vld [vmem:[%s1694 + $0xa7] sm:$0xff]
      %v1703 = vld [vmem:[%s1694 + $0xcf] sm:$0xff]
      %v1704 = vld [vmem:[%s1694 + $0xd7] sm:$0xff]
      %v1705 = vld [vmem:[%s1694 + $0xff] sm:$0xff]
      %v1706 = vld [vmem:[%s1694 + $0x107] sm:$0xff]
      %v1707 = vld [vmem:[%s1694 + $0x12f] sm:$0xff]
      %v1708 = vld [vmem:[%s1694 + $0x137] sm:$0xff]
      %v1709 = vld [vmem:[%s1694 + $0x15f] sm:$0xff]
      %v1710 = vld [vmem:[%s1694 + $0x167] sm:$0xff]
      %s1711 = scalar_lea.vmem %s2, 48
      %v1712 = vld [vmem:[%s1711] sm:$0xff]
      %v1714 = vsel %vm323, %v1695, 0
      %v1717 = vsel %vm323, %v1696, 0
      %v1720 = vsel %vm323, %v1697, 0
      %v1723 = vsel %vm323, %v1698, 0
      %v1726 = vsel %vm323, %v1699, 0
      %v1729 = vsel %vm323, %v1700, 0
      %v1732 = vsel %vm323, %v1701, 0
      %v1735 = vsel %vm323, %v1702, 0
      %v1738 = vsel %vm323, %v1703, 0
      %v1741 = vsel %vm323, %v1704, 0
      %v1744 = vsel %vm323, %v1705, 0
      %v1747 = vsel %vm323, %v1706, 0
      %v1750 = vsel %vm323, %v1707, 0
      %v1753 = vsel %vm323, %v1708, 0
      %v1756 = vsel %vm323, %v1709, 0
      %v1759 = vsel %vm323, %v1710, 0
      %1761 = vmatprep.subr.mxu0 0.0
      %1762 = vmatpush1.msra.mxu0 %v1712
      %1763 = vmatprep.subr.mxu0 0.0
      %1764 = vmatpush1.msra.mxu0 0.0
      %1765 = vmatprep.subr.mxu0 0.0
      %1766 = vmatpush1.msra.mxu0 0.0
      %1767 = vmatprep.subr.mxu0 0.0
      %1768 = vmatpush1.msra.mxu0 0.0
      %1769 = vmatprep.subr.mxu0 0.0
      %1770 = vmatpush1.msra.mxu0 0.0
      %1771 = vmatprep.subr.mxu0 0.0
      %1772 = vmatpush1.msra.mxu0 0.0
      %1773 = vmatprep.subr.mxu0 0.0
      %1774 = vmatpush1.msra.mxu0 0.0
      %1775 = vmatprep.subr.mxu0 0.0
      %1776 = vmatpush1.msra.mxu0 0.0
      %1777 = vmatprep.subr.mxu0 0.0
      %1778 = vmatpush1.msra.mxu0 0.0
      %1779 = vmatprep.subr.mxu0 0.0
      %1780 = vmatpush1.msra.mxu0 0.0
      %1781 = vmatprep.subr.mxu0 0.0
      %1782 = vmatpush1.msra.mxu0 0.0
      %1783 = vmatprep.subr.mxu0 0.0
      %1784 = vmatpush1.msra.mxu0 0.0
      %1785 = vmatprep.subr.mxu0 0.0
      %1786 = vmatpush1.msra.mxu0 0.0
      %1787 = vmatprep.subr.mxu0 0.0
      %1788 = vmatpush1.msra.mxu0 0.0
      %1789 = vmatprep.subr.mxu0 0.0
      %1790 = vmatpush1.msra.mxu0 0.0
      %1791 = vmatprep.subr.mxu0 0.0
      %1792 = vmatpush1.msra.mxu0 0.0
      %1793 = vmatprep.subr.mxu0 0.0
      %1794 = vmatpush1.msra.mxu0 0.0
      %1795 = vmatprep.subr.mxu0 0.0
      %1796 = vmatpush1.msra.mxu0 0.0
      %1797 = vmatprep.subr.mxu0 0.0
      %1798 = vmatpush1.msra.mxu0 0.0
      %1799 = vmatprep.subr.mxu0 0.0
      %1800 = vmatpush1.msra.mxu0 0.0
      %1801 = vmatprep.subr.mxu0 0.0
      %1802 = vmatpush1.msra.mxu0 0.0
      %1803 = vmatprep.subr.mxu0 0.0
      %1804 = vmatpush1.msra.mxu0 0.0
      %1805 = vmatprep.subr.mxu0 0.0
      %1806 = vmatpush1.msra.mxu0 0.0
      %1807 = vmatprep.subr.mxu0 0.0
      %1808 = vmatpush1.msra.mxu0 0.0
      %1809 = vmatprep.subr.mxu0 0.0
      %1810 = vmatpush1.msra.mxu0 0.0
      %1811 = vmatprep.subr.mxu0 0.0
      %1812 = vmatpush1.msra.mxu0 0.0
      %1813 = vmatprep.subr.mxu0 0.0
      %1814 = vmatpush1.msra.mxu0 0.0
      %1815 = vmatprep.subr.mxu0 0.0
      %1816 = vmatpush1.msra.mxu0 0.0
      %1817 = vmatprep.subr.mxu0 0.0
      %1818 = vmatpush1.msra.mxu0 0.0
      %1819 = vmatprep.subr.mxu0 0.0
      %1820 = vmatpush1.msra.mxu0 0.0
      %1821 = vmatprep.subr.mxu0 0.0
      %1822 = vmatpush1.msra.mxu0 0.0
      %1823 = vmatprep.subr.mxu0 0.0
      %1824 = vmatpush1.msra.mxu0 0.0
      %1825 = vmatprep.mubr.f32.mxu0 0.0
      %1826 = vmatmul.mubr.f32.gmra.mrb[0].mxu0 %v1714
      %v1827 = vpop.f32.mrb[0].mxu0
      %v1828 = vadd.f32 0.0, %v1827
      %v1829 = vpop.f32.mrb[0].mxu0
      %1830 = vmatprep.mubr.f32.mxu0 0.0
      %1831 = vmatmul.mubr.f32.gmra.mrb[0].mxu0 %v1717
      %v1832 = vpop.f32.mrb[0].mxu0
      %v1833 = vadd.f32 0.0, %v1832
      %v1834 = vpop.f32.mrb[0].mxu0
      %1835 = vmatprep.mubr.f32.mxu0 0.0
      %1836 = vmatmul.mubr.f32.gmra.mrb[0].mxu0 %v1720
      %v1837 = vpop.f32.mrb[0].mxu0
      %v1838 = vadd.f32 0.0, %v1837
      %v1839 = vpop.f32.mrb[0].mxu0
      %1840 = vmatprep.mubr.f32.mxu0 0.0
      %1841 = vmatmul.mubr.f32.gmra.mrb[0].mxu0 %v1723
      %v1842 = vpop.f32.mrb[0].mxu0
      %v1843 = vadd.f32 0.0, %v1842
      %v1844 = vpop.f32.mrb[0].mxu0
      %1845 = vmatprep.mubr.f32.mxu0 0.0
      %1846 = vmatmul.mubr.f32.gmra.mrb[0].mxu0 %v1726
      %v1847 = vpop.f32.mrb[0].mxu0
      %v1848 = vadd.f32 0.0, %v1847
      %v1849 = vpop.f32.mrb[0].mxu0
      %1850 = vmatprep.mubr.f32.mxu0 0.0
      %1851 = vmatmul.mubr.f32.gmra.mrb[0].mxu0 %v1729
      %v1852 = vpop.f32.mrb[0].mxu0
      %v1853 = vadd.f32 0.0, %v1852
      %v1854 = vpop.f32.mrb[0].mxu0
      %1855 = vmatprep.mubr.f32.mxu0 0.0
      %1856 = vmatmul.mubr.f32.gmra.mrb[0].mxu0 %v1732
      %v1857 = vpop.f32.mrb[0].mxu0
      %v1858 = vadd.f32 0.0, %v1857
      %v1859 = vpop.f32.mrb[0].mxu0
      %1860 = vmatprep.mubr.f32.mxu0 0.0
      %1861 = vmatmul.mubr.f32.gmra.mrb[0].mxu0 %v1735
      %v1862 = vpop.f32.mrb[0].mxu0
      %v1863 = vadd.f32 0.0, %v1862
      %v1864 = vpop.f32.mrb[0].mxu0
      %1865 = vmatprep.mubr.f32.mxu0 0.0
      %1866 = vmatmul.mubr.f32.gmra.mrb[0].mxu0 %v1738
      %v1867 = vpop.f32.mrb[0].mxu0
      %v1868 = vadd.f32 0.0, %v1867
      %v1869 = vpop.f32.mrb[0].mxu0
      %1870 = vmatprep.mubr.f32.mxu0 0.0
      %1871 = vmatmul.mubr.f32.gmra.mrb[0].mxu0 %v1741
      %v1872 = vpop.f32.mrb[0].mxu0
      %v1873 = vadd.f32 0.0, %v1872
      %v1874 = vpop.f32.mrb[0].mxu0
      %1875 = vmatprep.mubr.f32.mxu0 0.0
      %1876 = vmatmul.mubr.f32.gmra.mrb[0].mxu0 %v1744
      %v1877 = vpop.f32.mrb[0].mxu0
      %v1878 = vadd.f32 0.0, %v1877
      %v1879 = vpop.f32.mrb[0].mxu0
      %1880 = vmatprep.mubr.f32.mxu0 0.0
      %1881 = vmatmul.mubr.f32.gmra.mrb[0].mxu0 %v1747
      %v1882 = vpop.f32.mrb[0].mxu0
      %v1883 = vadd.f32 0.0, %v1882
      %v1884 = vpop.f32.mrb[0].mxu0
      %1885 = vmatprep.mubr.f32.mxu0 0.0
      %1886 = vmatmul.mubr.f32.gmra.mrb[0].mxu0 %v1750
      %v1887 = vpop.f32.mrb[0].mxu0
      %v1888 = vadd.f32 0.0, %v1887
      %v1889 = vpop.f32.mrb[0].mxu0
      %1890 = vmatprep.mubr.f32.mxu0 0.0
      %1891 = vmatmul.mubr.f32.gmra.mrb[0].mxu0 %v1753
      %v1892 = vpop.f32.mrb[0].mxu0
      %v1893 = vadd.f32 0.0, %v1892
      %v1894 = vpop.f32.mrb[0].mxu0
      %1895 = vmatprep.mubr.f32.mxu0 0.0
      %1896 = vmatmul.mubr.f32.gmra.mrb[0].mxu0 %v1756
      %v1897 = vpop.f32.mrb[0].mxu0
      %v1898 = vadd.f32 0.0, %v1897
      %v1899 = vpop.f32.mrb[0].mxu0
      %1900 = vmatprep.mubr.f32.mxu0 0.0
      %1901 = vmatmul.mubr.f32.gmra.mrb[0].mxu0 %v1759
      %v1902 = vpop.f32.mrb[0].mxu0
      %v1903 = vadd.f32 0.0, %v1902
      %v1904 = vpop.f32.mrb[0].mxu0
      %1905 = vdwg.mxu0
      %v1906 = vadd.f32 %v1678, %v1828
      %v1907 = vadd.f32 %v1679, %v1833
      %v1908 = vadd.f32 %v1680, %v1838
      %v1909 = vadd.f32 %v1681, %v1843
      %v1910 = vadd.f32 %v1682, %v1848
      %v1911 = vadd.f32 %v1683, %v1853
      %v1912 = vadd.f32 %v1684, %v1858
      %v1913 = vadd.f32 %v1685, %v1863
      %v1914 = vadd.f32 %v1686, %v1868
      %v1915 = vadd.f32 %v1687, %v1873
      %v1916 = vadd.f32 %v1688, %v1878
      %v1917 = vadd.f32 %v1689, %v1883
      %v1918 = vadd.f32 %v1690, %v1888
      %v1919 = vadd.f32 %v1691, %v1893
      %v1920 = vadd.f32 %v1692, %v1898
      %v1921 = vadd.f32 %v1693, %v1903
      %v1922 = vld [vmem:[%s1694 + $0x10] sm:$0xff]
      %v1923 = vld [vmem:[%s1694 + $0x18] sm:$0xff]
      %v1924 = vld [vmem:[%s1694 + $0x40] sm:$0xff]
      %v1925 = vld [vmem:[%s1694 + $0x48] sm:$0xff]
      %v1926 = vld [vmem:[%s1694 + $0x70] sm:$0xff]
      %v1927 = vld [vmem:[%s1694 + $0x78] sm:$0xff]
      %v1928 = vld [vmem:[%s1694 + $0xa0] sm:$0xff]
      %v1929 = vld [vmem:[%s1694 + $0xa8] sm:$0xff]
      %v1930 = vld [vmem:[%s1694 + $0xd0] sm:$0xff]
      %v1931 = vld [vmem:[%s1694 + $0xd8] sm:$0xff]
      %v1932 = vld [vmem:[%s1694 + $0x100] sm:$0xff]
      %v1933 = vld [vmem:[%s1694 + $0x108] sm:$0xff]
      %v1934 = vld [vmem:[%s1694 + $0x130] sm:$0xff]
      %v1935 = vld [vmem:[%s1694 + $0x138] sm:$0xff]
      %v1936 = vld [vmem:[%s1694 + $0x160] sm:$0xff]
      %v1937 = vld [vmem:[%s1694 + $0x168] sm:$0xff]
      %s1938 = scalar_lea.vmem %s2, 56
      %v1939 = vld [vmem:[%s1938] sm:$0xff]
      %v1941 = vsel %vm323, %v1922, 0
      %v1944 = vsel %vm323, %v1923, 0
      %v1947 = vsel %vm323, %v1924, 0
      %v1950 = vsel %vm323, %v1925, 0
      %v1953 = vsel %vm323, %v1926, 0
      %v1956 = vsel %vm323, %v1927, 0
      %v1959 = vsel %vm323, %v1928, 0
      %v1962 = vsel %vm323, %v1929, 0
      %v1965 = vsel %vm323, %v1930, 0
      %v1968 = vsel %vm323, %v1931, 0
      %v1971 = vsel %vm323, %v1932, 0
      %v1974 = vsel %vm323, %v1933, 0
      %v1977 = vsel %vm323, %v1934, 0
      %v1980 = vsel %vm323, %v1935, 0
      %v1983 = vsel %vm323, %v1936, 0
      %v1986 = vsel %vm323, %v1937, 0
      %1988 = vmatprep.subr.mxu0 0.0
      %1989 = vmatpush1.msra.mxu0 %v1939
      %1990 = vmatprep.subr.mxu0 0.0
      %1991 = vmatpush1.msra.mxu0 0.0
      %1992 = vmatprep.subr.mxu0 0.0
      %1993 = vmatpush1.msra.mxu0 0.0
      %1994 = vmatprep.subr.mxu0 0.0
      %1995 = vmatpush1.msra.mxu0 0.0
      %1996 = vmatprep.subr.mxu0 0.0
      %1997 = vmatpush1.msra.mxu0 0.0
      %1998 = vmatprep.subr.mxu0 0.0
      %1999 = vmatpush1.msra.mxu0 0.0
      %2000 = vmatprep.subr.mxu0 0.0
      %2001 = vmatpush1.msra.mxu0 0.0
      %2002 = vmatprep.subr.mxu0 0.0
      %2003 = vmatpush1.msra.mxu0 0.0
      %2004 = vmatprep.subr.mxu0 0.0
      %2005 = vmatpush1.msra.mxu0 0.0
      %2006 = vmatprep.subr.mxu0 0.0
      %2007 = vmatpush1.msra.mxu0 0.0
      %2008 = vmatprep.subr.mxu0 0.0
      %2009 = vmatpush1.msra.mxu0 0.0
      %2010 = vmatprep.subr.mxu0 0.0
      %2011 = vmatpush1.msra.mxu0 0.0
      %2012 = vmatprep.subr.mxu0 0.0
      %2013 = vmatpush1.msra.mxu0 0.0
      %2014 = vmatprep.subr.mxu0 0.0
      %2015 = vmatpush1.msra.mxu0 0.0
      %2016 = vmatprep.subr.mxu0 0.0
      %2017 = vmatpush1.msra.mxu0 0.0
      %2018 = vmatprep.subr.mxu0 0.0
      %2019 = vmatpush1.msra.mxu0 0.0
      %2020 = vmatprep.subr.mxu0 0.0
      %2021 = vmatpush1.msra.mxu0 0.0
      %2022 = vmatprep.subr.mxu0 0.0
      %2023 = vmatpush1.msra.mxu0 0.0
      %2024 = vmatprep.subr.mxu0 0.0
      %2025 = vmatpush1.msra.mxu0 0.0
      %2026 = vmatprep.subr.mxu0 0.0
      %2027 = vmatpush1.msra.mxu0 0.0
      %2028 = vmatprep.subr.mxu0 0.0
      %2029 = vmatpush1.msra.mxu0 0.0
      %2030 = vmatprep.subr.mxu0 0.0
      %2031 = vmatpush1.msra.mxu0 0.0
      %2032 = vmatprep.subr.mxu0 0.0
      %2033 = vmatpush1.msra.mxu0 0.0
      %2034 = vmatprep.subr.mxu0 0.0
      %2035 = vmatpush1.msra.mxu0 0.0
      %2036 = vmatprep.subr.mxu0 0.0
      %2037 = vmatpush1.msra.mxu0 0.0
      %2038 = vmatprep.subr.mxu0 0.0
      %2039 = vmatpush1.msra.mxu0 0.0
      %2040 = vmatprep.subr.mxu0 0.0
      %2041 = vmatpush1.msra.mxu0 0.0
      %2042 = vmatprep.subr.mxu0 0.0
      %2043 = vmatpush1.msra.mxu0 0.0
      %2044 = vmatprep.subr.mxu0 0.0
      %2045 = vmatpush1.msra.mxu0 0.0
      %2046 = vmatprep.subr.mxu0 0.0
      %2047 = vmatpush1.msra.mxu0 0.0
      %2048 = vmatprep.subr.mxu0 0.0
      %2049 = vmatpush1.msra.mxu0 0.0
      %2050 = vmatprep.subr.mxu0 0.0
      %2051 = vmatpush1.msra.mxu0 0.0
      %2052 = vmatprep.mubr.f32.mxu0 0.0
      %2053 = vmatmul.mubr.f32.gmra.mrb[0].mxu0 %v1941
      %v2054 = vpop.f32.mrb[0].mxu0
      %v2055 = vadd.f32 0.0, %v2054
      %v2056 = vpop.f32.mrb[0].mxu0
      %2057 = vmatprep.mubr.f32.mxu0 0.0
      %2058 = vmatmul.mubr.f32.gmra.mrb[0].mxu0 %v1944
      %v2059 = vpop.f32.mrb[0].mxu0
      %v2060 = vadd.f32 0.0, %v2059
      %v2061 = vpop.f32.mrb[0].mxu0
      %2062 = vmatprep.mubr.f32.mxu0 0.0
      %2063 = vmatmul.mubr.f32.gmra.mrb[0].mxu0 %v1947
      %v2064 = vpop.f32.mrb[0].mxu0
      %v2065 = vadd.f32 0.0, %v2064
      %v2066 = vpop.f32.mrb[0].mxu0
      %2067 = vmatprep.mubr.f32.mxu0 0.0
      %2068 = vmatmul.mubr.f32.gmra.mrb[0].mxu0 %v1950
      %v2069 = vpop.f32.mrb[0].mxu0
      %v2070 = vadd.f32 0.0, %v2069
      %v2071 = vpop.f32.mrb[0].mxu0
      %2072 = vmatprep.mubr.f32.mxu0 0.0
      %2073 = vmatmul.mubr.f32.gmra.mrb[0].mxu0 %v1953
      %v2074 = vpop.f32.mrb[0].mxu0
      %v2075 = vadd.f32 0.0, %v2074
      %v2076 = vpop.f32.mrb[0].mxu0
      %2077 = vmatprep.mubr.f32.mxu0 0.0
      %2078 = vmatmul.mubr.f32.gmra.mrb[0].mxu0 %v1956
      %v2079 = vpop.f32.mrb[0].mxu0
      %v2080 = vadd.f32 0.0, %v2079
      %v2081 = vpop.f32.mrb[0].mxu0
      %2082 = vmatprep.mubr.f32.mxu0 0.0
      %2083 = vmatmul.mubr.f32.gmra.mrb[0].mxu0 %v1959
      %v2084 = vpop.f32.mrb[0].mxu0
      %v2085 = vadd.f32 0.0, %v2084
      %v2086 = vpop.f32.mrb[0].mxu0
      %2087 = vmatprep.mubr.f32.mxu0 0.0
      %2088 = vmatmul.mubr.f32.gmra.mrb[0].mxu0 %v1962
      %v2089 = vpop.f32.mrb[0].mxu0
      %v2090 = vadd.f32 0.0, %v2089
      %v2091 = vpop.f32.mrb[0].mxu0
      %2092 = vmatprep.mubr.f32.mxu0 0.0
      %2093 = vmatmul.mubr.f32.gmra.mrb[0].mxu0 %v1965
      %v2094 = vpop.f32.mrb[0].mxu0
      %v2095 = vadd.f32 0.0, %v2094
      %v2096 = vpop.f32.mrb[0].mxu0
      %2097 = vmatprep.mubr.f32.mxu0 0.0
      %2098 = vmatmul.mubr.f32.gmra.mrb[0].mxu0 %v1968
      %v2099 = vpop.f32.mrb[0].mxu0
      %v2100 = vadd.f32 0.0, %v2099
      %v2101 = vpop.f32.mrb[0].mxu0
      %2102 = vmatprep.mubr.f32.mxu0 0.0
      %2103 = vmatmul.mubr.f32.gmra.mrb[0].mxu0 %v1971
      %v2104 = vpop.f32.mrb[0].mxu0
      %v2105 = vadd.f32 0.0, %v2104
      %v2106 = vpop.f32.mrb[0].mxu0
      %2107 = vmatprep.mubr.f32.mxu0 0.0
      %2108 = vmatmul.mubr.f32.gmra.mrb[0].mxu0 %v1974
      %v2109 = vpop.f32.mrb[0].mxu0
      %v2110 = vadd.f32 0.0, %v2109
      %v2111 = vpop.f32.mrb[0].mxu0
      %2112 = vmatprep.mubr.f32.mxu0 0.0
      %2113 = vmatmul.mubr.f32.gmra.mrb[0].mxu0 %v1977
      %v2114 = vpop.f32.mrb[0].mxu0
      %v2115 = vadd.f32 0.0, %v2114
      %v2116 = vpop.f32.mrb[0].mxu0
      %2117 = vmatprep.mubr.f32.mxu0 0.0
      %2118 = vmatmul.mubr.f32.gmra.mrb[0].mxu0 %v1980
      %v2119 = vpop.f32.mrb[0].mxu0
      %v2120 = vadd.f32 0.0, %v2119
      %v2121 = vpop.f32.mrb[0].mxu0
      %2122 = vmatprep.mubr.f32.mxu0 0.0
      %2123 = vmatmul.mubr.f32.gmra.mrb[0].mxu0 %v1983
      %v2124 = vpop.f32.mrb[0].mxu0
      %v2125 = vadd.f32 0.0, %v2124
      %v2126 = vpop.f32.mrb[0].mxu0
      %2127 = vmatprep.mubr.f32.mxu0 0.0
      %2128 = vmatmul.mubr.f32.gmra.mrb[0].mxu0 %v1986
      %v2129 = vpop.f32.mrb[0].mxu0
      %v2130 = vadd.f32 0.0, %v2129
      %v2131 = vpop.f32.mrb[0].mxu0
      %2132 = vdwg.mxu0
      %v2133 = vadd.f32 %v1906, %v2055
      %v2134 = vadd.f32 %v1907, %v2060
      %v2135 = vadd.f32 %v1908, %v2065
      %v2136 = vadd.f32 %v1909, %v2070
      %v2137 = vadd.f32 %v1910, %v2075
      %v2138 = vadd.f32 %v1911, %v2080
      %v2139 = vadd.f32 %v1912, %v2085
      %v2140 = vadd.f32 %v1913, %v2090
      %v2141 = vadd.f32 %v1914, %v2095
      %v2142 = vadd.f32 %v1915, %v2100
      %v2143 = vadd.f32 %v1916, %v2105
      %v2144 = vadd.f32 %v1917, %v2110
      %v2145 = vadd.f32 %v1918, %v2115
      %v2146 = vadd.f32 %v1919, %v2120
      %v2147 = vadd.f32 %v1920, %v2125
      %v2148 = vadd.f32 %v1921, %v2130
      %v2149 = vld [vmem:[%s1694 + $0x11] sm:$0xff]
      %v2150 = vld [vmem:[%s1694 + $0x19] sm:$0xff]
      %v2151 = vld [vmem:[%s1694 + $0x41] sm:$0xff]
      %v2152 = vld [vmem:[%s1694 + $0x49] sm:$0xff]
      %v2153 = vld [vmem:[%s1694 + $0x71] sm:$0xff]
      %v2154 = vld [vmem:[%s1694 + $0x79] sm:$0xff]
      %v2155 = vld [vmem:[%s1694 + $0xa1] sm:$0xff]
      %v2156 = vld [vmem:[%s1694 + $0xa9] sm:$0xff]
      %v2157 = vld [vmem:[%s1694 + $0xd1] sm:$0xff]
      %v2158 = vld [vmem:[%s1694 + $0xd9] sm:$0xff]
      %v2159 = vld [vmem:[%s1694 + $0x101] sm:$0xff]
      %v2160 = vld [vmem:[%s1694 + $0x109] sm:$0xff]
      %v2161 = vld [vmem:[%s1694 + $0x131] sm:$0xff]
      %v2162 = vld [vmem:[%s1694 + $0x139] sm:$0xff]
      %v2163 = vld [vmem:[%s1694 + $0x161] sm:$0xff]
      %v2164 = vld [vmem:[%s1694 + $0x169] sm:$0xff]
      %s2165 = scalar_lea.vmem %s2, 64
      %v2166 = vld [vmem:[%s2165] sm:$0xff]
      %v2168 = vsel %vm323, %v2149, 0
      %v2171 = vsel %vm323, %v2150, 0
      %v2174 = vsel %vm323, %v2151, 0
      %v2177 = vsel %vm323, %v2152, 0
      %v2180 = vsel %vm323, %v2153, 0
      %v2183 = vsel %vm323, %v2154, 0
      %v2186 = vsel %vm323, %v2155, 0
      %v2189 = vsel %vm323, %v2156, 0
      %v2192 = vsel %vm323, %v2157, 0
      %v2195 = vsel %vm323, %v2158, 0
      %v2198 = vsel %vm323, %v2159, 0
      %v2201 = vsel %vm323, %v2160, 0
      %v2204 = vsel %vm323, %v2161, 0
      %v2207 = vsel %vm323, %v2162, 0
      %v2210 = vsel %vm323, %v2163, 0
      %v2213 = vsel %vm323, %v2164, 0
      %2215 = vmatprep.subr.mxu0 0.0
      %2216 = vmatpush1.msra.mxu0 %v2166
      %2217 = vmatprep.subr.mxu0 0.0
      %2218 = vmatpush1.msra.mxu0 0.0
      %2219 = vmatprep.subr.mxu0 0.0
      %2220 = vmatpush1.msra.mxu0 0.0
      %2221 = vmatprep.subr.mxu0 0.0
      %2222 = vmatpush1.msra.mxu0 0.0
      %2223 = vmatprep.subr.mxu0 0.0
      %2224 = vmatpush1.msra.mxu0 0.0
      %2225 = vmatprep.subr.mxu0 0.0
      %2226 = vmatpush1.msra.mxu0 0.0
      %2227 = vmatprep.subr.mxu0 0.0
      %2228 = vmatpush1.msra.mxu0 0.0
      %2229 = vmatprep.subr.mxu0 0.0
      %2230 = vmatpush1.msra.mxu0 0.0
      %2231 = vmatprep.subr.mxu0 0.0
      %2232 = vmatpush1.msra.mxu0 0.0
      %2233 = vmatprep.subr.mxu0 0.0
      %2234 = vmatpush1.msra.mxu0 0.0
      %2235 = vmatprep.subr.mxu0 0.0
      %2236 = vmatpush1.msra.mxu0 0.0
      %2237 = vmatprep.subr.mxu0 0.0
      %2238 = vmatpush1.msra.mxu0 0.0
      %2239 = vmatprep.subr.mxu0 0.0
      %2240 = vmatpush1.msra.mxu0 0.0
      %2241 = vmatprep.subr.mxu0 0.0
      %2242 = vmatpush1.msra.mxu0 0.0
      %2243 = vmatprep.subr.mxu0 0.0
      %2244 = vmatpush1.msra.mxu0 0.0
      %2245 = vmatprep.subr.mxu0 0.0
      %2246 = vmatpush1.msra.mxu0 0.0
      %2247 = vmatprep.subr.mxu0 0.0
      %2248 = vmatpush1.msra.mxu0 0.0
      %2249 = vmatprep.subr.mxu0 0.0
      %2250 = vmatpush1.msra.mxu0 0.0
      %2251 = vmatprep.subr.mxu0 0.0
      %2252 = vmatpush1.msra.mxu0 0.0
      %2253 = vmatprep.subr.mxu0 0.0
      %2254 = vmatpush1.msra.mxu0 0.0
      %2255 = vmatprep.subr.mxu0 0.0
      %2256 = vmatpush1.msra.mxu0 0.0
      %2257 = vmatprep.subr.mxu0 0.0
      %2258 = vmatpush1.msra.mxu0 0.0
      %2259 = vmatprep.subr.mxu0 0.0
      %2260 = vmatpush1.msra.mxu0 0.0
      %2261 = vmatprep.subr.mxu0 0.0
      %2262 = vmatpush1.msra.mxu0 0.0
      %2263 = vmatprep.subr.mxu0 0.0
      %2264 = vmatpush1.msra.mxu0 0.0
      %2265 = vmatprep.subr.mxu0 0.0
      %2266 = vmatpush1.msra.mxu0 0.0
      %2267 = vmatprep.subr.mxu0 0.0
      %2268 = vmatpush1.msra.mxu0 0.0
      %2269 = vmatprep.subr.mxu0 0.0
      %2270 = vmatpush1.msra.mxu0 0.0
      %2271 = vmatprep.subr.mxu0 0.0
      %2272 = vmatpush1.msra.mxu0 0.0
      %2273 = vmatprep.subr.mxu0 0.0
      %2274 = vmatpush1.msra.mxu0 0.0
      %2275 = vmatprep.subr.mxu0 0.0
      %2276 = vmatpush1.msra.mxu0 0.0
      %2277 = vmatprep.subr.mxu0 0.0
      %2278 = vmatpush1.msra.mxu0 0.0
      %2279 = vmatprep.mubr.f32.mxu0 0.0
      %2280 = vmatmul.mubr.f32.gmra.mrb[0].mxu0 %v2168
      %v2281 = vpop.f32.mrb[0].mxu0
      %v2282 = vadd.f32 0.0, %v2281
      %v2283 = vpop.f32.mrb[0].mxu0
      %2284 = vmatprep.mubr.f32.mxu0 0.0
      %2285 = vmatmul.mubr.f32.gmra.mrb[0].mxu0 %v2171
      %v2286 = vpop.f32.mrb[0].mxu0
      %v2287 = vadd.f32 0.0, %v2286
      %v2288 = vpop.f32.mrb[0].mxu0
      %2289 = vmatprep.mubr.f32.mxu0 0.0
      %2290 = vmatmul.mubr.f32.gmra.mrb[0].mxu0 %v2174
      %v2291 = vpop.f32.mrb[0].mxu0
      %v2292 = vadd.f32 0.0, %v2291
      %v2293 = vpop.f32.mrb[0].mxu0
      %2294 = vmatprep.mubr.f32.mxu0 0.0
      %2295 = vmatmul.mubr.f32.gmra.mrb[0].mxu0 %v2177
      %v2296 = vpop.f32.mrb[0].mxu0
      %v2297 = vadd.f32 0.0, %v2296
      %v2298 = vpop.f32.mrb[0].mxu0
      %2299 = vmatprep.mubr.f32.mxu0 0.0
      %2300 = vmatmul.mubr.f32.gmra.mrb[0].mxu0 %v2180
      %v2301 = vpop.f32.mrb[0].mxu0
      %v2302 = vadd.f32 0.0, %v2301
      %v2303 = vpop.f32.mrb[0].mxu0
      %2304 = vmatprep.mubr.f32.mxu0 0.0
      %2305 = vmatmul.mubr.f32.gmra.mrb[0].mxu0 %v2183
      %v2306 = vpop.f32.mrb[0].mxu0
      %v2307 = vadd.f32 0.0, %v2306
      %v2308 = vpop.f32.mrb[0].mxu0
      %2309 = vmatprep.mubr.f32.mxu0 0.0
      %2310 = vmatmul.mubr.f32.gmra.mrb[0].mxu0 %v2186
      %v2311 = vpop.f32.mrb[0].mxu0
      %v2312 = vadd.f32 0.0, %v2311
      %v2313 = vpop.f32.mrb[0].mxu0
      %2314 = vmatprep.mubr.f32.mxu0 0.0
      %2315 = vmatmul.mubr.f32.gmra.mrb[0].mxu0 %v2189
      %v2316 = vpop.f32.mrb[0].mxu0
      %v2317 = vadd.f32 0.0, %v2316
      %v2318 = vpop.f32.mrb[0].mxu0
      %2319 = vmatprep.mubr.f32.mxu0 0.0
      %2320 = vmatmul.mubr.f32.gmra.mrb[0].mxu0 %v2192
      %v2321 = vpop.f32.mrb[0].mxu0
      %v2322 = vadd.f32 0.0, %v2321
      %v2323 = vpop.f32.mrb[0].mxu0
      %2324 = vmatprep.mubr.f32.mxu0 0.0
      %2325 = vmatmul.mubr.f32.gmra.mrb[0].mxu0 %v2195
      %v2326 = vpop.f32.mrb[0].mxu0
      %v2327 = vadd.f32 0.0, %v2326
      %v2328 = vpop.f32.mrb[0].mxu0
      %2329 = vmatprep.mubr.f32.mxu0 0.0
      %2330 = vmatmul.mubr.f32.gmra.mrb[0].mxu0 %v2198
      %v2331 = vpop.f32.mrb[0].mxu0
      %v2332 = vadd.f32 0.0, %v2331
      %v2333 = vpop.f32.mrb[0].mxu0
      %2334 = vmatprep.mubr.f32.mxu0 0.0
      %2335 = vmatmul.mubr.f32.gmra.mrb[0].mxu0 %v2201
      %v2336 = vpop.f32.mrb[0].mxu0
      %v2337 = vadd.f32 0.0, %v2336
      %v2338 = vpop.f32.mrb[0].mxu0
      %2339 = vmatprep.mubr.f32.mxu0 0.0
      %2340 = vmatmul.mubr.f32.gmra.mrb[0].mxu0 %v2204
      %v2341 = vpop.f32.mrb[0].mxu0
      %v2342 = vadd.f32 0.0, %v2341
      %v2343 = vpop.f32.mrb[0].mxu0
      %2344 = vmatprep.mubr.f32.mxu0 0.0
      %2345 = vmatmul.mubr.f32.gmra.mrb[0].mxu0 %v2207
      %v2346 = vpop.f32.mrb[0].mxu0
      %v2347 = vadd.f32 0.0, %v2346
      %v2348 = vpop.f32.mrb[0].mxu0
      %2349 = vmatprep.mubr.f32.mxu0 0.0
      %2350 = vmatmul.mubr.f32.gmra.mrb[0].mxu0 %v2210
      %v2351 = vpop.f32.mrb[0].mxu0
      %v2352 = vadd.f32 0.0, %v2351
      %v2353 = vpop.f32.mrb[0].mxu0
      %2354 = vmatprep.mubr.f32.mxu0 0.0
      %2355 = vmatmul.mubr.f32.gmra.mrb[0].mxu0 %v2213
      %v2356 = vpop.f32.mrb[0].mxu0
      %v2357 = vadd.f32 0.0, %v2356
      %v2358 = vpop.f32.mrb[0].mxu0
      %2359 = vdwg.mxu0
      %v2360 = vadd.f32 %v2133, %v2282
      %v2361 = vadd.f32 %v2134, %v2287
      %v2362 = vadd.f32 %v2135, %v2292
      %v2363 = vadd.f32 %v2136, %v2297
      %v2364 = vadd.f32 %v2137, %v2302
      %v2365 = vadd.f32 %v2138, %v2307
      %v2366 = vadd.f32 %v2139, %v2312
      %v2367 = vadd.f32 %v2140, %v2317
      %v2368 = vadd.f32 %v2141, %v2322
      %v2369 = vadd.f32 %v2142, %v2327
      %v2370 = vadd.f32 %v2143, %v2332
      %v2371 = vadd.f32 %v2144, %v2337
      %v2372 = vadd.f32 %v2145, %v2342
      %v2373 = vadd.f32 %v2146, %v2347
      %v2374 = vadd.f32 %v2147, %v2352
      %v2375 = vadd.f32 %v2148, %v2357
      %v2376 = vld [vmem:[%s3] sm:$0x1]
      %v2378 = vlaneseq
      %v2379 = vshrl.u32 %v2378, 7
      %v2380 = vsub.s32 0, %v2379
      %v2381 = vrot.slane %v2376, %v2380
      %v2383 = vadd.f32 %v2360, %v2381
      %v2384 = vadd.f32 %v2361, %v2381
      %v2385 = vadd.f32 %v2362, %v2381
      %v2386 = vadd.f32 %v2363, %v2381
      %v2387 = vadd.f32 %v2364, %v2381
      %v2388 = vadd.f32 %v2365, %v2381
      %v2389 = vadd.f32 %v2366, %v2381
      %v2390 = vadd.f32 %v2367, %v2381
      %v2391 = vadd.f32 %v2368, %v2381
      %v2392 = vadd.f32 %v2369, %v2381
      %v2393 = vadd.f32 %v2370, %v2381
      %v2394 = vadd.f32 %v2371, %v2381
      %v2395 = vadd.f32 %v2372, %v2381
      %v2396 = vadd.f32 %v2373, %v2381
      %v2397 = vadd.f32 %v2374, %v2381
      %v2398 = vadd.f32 %v2375, %v2381
      %2399 = vst.msk [vmem:[%s292] sm:$0xff] %vm323, %v2383
      %2400 = vst.msk [vmem:[%s292 + $0x8] sm:$0xff] %vm323, %v2384
      %2401 = vst.msk [vmem:[%s292 + $0x10] sm:$0xff] %vm323, %v2385
      %2402 = vst.msk [vmem:[%s292 + $0x18] sm:$0xff] %vm323, %v2386
      %2403 = vst.msk [vmem:[%s292 + $0x20] sm:$0xff] %vm323, %v2387
      %2404 = vst.msk [vmem:[%s292 + $0x28] sm:$0xff] %vm323, %v2388
      %2405 = vst.msk [vmem:[%s292 + $0x30] sm:$0xff] %vm323, %v2389
      %2406 = vst.msk [vmem:[%s292 + $0x38] sm:$0xff] %vm323, %v2390
      %2407 = vst.msk [vmem:[%s292 + $0x40] sm:$0xff] %vm323, %v2391
      %2408 = vst.msk [vmem:[%s292 + $0x48] sm:$0xff] %vm323, %v2392
      %2409 = vst.msk [vmem:[%s292 + $0x50] sm:$0xff] %vm323, %v2393
      %2410 = vst.msk [vmem:[%s292 + $0x58] sm:$0xff] %vm323, %v2394
      %2411 = vst.msk [vmem:[%s292 + $0x60] sm:$0xff] %vm323, %v2395
      %2412 = vst.msk [vmem:[%s292 + $0x68] sm:$0xff] %vm323, %v2396
      %2413 = vst.msk [vmem:[%s292 + $0x70] sm:$0xff] %vm323, %v2397
      %2414 = vst.msk [vmem:[%s292 + $0x78] sm:$0xff] %vm323, %v2398
      %v2415 = vsel %vm323, %v2383, 0.0
      %v2416 = vsel %vm323, %v2384, 0.0
      %v2417 = vadd.f32 %v2415, %v2416
      %v2418 = vsel %vm323, %v2385, 0.0
      %v2419 = vadd.f32 %v2417, %v2418
      %v2420 = vsel %vm323, %v2386, 0.0
      %v2421 = vadd.f32 %v2419, %v2420
      %v2422 = vsel %vm323, %v2387, 0.0
      %v2423 = vadd.f32 %v2421, %v2422
      %v2424 = vsel %vm323, %v2388, 0.0
      %v2425 = vadd.f32 %v2423, %v2424
      %v2426 = vsel %vm323, %v2389, 0.0
      %v2427 = vadd.f32 %v2425, %v2426
      %v2428 = vsel %vm323, %v2390, 0.0
      %v2429 = vadd.f32 %v2427, %v2428
      %v2430 = vsel %vm323, %v2391, 0.0
      %v2431 = vadd.f32 %v2429, %v2430
      %v2432 = vsel %vm323, %v2392, 0.0
      %v2433 = vadd.f32 %v2431, %v2432
      %v2434 = vsel %vm323, %v2393, 0.0
      %v2435 = vadd.f32 %v2433, %v2434
      %v2436 = vsel %vm323, %v2394, 0.0
      %v2437 = vadd.f32 %v2435, %v2436
      %v2438 = vsel %vm323, %v2395, 0.0
      %v2439 = vadd.f32 %v2437, %v2438
      %v2440 = vsel %vm323, %v2396, 0.0
      %v2441 = vadd.f32 %v2439, %v2440
      %v2442 = vsel %vm323, %v2397, 0.0
      %v2443 = vadd.f32 %v2441, %v2442
      %v2444 = vsel %vm323, %v2398, 0.0
      %v2445 = vadd.f32 %v2443, %v2444
      %v2446 = vrot.slane %v2445, 4
      %v2447 = vadd.f32 %v2445, %v2446
      %v2448 = vrot.slane %v2447, 2
      %v2449 = vadd.f32 %v2447, %v2448
      %v2450 = vrot.slane %v2449, 1
      %v2451 = vadd.f32 %v2449, %v2450
      %2452 = vst.msk [vmem:[%s296] sm:$0x1] %vm300, %v2451
      %v2453 = vmul.f32 %v2383, %v2383
      %v2454 = vmul.f32 %v2384, %v2384
      %v2455 = vmul.f32 %v2385, %v2385
      %v2456 = vmul.f32 %v2386, %v2386
      %v2457 = vmul.f32 %v2387, %v2387
      %v2458 = vmul.f32 %v2388, %v2388
      %v2459 = vmul.f32 %v2389, %v2389
      %v2460 = vmul.f32 %v2390, %v2390
      %v2461 = vmul.f32 %v2391, %v2391
      %v2462 = vmul.f32 %v2392, %v2392
      %v2463 = vmul.f32 %v2393, %v2393
      %v2464 = vmul.f32 %v2394, %v2394
      %v2465 = vmul.f32 %v2395, %v2395
      %v2466 = vmul.f32 %v2396, %v2396
      %v2467 = vmul.f32 %v2397, %v2397
      %v2468 = vmul.f32 %v2398, %v2398
      %v2469 = vsel %vm323, %v2453, 0.0
      %v2470 = vsel %vm323, %v2454, 0.0
      %v2471 = vadd.f32 %v2469, %v2470
      %v2472 = vsel %vm323, %v2455, 0.0
      %v2473 = vadd.f32 %v2471, %v2472
      %v2474 = vsel %vm323, %v2456, 0.0
      %v2475 = vadd.f32 %v2473, %v2474
      %v2476 = vsel %vm323, %v2457, 0.0
      %v2477 = vadd.f32 %v2475, %v2476
      %v2478 = vsel %vm323, %v2458, 0.0
      %v2479 = vadd.f32 %v2477, %v2478
      %v2480 = vsel %vm323, %v2459, 0.0
      %v2481 = vadd.f32 %v2479, %v2480
      %v2482 = vsel %vm323, %v2460, 0.0
      %v2483 = vadd.f32 %v2481, %v2482
      %v2484 = vsel %vm323, %v2461, 0.0
      %v2485 = vadd.f32 %v2483, %v2484
      %v2486 = vsel %vm323, %v2462, 0.0
      %v2487 = vadd.f32 %v2485, %v2486
      %v2488 = vsel %vm323, %v2463, 0.0
      %v2489 = vadd.f32 %v2487, %v2488
      %v2490 = vsel %vm323, %v2464, 0.0
      %v2491 = vadd.f32 %v2489, %v2490
      %v2492 = vsel %vm323, %v2465, 0.0
      %v2493 = vadd.f32 %v2491, %v2492
      %v2494 = vsel %vm323, %v2466, 0.0
      %v2495 = vadd.f32 %v2493, %v2494
      %v2496 = vsel %vm323, %v2467, 0.0
      %v2497 = vadd.f32 %v2495, %v2496
      %v2498 = vsel %vm323, %v2468, 0.0
      %v2499 = vadd.f32 %v2497, %v2498
      %v2500 = vrot.slane %v2499, 4
      %v2501 = vadd.f32 %v2499, %v2500
      %v2502 = vrot.slane %v2501, 2
      %v2503 = vadd.f32 %v2501, %v2502
      %v2504 = vrot.slane %v2503, 1
      %v2505 = vadd.f32 %v2503, %v2504
      %2506 = vst.msk [vmem:[%s299] sm:$0x1] %vm300, %v2505
      %s2507 = smul.u32 16, %s18
      %p2508 = scmp.lt.s32.totalorder %s2507, 63
      %s2509 = scalar_select %p2508, %s2507, 63
      %s2510 = smul.addr %s2509, 8
      %s2511 = scalar_lea.vmem %s4, %s2510
      %p2512 = scmp.lt.s32.totalorder %s18, 3
      %s2513 = scalar_select %p2512, %s18, 3
      %s2514 = scalar_lea.vmem %s5, %s2513
      %p2515 = scmp.lt.s32.totalorder %s18, 3
      %s2516 = scalar_select %p2515, %s18, 3
      %s2517 = scalar_lea.vmem %s6, %s2516
      // Predicated region
      $region37: #{recurrent_block_forward.6} parent=35 // pred_check
        %p2518 = pneg %p130
      $region38: #{recurrent_block_forward.6} parent=35 // pred_check_branch
        %2520 = sbr.rel (%p2518) target = $region40
      $region39: #{recurrent_block_forward.6} parent=35 // pred_region
        %s2521 = smul.u32 16, %s18
      $region40: #{recurrent_block_forward.6} parent=35 // pred_fallthru
        _
      // Predicated region
      $region41: #{recurrent_block_forward.6} parent=35 // pred_check
        %p2522 = pneg %p156
      $region42: #{recurrent_block_forward.6} parent=35 // pred_check_branch
        %2524 = sbr.rel (%p2522) target = $region44
      $region43: #{recurrent_block_forward.6} parent=35 // pred_region
        _
      $region44: #{recurrent_block_forward.6} parent=35 // pred_fallthru
        _
      // Predicated region
      $region45: #{recurrent_block_forward.6} parent=35 // pred_check
        %p2525 = pneg %p182
      $region46: #{recurrent_block_forward.6} parent=35 // pred_check_branch
        %2527 = sbr.rel (%p2525) target = $region48
      $region47: #{recurrent_block_forward.6} parent=35 // pred_region
        _
      $region48: #{recurrent_block_forward.6} parent=35 // pred_fallthru
        _
    $region36: #{recurrent_block_forward.6} parent=5 // pred_fallthru
      _
    %p2528 = scmp.le.s32.totalorder 2, %s13
    // Predicated region
    $region49: #{recurrent_block_forward.6} parent=5 // pred_check
      %p2529 = pneg %p2528
    $region50: #{recurrent_block_forward.6} parent=5 // pred_check_branch
      %2531 = sbr.rel (%p2529) target = $region52
    $region51: #{recurrent_block_forward.6} parent=5 // pred_region
      %s2532 = ssub.s32 %s13, 2
      // Predicated region
      $region53: #{recurrent_block_forward.6} parent=51 // pred_check
        %p2533 = pneg %p136
      $region54: #{recurrent_block_forward.6} parent=51 // pred_check_branch
        %2535 = sbr.rel (%p2533) target = $region56
      $region55: #{recurrent_block_forward.6} parent=51 // pred_region
        %s2536 = smul.u32 16, %s19
        %p2537 = scmp.lt.s32.totalorder %s2536, 63
        %s2538 = scalar_select %p2537, %s2536, 63
        %s2539 = smul.addr %s2538, 8
        %s2540 = scalar_lea.vmem %s4, %s2539
      $region56: #{recurrent_block_forward.6} parent=51 // pred_fallthru
        _
      // Predicated region
      $region57: #{recurrent_block_forward.6} parent=51 // pred_check
        %p2541 = pneg %p162
      $region58: #{recurrent_block_forward.6} parent=51 // pred_check_branch
        %2543 = sbr.rel (%p2541) target = $region60
      $region59: #{recurrent_block_forward.6} parent=51 // pred_region
        %p2544 = scmp.lt.s32.totalorder %s19, 3
        %s2545 = scalar_select %p2544, %s19, 3
        %s2546 = scalar_lea.vmem %s5, %s2545
      $region60: #{recurrent_block_forward.6} parent=51 // pred_fallthru
        _
      // Predicated region
      $region61: #{recurrent_block_forward.6} parent=51 // pred_check
        %p2547 = pneg %p188
      $region62: #{recurrent_block_forward.6} parent=51 // pred_check_branch
        %2549 = sbr.rel (%p2547) target = $region64
      $region63: #{recurrent_block_forward.6} parent=51 // pred_region
        %p2550 = scmp.lt.s32.totalorder %s19, 3
        %s2551 = scalar_select %p2550, %s19, 3
        %s2552 = scalar_lea.vmem %s6, %s2551
      $region64: #{recurrent_block_forward.6} parent=51 // pred_fallthru
        _
    $region52: #{recurrent_block_forward.6} parent=5 // pred_fallthru
      _
  $region6: #{recurrent_block_forward.6} parent=0 // loop_footer
    %s17 = sadd.s32 1, %s13
  $region7: #{recurrent_block_forward.6} parent=0 // loop_footer_branch
    %12 = sbr.rel target = $region3
  $region8: #{recurrent_block_forward.6} parent=0 // loop_exit
    _

</llo_original>
